<compile_context>
chip_gen: v6e
topology: v6e:2x2x1
jax: 0.10.0
libtpu: 0.0.40
codegen_flags: <defaults>
</compile_context>

<pallas_src>
import functools

import numpy as np
import jax
import jax.numpy as jnp
from jax.experimental import pallas as pl
from jax.experimental.pallas import tpu as pltpu


# ----------------------------- network config --------------------------------
C_IN = 4
C1, C2, C3, C4, C5 = 8, 16, 16, 32, 32
NUM_CLASSES = 3

# (name, ksize, cin, cout, activation)
LAYER_DEFS = (
    ("enc1", 3, C_IN, C1, "relu"),
    ("enc2", 3, C1, C2, "relu"),
    ("enc3", 3, C2, C3, "relu"),
    ("enc4", 3, C3, C4, "relu"),
    ("enc5", 3, C4, C5, "relu"),
    ("s4", 3, C5 + C4, C4, "relu"),
    ("s3", 3, C4 + C3, C3, "relu"),
    ("s2", 3, C3 + C2, C2, "relu"),
    ("s1", 3, C2 + C1, C1, "relu"),
    ("seg_head", 1, C1, NUM_CLASSES, None),
    ("d4", 3, C5 + C4 + C4, C4, "relu"),
    ("d3", 3, C4 + C3 + C3, C3, "relu"),
    ("d2", 3, C3 + C2 + C2, C2, "relu"),
    ("d1", 3, C2 + C1 + C1, C1, "relu"),
    ("dose_head", 1, C1, 1, "tanh"),
)
LAYER_IDX = {d[0]: i for i, d in enumerate(LAYER_DEFS)}
NUM_LAYERS = len(LAYER_DEFS)
MAX_COUT = max(d[3] for d in LAYER_DEFS)           # sublane count of the weight slab


def _round_up(x, m):
    return ((x + m - 1) // m) * m


# Lane offsets of every layer inside the single packed weight slab.  Layer i
# occupies slab[0:cout, off:off + k*k*cin + 1]; the extra column is the bias
# (the im2col patch matrix gets a matching constant-1 row).  Offsets are
# 128-aligned so in-kernel static slices are lane-aligned loads.
_offs, _o = [], 0
for (_, _k, _cin, _cout, _) in LAYER_DEFS:
    _offs.append(_o)
    _o += _round_up(_k * _k * _cin + 1, 128)
W_OFFS = tuple(_offs)
W_TOTAL = _o


# ------------------ shape-only constants (trace-time, numpy) -----------------
def _pool_matrix_np(h, w):
    """(h*w, h*w//4) one-hot selecting the top-left anchor of each 2x2 window."""
    ho, wo = h // 2, w // 2
    q = np.arange(ho * wo)
    src = (q // wo) * 2 * w + (q % wo) * 2
    m = np.zeros((h * w, ho * wo), np.float32)
    m[src, q] = 1.0
    return m


def _up_matrix_np(h, w):
    """(h*w, 4*h*w) one-hot nearest-neighbour 2x upsampling operator."""
    wo = 2 * w
    q = np.arange(2 * h * wo)
    src = (q // wo // 2) * w + (q % wo) // 2
    m = np.zeros((h * w, 2 * h * wo), np.float32)
    m[src, q] = 1.0
    return m


def _edge_masks_np(s, w_img):
    """(2, s) {not-first-column, not-last-column} masks for 'same' 3x3 convs."""
    w = np.arange(s) % w_img
    return np.stack([(w != 0), (w != w_img - 1)]).astype(np.float32)


# --------------------- in-kernel helper ops (traced code) --------------------
def _im2col_3x3(x, w_row, nf, nl):
    """x: (C, S) bf16 -> (9*C + 1, S) bf16 'same' 3x3 patch matrix (+ bias row).

    Taps are lane slices of a zero-extended copy of x: vertical overflow falls
    into the zero padding, horizontal wrap-around (incl. image boundaries when
    several batch images are folded along lanes) is zeroed by the precomputed
    nf / nl edge masks.  No reshapes, no iota, no rolls.
    """
    c, s = x.shape
    p = w_row + 1
    zpad = jnp.zeros((c, p), x.dtype)
    xz = jnp.concatenate([zpad, x, zpad], axis=1)            # (C, S + 2P)
    taps = []
    for dh in (-1, 0, 1):
        for dw in (-1, 0, 1):
            start = p + dh * w_row + dw
            t = xz[:, start:start + s]                       # t[:, q] = x[q + dh*W + dw]
            if dw == 1:
                t = t * nl
            elif dw == -1:
                t = t * nf
            taps.append(t)
    taps.append(jnp.ones((1, s), x.dtype))                   # bias row
    return jnp.concatenate(taps, axis=0)


def _maxpool_2x2(x, w_row, sel):
    """x: (C, S) bf16 -> (C, S//4) bf16, 2x2 / stride-2 max pooling."""
    c, s = x.shape
    pad = jnp.zeros((c, w_row + 2), x.dtype)
    xz = jnp.concatenate([x, pad], axis=1)
    m = x
    for d in (1, w_row, w_row + 1):
        m = jnp.maximum(m, xz[:, d:d + s])                   # window max at each anchor
    return jnp.dot(m, sel, preferred_element_type=jnp.float32).astype(x.dtype)


def _upsample_2x(x, up):
    """x: (C, S) bf16 -> (C, 4*S) bf16, nearest-neighbour 2x upsampling."""
    return jnp.dot(x, up, preferred_element_type=jnp.float32).astype(x.dtype)


# ------------------------------ fused kernel ---------------------------------
def _pgan_fused_kernel(x_ref, w_ref, m_ref,
                       p0_ref, p1_ref, p2_ref, p3_ref,
                       u4_ref, u3_ref, u2_ref, u1_ref,
                       out_ref, *, w_row, mask_offs):
    def conv(name, x, lvl):
        i = LAYER_IDX[name]
        _, k, cin, cout, act = LAYER_DEFS[i]
        kaug = k * k * cin + 1
        s = x.shape[1]
        if k == 3:
            moff = mask_offs[lvl]
            nf = m_ref[0:1, moff:moff + s]
            nl = m_ref[1:2, moff:moff + s]
            patches = _im2col_3x3(x, w_row >> lvl, nf, nl)
        else:
            patches = jnp.concatenate([x, jnp.ones((1, s), x.dtype)], axis=0)
        w = w_ref[0:cout, W_OFFS[i]:W_OFFS[i] + kaug]        # (cout, kaug) bf16
        y = jnp.dot(w, patches, preferred_element_type=jnp.float32)
        if act == "relu":
            return jnp.maximum(y, 0.0).astype(jnp.bfloat16)
        if act == "tanh":
            return jnp.tanh(y)                               # f32 head output
        return y                                             # f32 head output

    cat = lambda *xs: jnp.concatenate(xs, axis=0)
    x = x_ref[0]                                             # (C_IN, S) bf16

    # ---- shared_encoder:  x5, x4, x3, x2, x1 = netGEnc(origin) ----
    x1 = conv("enc1", x, 0)
    x2 = conv("enc2", _maxpool_2x2(x1, w_row, p0_ref[...]), 1)
    x3 = conv("enc3", _maxpool_2x2(x2, w_row >> 1, p1_ref[...]), 2)
    x4 = conv("enc4", _maxpool_2x2(x3, w_row >> 2, p2_ref[...]), 3)
    x5 = conv("enc5", _maxpool_2x2(x4, w_row >> 3, p3_ref[...]), 4)

    # ---- seg_decoder:  seg, d4, d3, d2, d1 = netG4seg(x5, x4, x3, x2, x1) ----
    up5 = _upsample_2x(x5, u4_ref[...])                      # shared with dose decoder
    d4 = conv("s4", cat(up5, x4), 3)
    d3 = conv("s3", cat(_upsample_2x(d4, u3_ref[...]), x3), 2)
    d2 = conv("s2", cat(_upsample_2x(d3, u2_ref[...]), x2), 1)
    d1 = conv("s1", cat(_upsample_2x(d2, u1_ref[...]), x1), 0)
    seg = conv("seg_head", d1, 0)                            # (NUM_CLASSES, S) f32

    # ---- dose_decoder:  dose = netG4dose(x5..x1, d4..d1) ----
    e4 = conv("d4", cat(up5, x4, d4), 3)
    e3 = conv("d3", cat(_upsample_2x(e4, u3_ref[...]), x3, d3), 2)
    e2 = conv("d2", cat(_upsample_2x(e3, u2_ref[...]), x2, d2), 1)
    e1 = conv("d1", cat(_upsample_2x(e2, u1_ref[...]), x1, d1), 0)
    dose = conv("dose_head", e1, 0)                          # (1, S) f32

    # single lane-dense store: rows 0..2 = seg logits, row 3 = dose
    out_ref[0] = jnp.concatenate([seg, dose], axis=0).astype(out_ref.dtype)


# ------------------------- parameter construction ----------------------------
def make_conv_params(key, k, cin, cout):
    kw_key, kb_key = jax.random.split(key)
    scale = (2.0 / (k * k * cin)) ** 0.5
    w = scale * jax.random.normal(kw_key, (k, k, cin, cout), jnp.float32)
    b = 0.01 * jax.random.normal(kb_key, (cout,), jnp.float32)
    return {"w": w, "b": b}


def init_params(key):
    keys = jax.random.split(key, NUM_LAYERS)
    return {
        name: make_conv_params(kk, ks, cin, cout)
        for kk, (name, ks, cin, cout, _) in zip(keys, LAYER_DEFS)
    }


def _pack_weight_slab(params):
    """All 15 conv layers -> one (MAX_COUT, W_TOTAL) bf16 slab, bias folded in."""
    cols = []
    for (name, k, cin, cout, _) in LAYER_DEFS:
        kaug = k * k * cin + 1
        w = jnp.transpose(jnp.reshape(params[name]["w"], (k * k * cin, cout)))
        wa = jnp.concatenate([w, jnp.reshape(params[name]["b"], (cout, 1))], axis=1)
        wa = jnp.pad(wa, ((0, MAX_COUT - cout), (0, _round_up(kaug, 128) - kaug)))
        cols.append(wa)
    return jnp.concatenate(cols, axis=1).astype(jnp.bfloat16)


# ------------------------------- PGAN.forward --------------------------------
@functools.partial(jax.jit, static_argnames=("num_grid_steps",))
def pgan_forward(params, origin_nchw, target_nchw, seg_gt_nchw, num_grid_steps=None):
    """Mirrors PGAN.forward(origin, target, seg_GT): returns (seg, dose) in NCHW.

    target / seg_GT are only stashed for later loss computation in the PyTorch
    module; they contribute no forward compute.
    """
    del target_nchw, seg_gt_nchw
    N, C, H, W = origin_nchw.shape
    assert C == C_IN and H % 16 == 0 and W % 16 == 0, (N, C, H, W)

    # Batch folding: G grid steps, F = N // G images interleaved along the lane
    # axis.  G >= 2 keeps both v7x TensorCores busy ("parallel" grid axis);
    # num_grid_steps=1 maximizes lane width on single-TC v5e / v6e.
    G = min(N, 2) if num_grid_steps is None else num_grid_steps
    assert N % G == 0, (N, G)
    F = N // G
    Wr = F * W                                   # folded row width
    S0 = H * Wr

    # (N,C,H,W) -> (G, C, H*F*W): images of a group laid side by side per row.
    x = origin_nchw.reshape(G, F, C, H, W).astype(jnp.bfloat16)
    x = jnp.transpose(x, (0, 2, 3, 1, 4)).reshape(G, C, S0)

    w_slab = _pack_weight_slab(params)

    # ---- shape-only constants, built once at trace time ----
    lev = [(H >> l, Wr >> l) for l in range(5)]
    pool_mats = [jnp.asarray(_pool_matrix_np(*lev[l]), jnp.bfloat16) for l in range(4)]
    up_mats = [jnp.asarray(_up_matrix_np(*lev[l]), jnp.bfloat16) for l in (4, 3, 2, 1)]

    segs, mask_offs, off = [], [], 0
    for l in range(5):
        hl, wrl = lev[l]
        s_l = hl * wrl
        m = _edge_masks_np(s_l, W >> l)
        segs.append(np.pad(m, ((0, 0), (0, _round_up(s_l, 128) - s_l))))
        mask_offs.append(off)
        off += _round_up(s_l, 128)
    edge_slab = jnp.asarray(np.concatenate(segs, axis=1), jnp.bfloat16)

    consts = [w_slab, edge_slab] + pool_mats + up_mats
    const_specs = [pl.BlockSpec(c.shape, lambda g: (0, 0)) for c in consts]

    out = pl.pallas_call(
        functools.partial(_pgan_fused_kernel, w_row=Wr, mask_offs=tuple(mask_offs)),
        out_shape=jax.ShapeDtypeStruct((G, NUM_CLASSES + 1, S0), jnp.float32),
        grid=(G,),
        in_specs=[pl.BlockSpec((1, C_IN, S0), lambda g: (g, 0, 0))] + const_specs,
        out_specs=pl.BlockSpec((1, NUM_CLASSES + 1, S0), lambda g: (g, 0, 0)),
        compiler_params=pltpu.CompilerParams(
            dimension_semantics=("parallel",),   # v7x: groups sharded over 2 TCs
            vmem_limit_bytes=32 * 1024 * 1024,
        ),
    )(x, *consts)

    # (G, 4, H*F*W) -> (N, 4, H, W) -> split seg / dose
    out = out.reshape(G, NUM_CLASSES + 1, H, F, W)
    out = jnp.transpose(out, (0, 3, 1, 2, 4)).reshape(N, NUM_CLASSES + 1, H, W)
    return out[:, :NUM_CLASSES], out[:, NUM_CLASSES:]


if __name__ == "__main__":
    key = jax.random.PRNGKey(0)
    k_params, k_origin, k_target, k_seg = jax.random.split(key, 4)

    params = init_params(k_params)

    N, H, W = 2, 16, 16
    origin = jax.random.normal(k_origin, (N, C_IN, H, W), jnp.float32)   # NCHW
    target = jax.random.normal(k_target, (N, 1, H, W), jnp.float32)      # dose_GT
    seg_gt = jax.random.randint(k_seg, (N, 1, H, W), 0, NUM_CLASSES).astype(jnp.float32)

    seg, dose = pgan_forward(params, origin, target, seg_gt)
    jax.block_until_ready((seg, dose))

    assert seg.shape == (N, NUM_CLASSES, H, W), seg.shape
    assert dose.shape == (N, 1, H, W), dose.shape
    assert bool(jnp.all(jnp.isfinite(seg))) and bool(jnp.all(jnp.isfinite(dose)))
    assert bool(jnp.all(jnp.abs(dose) <= 1.0))    # tanh head
    print("KERNEL_OK")
</pallas_src>

<mosaic_0001>
module attributes {stable_mosaic.version = 11 : i64} {
  func.func @_pgan_fused_kernel(%arg0: i32, %arg1: memref<1x4x256xbf16, #tpu.memory_space<vmem>>, %arg2: memref<32x5632xbf16, #tpu.memory_space<vmem>>, %arg3: memref<2x768xbf16, #tpu.memory_space<vmem>>, %arg4: memref<256x64xbf16, #tpu.memory_space<vmem>>, %arg5: memref<64x16xbf16, #tpu.memory_space<vmem>>, %arg6: memref<16x4xbf16, #tpu.memory_space<vmem>>, %arg7: memref<4x1xbf16, #tpu.memory_space<vmem>>, %arg8: memref<1x4xbf16, #tpu.memory_space<vmem>>, %arg9: memref<4x16xbf16, #tpu.memory_space<vmem>>, %arg10: memref<16x64xbf16, #tpu.memory_space<vmem>>, %arg11: memref<64x256xbf16, #tpu.memory_space<vmem>>, %arg12: memref<1x4x256xf32, #tpu.memory_space<vmem>>) attributes {dimension_semantics = [#tpu.dimension_semantics<parallel>], iteration_bounds = array<i64: 2>, scalar_prefetch = 0 : i64, scratch_operands = 0 : i64, tpu.core_type = #tpu.core_type<tc>, window_params = [{transform_indices = @transform_0, window_bounds = array<i64: 1, 4, 256>}, {pipeline_mode = #tpu.pipeline_mode<synchronous>, transform_indices = @transform_1, window_bounds = array<i64: 32, 5632>}, {pipeline_mode = #tpu.pipeline_mode<synchronous>, transform_indices = @transform_2, window_bounds = array<i64: 2, 768>}, {pipeline_mode = #tpu.pipeline_mode<synchronous>, transform_indices = @transform_3, window_bounds = array<i64: 256, 64>}, {pipeline_mode = #tpu.pipeline_mode<synchronous>, transform_indices = @transform_4, window_bounds = array<i64: 64, 16>}, {pipeline_mode = #tpu.pipeline_mode<synchronous>, transform_indices = @transform_5, window_bounds = array<i64: 16, 4>}, {pipeline_mode = #tpu.pipeline_mode<synchronous>, transform_indices = @transform_6, window_bounds = array<i64: 4, 1>}, {pipeline_mode = #tpu.pipeline_mode<synchronous>, transform_indices = @transform_7, window_bounds = array<i64: 1, 4>}, {pipeline_mode = #tpu.pipeline_mode<synchronous>, transform_indices = @transform_8, window_bounds = array<i64: 4, 16>}, {pipeline_mode = #tpu.pipeline_mode<synchronous>, transform_indices = @transform_9, window_bounds = array<i64: 16, 64>}, {pipeline_mode = #tpu.pipeline_mode<synchronous>, transform_indices = @transform_10, window_bounds = array<i64: 64, 256>}, {transform_indices = @transform_11, window_bounds = array<i64: 1, 4, 256>}]} {
    %c0 = arith.constant 0 : index
    %c0_0 = arith.constant 0 : index
    %c0_1 = arith.constant 0 : index
    %0 = vector.load %arg1[%c0, %c0_0, %c0_1] : memref<1x4x256xbf16, #tpu.memory_space<vmem>>, vector<1x4x256xbf16>
    %1 = vector.shape_cast %0 : vector<1x4x256xbf16> to vector<4x256xbf16>
    %c0_2 = arith.constant 0 : index
    %c0_3 = arith.constant 0 : index
    %2 = vector.load %arg3[%c0_2, %c0_3] : memref<2x768xbf16, #tpu.memory_space<vmem>>, vector<1x256xbf16>
    %c1 = arith.constant 1 : index
    %c0_4 = arith.constant 0 : index
    %3 = vector.load %arg3[%c1, %c0_4] : memref<2x768xbf16, #tpu.memory_space<vmem>>, vector<1x256xbf16>
    %cst = arith.constant 0.000000e+00 : bf16
    %4 = vector.broadcast %cst : bf16 to vector<4x17xbf16>
    %5 = tpu.concatenate %4, %1, %4 in 1 : vector<4x17xbf16>, vector<4x256xbf16>, vector<4x17xbf16> -> vector<4x290xbf16>
    %6 = vector.extract_strided_slice %5 {offsets = [0, 0], sizes = [4, 256], strides = [1, 1]} : vector<4x290xbf16> to vector<4x256xbf16>
    %7 = vector.broadcast %2 : vector<1x256xbf16> to vector<4x256xbf16>
    %8 = arith.mulf %6, %7 : vector<4x256xbf16>
    %9 = vector.extract_strided_slice %5 {offsets = [0, 1], sizes = [4, 256], strides = [1, 1]} : vector<4x290xbf16> to vector<4x256xbf16>
    %10 = vector.extract_strided_slice %5 {offsets = [0, 2], sizes = [4, 256], strides = [1, 1]} : vector<4x290xbf16> to vector<4x256xbf16>
    %11 = vector.broadcast %3 : vector<1x256xbf16> to vector<4x256xbf16>
    %12 = arith.mulf %10, %11 : vector<4x256xbf16>
    %13 = vector.extract_strided_slice %5 {offsets = [0, 16], sizes = [4, 256], strides = [1, 1]} : vector<4x290xbf16> to vector<4x256xbf16>
    %14 = vector.broadcast %2 : vector<1x256xbf16> to vector<4x256xbf16>
    %15 = arith.mulf %13, %14 : vector<4x256xbf16>
    %16 = vector.extract_strided_slice %5 {offsets = [0, 17], sizes = [4, 256], strides = [1, 1]} : vector<4x290xbf16> to vector<4x256xbf16>
    %17 = vector.extract_strided_slice %5 {offsets = [0, 18], sizes = [4, 256], strides = [1, 1]} : vector<4x290xbf16> to vector<4x256xbf16>
    %18 = vector.broadcast %3 : vector<1x256xbf16> to vector<4x256xbf16>
    %19 = arith.mulf %17, %18 : vector<4x256xbf16>
    %20 = vector.extract_strided_slice %5 {offsets = [0, 32], sizes = [4, 256], strides = [1, 1]} : vector<4x290xbf16> to vector<4x256xbf16>
    %21 = vector.broadcast %2 : vector<1x256xbf16> to vector<4x256xbf16>
    %22 = arith.mulf %20, %21 : vector<4x256xbf16>
    %23 = vector.extract_strided_slice %5 {offsets = [0, 33], sizes = [4, 256], strides = [1, 1]} : vector<4x290xbf16> to vector<4x256xbf16>
    %24 = vector.extract_strided_slice %5 {offsets = [0, 34], sizes = [4, 256], strides = [1, 1]} : vector<4x290xbf16> to vector<4x256xbf16>
    %25 = vector.broadcast %3 : vector<1x256xbf16> to vector<4x256xbf16>
    %26 = arith.mulf %24, %25 : vector<4x256xbf16>
    %cst_5 = arith.constant 1.000000e+00 : bf16
    %27 = vector.broadcast %cst_5 : bf16 to vector<1x256xbf16>
    %28 = tpu.concatenate %8, %9, %12, %15, %16, %19, %22, %23, %26, %27 in 0 : vector<4x256xbf16>, vector<4x256xbf16>, vector<4x256xbf16>, vector<4x256xbf16>, vector<4x256xbf16>, vector<4x256xbf16>, vector<4x256xbf16>, vector<4x256xbf16>, vector<4x256xbf16>, vector<1x256xbf16> -> vector<37x256xbf16>
    %c0_6 = arith.constant 0 : index
    %c0_7 = arith.constant 0 : index
    %29 = vector.load %arg2[%c0_6, %c0_7] : memref<32x5632xbf16, #tpu.memory_space<vmem>>, vector<8x37xbf16>
    %cst_8 = arith.constant dense<0.000000e+00> : vector<8x256xf32>
    %30 = tpu.matmul %29, %28, %cst_8 {dimension_numbers = #tpu.dot_dimension_numbers<[1], [0], [0], [1], [0, 0, 1, 1], [], []>} : vector<8x37xbf16>, vector<37x256xbf16>, vector<8x256xf32> -> vector<8x256xf32>
    %cst_9 = arith.constant 0.000000e+00 : f32
    %31 = vector.broadcast %cst_9 : f32 to vector<8x256xf32>
    %32 = arith.maximumf %30, %31 : vector<8x256xf32>
    %33 = arith.truncf %32 : vector<8x256xf32> to vector<8x256xbf16>
    %c0_10 = arith.constant 0 : index
    %c0_11 = arith.constant 0 : index
    %34 = vector.load %arg4[%c0_10, %c0_11] : memref<256x64xbf16, #tpu.memory_space<vmem>>, vector<256x64xbf16>
    %cst_12 = arith.constant 0.000000e+00 : bf16
    %35 = vector.broadcast %cst_12 : bf16 to vector<8x18xbf16>
    %36 = tpu.concatenate %33, %35 in 1 : vector<8x256xbf16>, vector<8x18xbf16> -> vector<8x274xbf16>
    %37 = vector.extract_strided_slice %36 {offsets = [0, 1], sizes = [8, 256], strides = [1, 1]} : vector<8x274xbf16> to vector<8x256xbf16>
    %38 = arith.maximumf %33, %37 : vector<8x256xbf16>
    %39 = vector.extract_strided_slice %36 {offsets = [0, 16], sizes = [8, 256], strides = [1, 1]} : vector<8x274xbf16> to vector<8x256xbf16>
    %40 = arith.maximumf %38, %39 : vector<8x256xbf16>
    %41 = vector.extract_strided_slice %36 {offsets = [0, 17], sizes = [8, 256], strides = [1, 1]} : vector<8x274xbf16> to vector<8x256xbf16>
    %42 = arith.maximumf %40, %41 : vector<8x256xbf16>
    %cst_13 = arith.constant dense<0.000000e+00> : vector<8x64xf32>
    %43 = tpu.matmul %42, %34, %cst_13 {dimension_numbers = #tpu.dot_dimension_numbers<[1], [0], [0], [1], [0, 0, 1, 1], [], []>} : vector<8x256xbf16>, vector<256x64xbf16>, vector<8x64xf32> -> vector<8x64xf32>
    %44 = arith.truncf %43 : vector<8x64xf32> to vector<8x64xbf16>
    %c0_14 = arith.constant 0 : index
    %c256 = arith.constant 256 : index
    %45 = vector.load %arg3[%c0_14, %c256] : memref<2x768xbf16, #tpu.memory_space<vmem>>, vector<1x64xbf16>
    %c1_15 = arith.constant 1 : index
    %c256_16 = arith.constant 256 : index
    %46 = vector.load %arg3[%c1_15, %c256_16] : memref<2x768xbf16, #tpu.memory_space<vmem>>, vector<1x64xbf16>
    %cst_17 = arith.constant 0.000000e+00 : bf16
    %47 = vector.broadcast %cst_17 : bf16 to vector<8x9xbf16>
    %48 = tpu.concatenate %47, %44, %47 in 1 : vector<8x9xbf16>, vector<8x64xbf16>, vector<8x9xbf16> -> vector<8x82xbf16>
    %49 = vector.extract_strided_slice %48 {offsets = [0, 0], sizes = [8, 64], strides = [1, 1]} : vector<8x82xbf16> to vector<8x64xbf16>
    %50 = vector.broadcast %45 : vector<1x64xbf16> to vector<8x64xbf16>
    %51 = arith.mulf %49, %50 : vector<8x64xbf16>
    %52 = vector.extract_strided_slice %48 {offsets = [0, 1], sizes = [8, 64], strides = [1, 1]} : vector<8x82xbf16> to vector<8x64xbf16>
    %53 = vector.extract_strided_slice %48 {offsets = [0, 2], sizes = [8, 64], strides = [1, 1]} : vector<8x82xbf16> to vector<8x64xbf16>
    %54 = vector.broadcast %46 : vector<1x64xbf16> to vector<8x64xbf16>
    %55 = arith.mulf %53, %54 : vector<8x64xbf16>
    %56 = vector.extract_strided_slice %48 {offsets = [0, 8], sizes = [8, 64], strides = [1, 1]} : vector<8x82xbf16> to vector<8x64xbf16>
    %57 = vector.broadcast %45 : vector<1x64xbf16> to vector<8x64xbf16>
    %58 = arith.mulf %56, %57 : vector<8x64xbf16>
    %59 = vector.extract_strided_slice %48 {offsets = [0, 9], sizes = [8, 64], strides = [1, 1]} : vector<8x82xbf16> to vector<8x64xbf16>
    %60 = vector.extract_strided_slice %48 {offsets = [0, 10], sizes = [8, 64], strides = [1, 1]} : vector<8x82xbf16> to vector<8x64xbf16>
    %61 = vector.broadcast %46 : vector<1x64xbf16> to vector<8x64xbf16>
    %62 = arith.mulf %60, %61 : vector<8x64xbf16>
    %63 = vector.extract_strided_slice %48 {offsets = [0, 16], sizes = [8, 64], strides = [1, 1]} : vector<8x82xbf16> to vector<8x64xbf16>
    %64 = vector.broadcast %45 : vector<1x64xbf16> to vector<8x64xbf16>
    %65 = arith.mulf %63, %64 : vector<8x64xbf16>
    %66 = vector.extract_strided_slice %48 {offsets = [0, 17], sizes = [8, 64], strides = [1, 1]} : vector<8x82xbf16> to vector<8x64xbf16>
    %67 = vector.extract_strided_slice %48 {offsets = [0, 18], sizes = [8, 64], strides = [1, 1]} : vector<8x82xbf16> to vector<8x64xbf16>
    %68 = vector.broadcast %46 : vector<1x64xbf16> to vector<8x64xbf16>
    %69 = arith.mulf %67, %68 : vector<8x64xbf16>
    %cst_18 = arith.constant 1.000000e+00 : bf16
    %70 = vector.broadcast %cst_18 : bf16 to vector<1x64xbf16>
    %71 = tpu.concatenate %51, %52, %55, %58, %59, %62, %65, %66, %69, %70 in 0 : vector<8x64xbf16>, vector<8x64xbf16>, vector<8x64xbf16>, vector<8x64xbf16>, vector<8x64xbf16>, vector<8x64xbf16>, vector<8x64xbf16>, vector<8x64xbf16>, vector<8x64xbf16>, vector<1x64xbf16> -> vector<73x64xbf16>
    %c0_19 = arith.constant 0 : index
    %c128 = arith.constant 128 : index
    %72 = vector.load %arg2[%c0_19, %c128] : memref<32x5632xbf16, #tpu.memory_space<vmem>>, vector<16x73xbf16>
    %cst_20 = arith.constant dense<0.000000e+00> : vector<16x64xf32>
    %73 = tpu.matmul %72, %71, %cst_20 {dimension_numbers = #tpu.dot_dimension_numbers<[1], [0], [0], [1], [0, 0, 1, 1], [], []>} : vector<16x73xbf16>, vector<73x64xbf16>, vector<16x64xf32> -> vector<16x64xf32>
    %cst_21 = arith.constant 0.000000e+00 : f32
    %74 = vector.broadcast %cst_21 : f32 to vector<16x64xf32>
    %75 = arith.maximumf %73, %74 : vector<16x64xf32>
    %76 = arith.truncf %75 : vector<16x64xf32> to vector<16x64xbf16>
    %c0_22 = arith.constant 0 : index
    %c0_23 = arith.constant 0 : index
    %77 = vector.load %arg5[%c0_22, %c0_23] : memref<64x16xbf16, #tpu.memory_space<vmem>>, vector<64x16xbf16>
    %cst_24 = arith.constant 0.000000e+00 : bf16
    %78 = vector.broadcast %cst_24 : bf16 to vector<16x10xbf16>
    %79 = tpu.concatenate %76, %78 in 1 : vector<16x64xbf16>, vector<16x10xbf16> -> vector<16x74xbf16>
    %80 = vector.extract_strided_slice %79 {offsets = [0, 1], sizes = [16, 64], strides = [1, 1]} : vector<16x74xbf16> to vector<16x64xbf16>
    %81 = arith.maximumf %76, %80 : vector<16x64xbf16>
    %82 = vector.extract_strided_slice %79 {offsets = [0, 8], sizes = [16, 64], strides = [1, 1]} : vector<16x74xbf16> to vector<16x64xbf16>
    %83 = arith.maximumf %81, %82 : vector<16x64xbf16>
    %84 = vector.extract_strided_slice %79 {offsets = [0, 9], sizes = [16, 64], strides = [1, 1]} : vector<16x74xbf16> to vector<16x64xbf16>
    %85 = arith.maximumf %83, %84 : vector<16x64xbf16>
    %cst_25 = arith.constant dense<0.000000e+00> : vector<16x16xf32>
    %86 = tpu.matmul %85, %77, %cst_25 {dimension_numbers = #tpu.dot_dimension_numbers<[1], [0], [0], [1], [0, 0, 1, 1], [], []>} : vector<16x64xbf16>, vector<64x16xbf16>, vector<16x16xf32> -> vector<16x16xf32>
    %87 = arith.truncf %86 : vector<16x16xf32> to vector<16x16xbf16>
    %c0_26 = arith.constant 0 : index
    %c384 = arith.constant 384 : index
    %88 = vector.load %arg3[%c0_26, %c384] : memref<2x768xbf16, #tpu.memory_space<vmem>>, vector<1x16xbf16>
    %c1_27 = arith.constant 1 : index
    %c384_28 = arith.constant 384 : index
    %89 = vector.load %arg3[%c1_27, %c384_28] : memref<2x768xbf16, #tpu.memory_space<vmem>>, vector<1x16xbf16>
    %cst_29 = arith.constant 0.000000e+00 : bf16
    %90 = vector.broadcast %cst_29 : bf16 to vector<16x5xbf16>
    %91 = tpu.concatenate %90, %87, %90 in 1 : vector<16x5xbf16>, vector<16x16xbf16>, vector<16x5xbf16> -> vector<16x26xbf16>
    %92 = vector.extract_strided_slice %91 {offsets = [0, 0], sizes = [16, 16], strides = [1, 1]} : vector<16x26xbf16> to vector<16x16xbf16>
    %93 = vector.broadcast %88 : vector<1x16xbf16> to vector<16x16xbf16>
    %94 = arith.mulf %92, %93 : vector<16x16xbf16>
    %95 = vector.extract_strided_slice %91 {offsets = [0, 1], sizes = [16, 16], strides = [1, 1]} : vector<16x26xbf16> to vector<16x16xbf16>
    %96 = vector.extract_strided_slice %91 {offsets = [0, 2], sizes = [16, 16], strides = [1, 1]} : vector<16x26xbf16> to vector<16x16xbf16>
    %97 = vector.broadcast %89 : vector<1x16xbf16> to vector<16x16xbf16>
    %98 = arith.mulf %96, %97 : vector<16x16xbf16>
    %99 = vector.extract_strided_slice %91 {offsets = [0, 4], sizes = [16, 16], strides = [1, 1]} : vector<16x26xbf16> to vector<16x16xbf16>
    %100 = vector.broadcast %88 : vector<1x16xbf16> to vector<16x16xbf16>
    %101 = arith.mulf %99, %100 : vector<16x16xbf16>
    %102 = vector.extract_strided_slice %91 {offsets = [0, 5], sizes = [16, 16], strides = [1, 1]} : vector<16x26xbf16> to vector<16x16xbf16>
    %103 = vector.extract_strided_slice %91 {offsets = [0, 6], sizes = [16, 16], strides = [1, 1]} : vector<16x26xbf16> to vector<16x16xbf16>
    %104 = vector.broadcast %89 : vector<1x16xbf16> to vector<16x16xbf16>
    %105 = arith.mulf %103, %104 : vector<16x16xbf16>
    %106 = vector.extract_strided_slice %91 {offsets = [0, 8], sizes = [16, 16], strides = [1, 1]} : vector<16x26xbf16> to vector<16x16xbf16>
    %107 = vector.broadcast %88 : vector<1x16xbf16> to vector<16x16xbf16>
    %108 = arith.mulf %106, %107 : vector<16x16xbf16>
    %109 = vector.extract_strided_slice %91 {offsets = [0, 9], sizes = [16, 16], strides = [1, 1]} : vector<16x26xbf16> to vector<16x16xbf16>
    %110 = vector.extract_strided_slice %91 {offsets = [0, 10], sizes = [16, 16], strides = [1, 1]} : vector<16x26xbf16> to vector<16x16xbf16>
    %111 = vector.broadcast %89 : vector<1x16xbf16> to vector<16x16xbf16>
    %112 = arith.mulf %110, %111 : vector<16x16xbf16>
    %cst_30 = arith.constant 1.000000e+00 : bf16
    %113 = vector.broadcast %cst_30 : bf16 to vector<1x16xbf16>
    %114 = tpu.concatenate %94, %95, %98, %101, %102, %105, %108, %109, %112, %113 in 0 : vector<16x16xbf16>, vector<16x16xbf16>, vector<16x16xbf16>, vector<16x16xbf16>, vector<16x16xbf16>, vector<16x16xbf16>, vector<16x16xbf16>, vector<16x16xbf16>, vector<16x16xbf16>, vector<1x16xbf16> -> vector<145x16xbf16>
    %c0_31 = arith.constant 0 : index
    %c256_32 = arith.constant 256 : index
    %115 = vector.load %arg2[%c0_31, %c256_32] : memref<32x5632xbf16, #tpu.memory_space<vmem>>, vector<16x145xbf16>
    %cst_33 = arith.constant dense<0.000000e+00> : vector<16x16xf32>
    %116 = tpu.matmul %115, %114, %cst_33 {dimension_numbers = #tpu.dot_dimension_numbers<[1], [0], [0], [1], [0, 0, 1, 1], [], []>} : vector<16x145xbf16>, vector<145x16xbf16>, vector<16x16xf32> -> vector<16x16xf32>
    %cst_34 = arith.constant 0.000000e+00 : f32
    %117 = vector.broadcast %cst_34 : f32 to vector<16x16xf32>
    %118 = arith.maximumf %116, %117 : vector<16x16xf32>
    %119 = arith.truncf %118 : vector<16x16xf32> to vector<16x16xbf16>
    %c0_35 = arith.constant 0 : index
    %c0_36 = arith.constant 0 : index
    %120 = vector.load %arg6[%c0_35, %c0_36] : memref<16x4xbf16, #tpu.memory_space<vmem>>, vector<16x4xbf16>
    %cst_37 = arith.constant 0.000000e+00 : bf16
    %121 = vector.broadcast %cst_37 : bf16 to vector<16x6xbf16>
    %122 = tpu.concatenate %119, %121 in 1 : vector<16x16xbf16>, vector<16x6xbf16> -> vector<16x22xbf16>
    %123 = vector.extract_strided_slice %122 {offsets = [0, 1], sizes = [16, 16], strides = [1, 1]} : vector<16x22xbf16> to vector<16x16xbf16>
    %124 = arith.maximumf %119, %123 : vector<16x16xbf16>
    %125 = vector.extract_strided_slice %122 {offsets = [0, 4], sizes = [16, 16], strides = [1, 1]} : vector<16x22xbf16> to vector<16x16xbf16>
    %126 = arith.maximumf %124, %125 : vector<16x16xbf16>
    %127 = vector.extract_strided_slice %122 {offsets = [0, 5], sizes = [16, 16], strides = [1, 1]} : vector<16x22xbf16> to vector<16x16xbf16>
    %128 = arith.maximumf %126, %127 : vector<16x16xbf16>
    %cst_38 = arith.constant dense<0.000000e+00> : vector<16x4xf32>
    %129 = tpu.matmul %128, %120, %cst_38 {dimension_numbers = #tpu.dot_dimension_numbers<[1], [0], [0], [1], [0, 0, 1, 1], [], []>} : vector<16x16xbf16>, vector<16x4xbf16>, vector<16x4xf32> -> vector<16x4xf32>
    %130 = arith.truncf %129 : vector<16x4xf32> to vector<16x4xbf16>
    %c0_39 = arith.constant 0 : index
    %c512 = arith.constant 512 : index
    %131 = vector.load %arg3[%c0_39, %c512] : memref<2x768xbf16, #tpu.memory_space<vmem>>, vector<1x4xbf16>
    %c1_40 = arith.constant 1 : index
    %c512_41 = arith.constant 512 : index
    %132 = vector.load %arg3[%c1_40, %c512_41] : memref<2x768xbf16, #tpu.memory_space<vmem>>, vector<1x4xbf16>
    %cst_42 = arith.constant 0.000000e+00 : bf16
    %133 = vector.broadcast %cst_42 : bf16 to vector<16x3xbf16>
    %134 = tpu.concatenate %133, %130, %133 in 1 : vector<16x3xbf16>, vector<16x4xbf16>, vector<16x3xbf16> -> vector<16x10xbf16>
    %135 = vector.extract_strided_slice %134 {offsets = [0, 0], sizes = [16, 4], strides = [1, 1]} : vector<16x10xbf16> to vector<16x4xbf16>
    %136 = vector.broadcast %131 : vector<1x4xbf16> to vector<16x4xbf16>
    %137 = arith.mulf %135, %136 : vector<16x4xbf16>
    %138 = vector.extract_strided_slice %134 {offsets = [0, 1], sizes = [16, 4], strides = [1, 1]} : vector<16x10xbf16> to vector<16x4xbf16>
    %139 = vector.extract_strided_slice %134 {offsets = [0, 2], sizes = [16, 4], strides = [1, 1]} : vector<16x10xbf16> to vector<16x4xbf16>
    %140 = vector.broadcast %132 : vector<1x4xbf16> to vector<16x4xbf16>
    %141 = arith.mulf %139, %140 : vector<16x4xbf16>
    %142 = vector.extract_strided_slice %134 {offsets = [0, 2], sizes = [16, 4], strides = [1, 1]} : vector<16x10xbf16> to vector<16x4xbf16>
    %143 = vector.broadcast %131 : vector<1x4xbf16> to vector<16x4xbf16>
    %144 = arith.mulf %142, %143 : vector<16x4xbf16>
    %145 = vector.extract_strided_slice %134 {offsets = [0, 3], sizes = [16, 4], strides = [1, 1]} : vector<16x10xbf16> to vector<16x4xbf16>
    %146 = vector.extract_strided_slice %134 {offsets = [0, 4], sizes = [16, 4], strides = [1, 1]} : vector<16x10xbf16> to vector<16x4xbf16>
    %147 = vector.broadcast %132 : vector<1x4xbf16> to vector<16x4xbf16>
    %148 = arith.mulf %146, %147 : vector<16x4xbf16>
    %149 = vector.extract_strided_slice %134 {offsets = [0, 4], sizes = [16, 4], strides = [1, 1]} : vector<16x10xbf16> to vector<16x4xbf16>
    %150 = vector.broadcast %131 : vector<1x4xbf16> to vector<16x4xbf16>
    %151 = arith.mulf %149, %150 : vector<16x4xbf16>
    %152 = vector.extract_strided_slice %134 {offsets = [0, 5], sizes = [16, 4], strides = [1, 1]} : vector<16x10xbf16> to vector<16x4xbf16>
    %153 = vector.extract_strided_slice %134 {offsets = [0, 6], sizes = [16, 4], strides = [1, 1]} : vector<16x10xbf16> to vector<16x4xbf16>
    %154 = vector.broadcast %132 : vector<1x4xbf16> to vector<16x4xbf16>
    %155 = arith.mulf %153, %154 : vector<16x4xbf16>
    %cst_43 = arith.constant 1.000000e+00 : bf16
    %156 = vector.broadcast %cst_43 : bf16 to vector<1x4xbf16>
    %157 = tpu.concatenate %137, %138, %141, %144, %145, %148, %151, %152, %155, %156 in 0 : vector<16x4xbf16>, vector<16x4xbf16>, vector<16x4xbf16>, vector<16x4xbf16>, vector<16x4xbf16>, vector<16x4xbf16>, vector<16x4xbf16>, vector<16x4xbf16>, vector<16x4xbf16>, vector<1x4xbf16> -> vector<145x4xbf16>
    %c0_44 = arith.constant 0 : index
    %c512_45 = arith.constant 512 : index
    %158 = vector.load %arg2[%c0_44, %c512_45] : memref<32x5632xbf16, #tpu.memory_space<vmem>>, vector<32x145xbf16>
    %cst_46 = arith.constant dense<0.000000e+00> : vector<32x4xf32>
    %159 = tpu.matmul %158, %157, %cst_46 {dimension_numbers = #tpu.dot_dimension_numbers<[1], [0], [0], [1], [0, 0, 1, 1], [], []>} : vector<32x145xbf16>, vector<145x4xbf16>, vector<32x4xf32> -> vector<32x4xf32>
    %cst_47 = arith.constant 0.000000e+00 : f32
    %160 = vector.broadcast %cst_47 : f32 to vector<32x4xf32>
    %161 = arith.maximumf %159, %160 : vector<32x4xf32>
    %162 = arith.truncf %161 : vector<32x4xf32> to vector<32x4xbf16>
    %c0_48 = arith.constant 0 : index
    %c0_49 = arith.constant 0 : index
    %163 = vector.load %arg7[%c0_48, %c0_49] : memref<4x1xbf16, #tpu.memory_space<vmem>>, vector<4x1xbf16>
    %cst_50 = arith.constant 0.000000e+00 : bf16
    %164 = vector.broadcast %cst_50 : bf16 to vector<32x4xbf16>
    %165 = tpu.concatenate %162, %164 in 1 : vector<32x4xbf16>, vector<32x4xbf16> -> vector<32x8xbf16>
    %166 = vector.extract_strided_slice %165 {offsets = [0, 1], sizes = [32, 4], strides = [1, 1]} : vector<32x8xbf16> to vector<32x4xbf16>
    %167 = arith.maximumf %162, %166 : vector<32x4xbf16>
    %168 = vector.extract_strided_slice %165 {offsets = [0, 2], sizes = [32, 4], strides = [1, 1]} : vector<32x8xbf16> to vector<32x4xbf16>
    %169 = arith.maximumf %167, %168 : vector<32x4xbf16>
    %170 = vector.extract_strided_slice %165 {offsets = [0, 3], sizes = [32, 4], strides = [1, 1]} : vector<32x8xbf16> to vector<32x4xbf16>
    %171 = arith.maximumf %169, %170 : vector<32x4xbf16>
    %cst_51 = arith.constant dense<0.000000e+00> : vector<32x1xf32>
    %172 = tpu.matmul %171, %163, %cst_51 {dimension_numbers = #tpu.dot_dimension_numbers<[1], [0], [0], [1], [0, 0, 1, 1], [], []>} : vector<32x4xbf16>, vector<4x1xbf16>, vector<32x1xf32> -> vector<32x1xf32>
    %173 = arith.truncf %172 : vector<32x1xf32> to vector<32x1xbf16>
    %c0_52 = arith.constant 0 : index
    %c640 = arith.constant 640 : index
    %174 = vector.load %arg3[%c0_52, %c640] : memref<2x768xbf16, #tpu.memory_space<vmem>>, vector<1x1xbf16>
    %c1_53 = arith.constant 1 : index
    %c640_54 = arith.constant 640 : index
    %175 = vector.load %arg3[%c1_53, %c640_54] : memref<2x768xbf16, #tpu.memory_space<vmem>>, vector<1x1xbf16>
    %cst_55 = arith.constant 0.000000e+00 : bf16
    %176 = vector.broadcast %cst_55 : bf16 to vector<32x2xbf16>
    %177 = tpu.concatenate %176, %173, %176 in 1 : vector<32x2xbf16>, vector<32x1xbf16>, vector<32x2xbf16> -> vector<32x5xbf16>
    %178 = vector.extract_strided_slice %177 {offsets = [0, 0], sizes = [32, 1], strides = [1, 1]} : vector<32x5xbf16> to vector<32x1xbf16>
    %179 = vector.broadcast %174 : vector<1x1xbf16> to vector<32x1xbf16>
    %180 = arith.mulf %178, %179 : vector<32x1xbf16>
    %181 = vector.extract_strided_slice %177 {offsets = [0, 1], sizes = [32, 1], strides = [1, 1]} : vector<32x5xbf16> to vector<32x1xbf16>
    %182 = vector.extract_strided_slice %177 {offsets = [0, 2], sizes = [32, 1], strides = [1, 1]} : vector<32x5xbf16> to vector<32x1xbf16>
    %183 = vector.broadcast %175 : vector<1x1xbf16> to vector<32x1xbf16>
    %184 = arith.mulf %182, %183 : vector<32x1xbf16>
    %185 = vector.extract_strided_slice %177 {offsets = [0, 1], sizes = [32, 1], strides = [1, 1]} : vector<32x5xbf16> to vector<32x1xbf16>
    %186 = vector.broadcast %174 : vector<1x1xbf16> to vector<32x1xbf16>
    %187 = arith.mulf %185, %186 : vector<32x1xbf16>
    %188 = vector.extract_strided_slice %177 {offsets = [0, 2], sizes = [32, 1], strides = [1, 1]} : vector<32x5xbf16> to vector<32x1xbf16>
    %189 = vector.extract_strided_slice %177 {offsets = [0, 3], sizes = [32, 1], strides = [1, 1]} : vector<32x5xbf16> to vector<32x1xbf16>
    %190 = vector.broadcast %175 : vector<1x1xbf16> to vector<32x1xbf16>
    %191 = arith.mulf %189, %190 : vector<32x1xbf16>
    %192 = vector.extract_strided_slice %177 {offsets = [0, 2], sizes = [32, 1], strides = [1, 1]} : vector<32x5xbf16> to vector<32x1xbf16>
    %193 = vector.broadcast %174 : vector<1x1xbf16> to vector<32x1xbf16>
    %194 = arith.mulf %192, %193 : vector<32x1xbf16>
    %195 = vector.extract_strided_slice %177 {offsets = [0, 3], sizes = [32, 1], strides = [1, 1]} : vector<32x5xbf16> to vector<32x1xbf16>
    %196 = vector.extract_strided_slice %177 {offsets = [0, 4], sizes = [32, 1], strides = [1, 1]} : vector<32x5xbf16> to vector<32x1xbf16>
    %197 = vector.broadcast %175 : vector<1x1xbf16> to vector<32x1xbf16>
    %198 = arith.mulf %196, %197 : vector<32x1xbf16>
    %cst_56 = arith.constant 1.000000e+00 : bf16
    %199 = vector.broadcast %cst_56 : bf16 to vector<1x1xbf16>
    %200 = tpu.concatenate %180, %181, %184, %187, %188, %191, %194, %195, %198, %199 in 0 : vector<32x1xbf16>, vector<32x1xbf16>, vector<32x1xbf16>, vector<32x1xbf16>, vector<32x1xbf16>, vector<32x1xbf16>, vector<32x1xbf16>, vector<32x1xbf16>, vector<32x1xbf16>, vector<1x1xbf16> -> vector<289x1xbf16>
    %c0_57 = arith.constant 0 : index
    %c768 = arith.constant 768 : index
    %201 = vector.load %arg2[%c0_57, %c768] : memref<32x5632xbf16, #tpu.memory_space<vmem>>, vector<32x289xbf16>
    %cst_58 = arith.constant dense<0.000000e+00> : vector<32x1xf32>
    %202 = tpu.matmul %201, %200, %cst_58 {dimension_numbers = #tpu.dot_dimension_numbers<[1], [0], [0], [1], [0, 0, 1, 1], [], []>} : vector<32x289xbf16>, vector<289x1xbf16>, vector<32x1xf32> -> vector<32x1xf32>
    %cst_59 = arith.constant 0.000000e+00 : f32
    %203 = vector.broadcast %cst_59 : f32 to vector<32x1xf32>
    %204 = arith.maximumf %202, %203 : vector<32x1xf32>
    %205 = arith.truncf %204 : vector<32x1xf32> to vector<32x1xbf16>
    %c0_60 = arith.constant 0 : index
    %c0_61 = arith.constant 0 : index
    %206 = vector.load %arg8[%c0_60, %c0_61] : memref<1x4xbf16, #tpu.memory_space<vmem>>, vector<1x4xbf16>
    %cst_62 = arith.constant dense<0.000000e+00> : vector<32x4xf32>
    %207 = tpu.matmul %205, %206, %cst_62 {dimension_numbers = #tpu.dot_dimension_numbers<[1], [0], [0], [1], [0, 0, 1, 1], [], []>} : vector<32x1xbf16>, vector<1x4xbf16>, vector<32x4xf32> -> vector<32x4xf32>
    %208 = arith.truncf %207 : vector<32x4xf32> to vector<32x4xbf16>
    %209 = tpu.concatenate %208, %162 in 0 : vector<32x4xbf16>, vector<32x4xbf16> -> vector<64x4xbf16>
    %c0_63 = arith.constant 0 : index
    %c512_64 = arith.constant 512 : index
    %210 = vector.load %arg3[%c0_63, %c512_64] : memref<2x768xbf16, #tpu.memory_space<vmem>>, vector<1x4xbf16>
    %c1_65 = arith.constant 1 : index
    %c512_66 = arith.constant 512 : index
    %211 = vector.load %arg3[%c1_65, %c512_66] : memref<2x768xbf16, #tpu.memory_space<vmem>>, vector<1x4xbf16>
    %cst_67 = arith.constant 0.000000e+00 : bf16
    %212 = vector.broadcast %cst_67 : bf16 to vector<64x3xbf16>
    %213 = tpu.concatenate %212, %209, %212 in 1 : vector<64x3xbf16>, vector<64x4xbf16>, vector<64x3xbf16> -> vector<64x10xbf16>
    %214 = vector.extract_strided_slice %213 {offsets = [0, 0], sizes = [64, 4], strides = [1, 1]} : vector<64x10xbf16> to vector<64x4xbf16>
    %215 = vector.broadcast %210 : vector<1x4xbf16> to vector<64x4xbf16>
    %216 = arith.mulf %214, %215 : vector<64x4xbf16>
    %217 = vector.extract_strided_slice %213 {offsets = [0, 1], sizes = [64, 4], strides = [1, 1]} : vector<64x10xbf16> to vector<64x4xbf16>
    %218 = vector.extract_strided_slice %213 {offsets = [0, 2], sizes = [64, 4], strides = [1, 1]} : vector<64x10xbf16> to vector<64x4xbf16>
    %219 = vector.broadcast %211 : vector<1x4xbf16> to vector<64x4xbf16>
    %220 = arith.mulf %218, %219 : vector<64x4xbf16>
    %221 = vector.extract_strided_slice %213 {offsets = [0, 2], sizes = [64, 4], strides = [1, 1]} : vector<64x10xbf16> to vector<64x4xbf16>
    %222 = vector.broadcast %210 : vector<1x4xbf16> to vector<64x4xbf16>
    %223 = arith.mulf %221, %222 : vector<64x4xbf16>
    %224 = vector.extract_strided_slice %213 {offsets = [0, 3], sizes = [64, 4], strides = [1, 1]} : vector<64x10xbf16> to vector<64x4xbf16>
    %225 = vector.extract_strided_slice %213 {offsets = [0, 4], sizes = [64, 4], strides = [1, 1]} : vector<64x10xbf16> to vector<64x4xbf16>
    %226 = vector.broadcast %211 : vector<1x4xbf16> to vector<64x4xbf16>
    %227 = arith.mulf %225, %226 : vector<64x4xbf16>
    %228 = vector.extract_strided_slice %213 {offsets = [0, 4], sizes = [64, 4], strides = [1, 1]} : vector<64x10xbf16> to vector<64x4xbf16>
    %229 = vector.broadcast %210 : vector<1x4xbf16> to vector<64x4xbf16>
    %230 = arith.mulf %228, %229 : vector<64x4xbf16>
    %231 = vector.extract_strided_slice %213 {offsets = [0, 5], sizes = [64, 4], strides = [1, 1]} : vector<64x10xbf16> to vector<64x4xbf16>
    %232 = vector.extract_strided_slice %213 {offsets = [0, 6], sizes = [64, 4], strides = [1, 1]} : vector<64x10xbf16> to vector<64x4xbf16>
    %233 = vector.broadcast %211 : vector<1x4xbf16> to vector<64x4xbf16>
    %234 = arith.mulf %232, %233 : vector<64x4xbf16>
    %cst_68 = arith.constant 1.000000e+00 : bf16
    %235 = vector.broadcast %cst_68 : bf16 to vector<1x4xbf16>
    %236 = tpu.concatenate %216, %217, %220, %223, %224, %227, %230, %231, %234, %235 in 0 : vector<64x4xbf16>, vector<64x4xbf16>, vector<64x4xbf16>, vector<64x4xbf16>, vector<64x4xbf16>, vector<64x4xbf16>, vector<64x4xbf16>, vector<64x4xbf16>, vector<64x4xbf16>, vector<1x4xbf16> -> vector<577x4xbf16>
    %c0_69 = arith.constant 0 : index
    %c1152 = arith.constant 1152 : index
    %237 = vector.load %arg2[%c0_69, %c1152] : memref<32x5632xbf16, #tpu.memory_space<vmem>>, vector<32x577xbf16>
    %cst_70 = arith.constant dense<0.000000e+00> : vector<32x4xf32>
    %238 = tpu.matmul %237, %236, %cst_70 {dimension_numbers = #tpu.dot_dimension_numbers<[1], [0], [0], [1], [0, 0, 1, 1], [], []>} : vector<32x577xbf16>, vector<577x4xbf16>, vector<32x4xf32> -> vector<32x4xf32>
    %cst_71 = arith.constant 0.000000e+00 : f32
    %239 = vector.broadcast %cst_71 : f32 to vector<32x4xf32>
    %240 = arith.maximumf %238, %239 : vector<32x4xf32>
    %241 = arith.truncf %240 : vector<32x4xf32> to vector<32x4xbf16>
    %c0_72 = arith.constant 0 : index
    %c0_73 = arith.constant 0 : index
    %242 = vector.load %arg9[%c0_72, %c0_73] : memref<4x16xbf16, #tpu.memory_space<vmem>>, vector<4x16xbf16>
    %cst_74 = arith.constant dense<0.000000e+00> : vector<32x16xf32>
    %243 = tpu.matmul %241, %242, %cst_74 {dimension_numbers = #tpu.dot_dimension_numbers<[1], [0], [0], [1], [0, 0, 1, 1], [], []>} : vector<32x4xbf16>, vector<4x16xbf16>, vector<32x16xf32> -> vector<32x16xf32>
    %244 = arith.truncf %243 : vector<32x16xf32> to vector<32x16xbf16>
    %245 = tpu.concatenate %244, %119 in 0 : vector<32x16xbf16>, vector<16x16xbf16> -> vector<48x16xbf16>
    %c0_75 = arith.constant 0 : index
    %c384_76 = arith.constant 384 : index
    %246 = vector.load %arg3[%c0_75, %c384_76] : memref<2x768xbf16, #tpu.memory_space<vmem>>, vector<1x16xbf16>
    %c1_77 = arith.constant 1 : index
    %c384_78 = arith.constant 384 : index
    %247 = vector.load %arg3[%c1_77, %c384_78] : memref<2x768xbf16, #tpu.memory_space<vmem>>, vector<1x16xbf16>
    %cst_79 = arith.constant 0.000000e+00 : bf16
    %248 = vector.broadcast %cst_79 : bf16 to vector<48x5xbf16>
    %249 = tpu.concatenate %248, %245, %248 in 1 : vector<48x5xbf16>, vector<48x16xbf16>, vector<48x5xbf16> -> vector<48x26xbf16>
    %250 = vector.extract_strided_slice %249 {offsets = [0, 0], sizes = [48, 16], strides = [1, 1]} : vector<48x26xbf16> to vector<48x16xbf16>
    %251 = vector.broadcast %246 : vector<1x16xbf16> to vector<48x16xbf16>
    %252 = arith.mulf %250, %251 : vector<48x16xbf16>
    %253 = vector.extract_strided_slice %249 {offsets = [0, 1], sizes = [48, 16], strides = [1, 1]} : vector<48x26xbf16> to vector<48x16xbf16>
    %254 = vector.extract_strided_slice %249 {offsets = [0, 2], sizes = [48, 16], strides = [1, 1]} : vector<48x26xbf16> to vector<48x16xbf16>
    %255 = vector.broadcast %247 : vector<1x16xbf16> to vector<48x16xbf16>
    %256 = arith.mulf %254, %255 : vector<48x16xbf16>
    %257 = vector.extract_strided_slice %249 {offsets = [0, 4], sizes = [48, 16], strides = [1, 1]} : vector<48x26xbf16> to vector<48x16xbf16>
    %258 = vector.broadcast %246 : vector<1x16xbf16> to vector<48x16xbf16>
    %259 = arith.mulf %257, %258 : vector<48x16xbf16>
    %260 = vector.extract_strided_slice %249 {offsets = [0, 5], sizes = [48, 16], strides = [1, 1]} : vector<48x26xbf16> to vector<48x16xbf16>
    %261 = vector.extract_strided_slice %249 {offsets = [0, 6], sizes = [48, 16], strides = [1, 1]} : vector<48x26xbf16> to vector<48x16xbf16>
    %262 = vector.broadcast %247 : vector<1x16xbf16> to vector<48x16xbf16>
    %263 = arith.mulf %261, %262 : vector<48x16xbf16>
    %264 = vector.extract_strided_slice %249 {offsets = [0, 8], sizes = [48, 16], strides = [1, 1]} : vector<48x26xbf16> to vector<48x16xbf16>
    %265 = vector.broadcast %246 : vector<1x16xbf16> to vector<48x16xbf16>
    %266 = arith.mulf %264, %265 : vector<48x16xbf16>
    %267 = vector.extract_strided_slice %249 {offsets = [0, 9], sizes = [48, 16], strides = [1, 1]} : vector<48x26xbf16> to vector<48x16xbf16>
    %268 = vector.extract_strided_slice %249 {offsets = [0, 10], sizes = [48, 16], strides = [1, 1]} : vector<48x26xbf16> to vector<48x16xbf16>
    %269 = vector.broadcast %247 : vector<1x16xbf16> to vector<48x16xbf16>
    %270 = arith.mulf %268, %269 : vector<48x16xbf16>
    %cst_80 = arith.constant 1.000000e+00 : bf16
    %271 = vector.broadcast %cst_80 : bf16 to vector<1x16xbf16>
    %272 = tpu.concatenate %252, %253, %256, %259, %260, %263, %266, %267, %270, %271 in 0 : vector<48x16xbf16>, vector<48x16xbf16>, vector<48x16xbf16>, vector<48x16xbf16>, vector<48x16xbf16>, vector<48x16xbf16>, vector<48x16xbf16>, vector<48x16xbf16>, vector<48x16xbf16>, vector<1x16xbf16> -> vector<433x16xbf16>
    %c0_81 = arith.constant 0 : index
    %c1792 = arith.constant 1792 : index
    %273 = vector.load %arg2[%c0_81, %c1792] : memref<32x5632xbf16, #tpu.memory_space<vmem>>, vector<16x433xbf16>
    %cst_82 = arith.constant dense<0.000000e+00> : vector<16x16xf32>
    %274 = tpu.matmul %273, %272, %cst_82 {dimension_numbers = #tpu.dot_dimension_numbers<[1], [0], [0], [1], [0, 0, 1, 1], [], []>} : vector<16x433xbf16>, vector<433x16xbf16>, vector<16x16xf32> -> vector<16x16xf32>
    %cst_83 = arith.constant 0.000000e+00 : f32
    %275 = vector.broadcast %cst_83 : f32 to vector<16x16xf32>
    %276 = arith.maximumf %274, %275 : vector<16x16xf32>
    %277 = arith.truncf %276 : vector<16x16xf32> to vector<16x16xbf16>
    %c0_84 = arith.constant 0 : index
    %c0_85 = arith.constant 0 : index
    %278 = vector.load %arg10[%c0_84, %c0_85] : memref<16x64xbf16, #tpu.memory_space<vmem>>, vector<16x64xbf16>
    %cst_86 = arith.constant dense<0.000000e+00> : vector<16x64xf32>
    %279 = tpu.matmul %277, %278, %cst_86 {dimension_numbers = #tpu.dot_dimension_numbers<[1], [0], [0], [1], [0, 0, 1, 1], [], []>} : vector<16x16xbf16>, vector<16x64xbf16>, vector<16x64xf32> -> vector<16x64xf32>
    %280 = arith.truncf %279 : vector<16x64xf32> to vector<16x64xbf16>
    %281 = tpu.concatenate %280, %76 in 0 : vector<16x64xbf16>, vector<16x64xbf16> -> vector<32x64xbf16>
    %c0_87 = arith.constant 0 : index
    %c256_88 = arith.constant 256 : index
    %282 = vector.load %arg3[%c0_87, %c256_88] : memref<2x768xbf16, #tpu.memory_space<vmem>>, vector<1x64xbf16>
    %c1_89 = arith.constant 1 : index
    %c256_90 = arith.constant 256 : index
    %283 = vector.load %arg3[%c1_89, %c256_90] : memref<2x768xbf16, #tpu.memory_space<vmem>>, vector<1x64xbf16>
    %cst_91 = arith.constant 0.000000e+00 : bf16
    %284 = vector.broadcast %cst_91 : bf16 to vector<32x9xbf16>
    %285 = tpu.concatenate %284, %281, %284 in 1 : vector<32x9xbf16>, vector<32x64xbf16>, vector<32x9xbf16> -> vector<32x82xbf16>
    %286 = vector.extract_strided_slice %285 {offsets = [0, 0], sizes = [32, 64], strides = [1, 1]} : vector<32x82xbf16> to vector<32x64xbf16>
    %287 = vector.broadcast %282 : vector<1x64xbf16> to vector<32x64xbf16>
    %288 = arith.mulf %286, %287 : vector<32x64xbf16>
    %289 = vector.extract_strided_slice %285 {offsets = [0, 1], sizes = [32, 64], strides = [1, 1]} : vector<32x82xbf16> to vector<32x64xbf16>
    %290 = vector.extract_strided_slice %285 {offsets = [0, 2], sizes = [32, 64], strides = [1, 1]} : vector<32x82xbf16> to vector<32x64xbf16>
    %291 = vector.broadcast %283 : vector<1x64xbf16> to vector<32x64xbf16>
    %292 = arith.mulf %290, %291 : vector<32x64xbf16>
    %293 = vector.extract_strided_slice %285 {offsets = [0, 8], sizes = [32, 64], strides = [1, 1]} : vector<32x82xbf16> to vector<32x64xbf16>
    %294 = vector.broadcast %282 : vector<1x64xbf16> to vector<32x64xbf16>
    %295 = arith.mulf %293, %294 : vector<32x64xbf16>
    %296 = vector.extract_strided_slice %285 {offsets = [0, 9], sizes = [32, 64], strides = [1, 1]} : vector<32x82xbf16> to vector<32x64xbf16>
    %297 = vector.extract_strided_slice %285 {offsets = [0, 10], sizes = [32, 64], strides = [1, 1]} : vector<32x82xbf16> to vector<32x64xbf16>
    %298 = vector.broadcast %283 : vector<1x64xbf16> to vector<32x64xbf16>
    %299 = arith.mulf %297, %298 : vector<32x64xbf16>
    %300 = vector.extract_strided_slice %285 {offsets = [0, 16], sizes = [32, 64], strides = [1, 1]} : vector<32x82xbf16> to vector<32x64xbf16>
    %301 = vector.broadcast %282 : vector<1x64xbf16> to vector<32x64xbf16>
    %302 = arith.mulf %300, %301 : vector<32x64xbf16>
    %303 = vector.extract_strided_slice %285 {offsets = [0, 17], sizes = [32, 64], strides = [1, 1]} : vector<32x82xbf16> to vector<32x64xbf16>
    %304 = vector.extract_strided_slice %285 {offsets = [0, 18], sizes = [32, 64], strides = [1, 1]} : vector<32x82xbf16> to vector<32x64xbf16>
    %305 = vector.broadcast %283 : vector<1x64xbf16> to vector<32x64xbf16>
    %306 = arith.mulf %304, %305 : vector<32x64xbf16>
    %cst_92 = arith.constant 1.000000e+00 : bf16
    %307 = vector.broadcast %cst_92 : bf16 to vector<1x64xbf16>
    %308 = tpu.concatenate %288, %289, %292, %295, %296, %299, %302, %303, %306, %307 in 0 : vector<32x64xbf16>, vector<32x64xbf16>, vector<32x64xbf16>, vector<32x64xbf16>, vector<32x64xbf16>, vector<32x64xbf16>, vector<32x64xbf16>, vector<32x64xbf16>, vector<32x64xbf16>, vector<1x64xbf16> -> vector<289x64xbf16>
    %c0_93 = arith.constant 0 : index
    %c2304 = arith.constant 2304 : index
    %309 = vector.load %arg2[%c0_93, %c2304] : memref<32x5632xbf16, #tpu.memory_space<vmem>>, vector<16x289xbf16>
    %cst_94 = arith.constant dense<0.000000e+00> : vector<16x64xf32>
    %310 = tpu.matmul %309, %308, %cst_94 {dimension_numbers = #tpu.dot_dimension_numbers<[1], [0], [0], [1], [0, 0, 1, 1], [], []>} : vector<16x289xbf16>, vector<289x64xbf16>, vector<16x64xf32> -> vector<16x64xf32>
    %cst_95 = arith.constant 0.000000e+00 : f32
    %311 = vector.broadcast %cst_95 : f32 to vector<16x64xf32>
    %312 = arith.maximumf %310, %311 : vector<16x64xf32>
    %313 = arith.truncf %312 : vector<16x64xf32> to vector<16x64xbf16>
    %c0_96 = arith.constant 0 : index
    %c0_97 = arith.constant 0 : index
    %314 = vector.load %arg11[%c0_96, %c0_97] : memref<64x256xbf16, #tpu.memory_space<vmem>>, vector<64x256xbf16>
    %cst_98 = arith.constant dense<0.000000e+00> : vector<16x256xf32>
    %315 = tpu.matmul %313, %314, %cst_98 {dimension_numbers = #tpu.dot_dimension_numbers<[1], [0], [0], [1], [0, 0, 1, 1], [], []>} : vector<16x64xbf16>, vector<64x256xbf16>, vector<16x256xf32> -> vector<16x256xf32>
    %316 = arith.truncf %315 : vector<16x256xf32> to vector<16x256xbf16>
    %317 = tpu.concatenate %316, %33 in 0 : vector<16x256xbf16>, vector<8x256xbf16> -> vector<24x256xbf16>
    %c0_99 = arith.constant 0 : index
    %c0_100 = arith.constant 0 : index
    %318 = vector.load %arg3[%c0_99, %c0_100] : memref<2x768xbf16, #tpu.memory_space<vmem>>, vector<1x256xbf16>
    %c1_101 = arith.constant 1 : index
    %c0_102 = arith.constant 0 : index
    %319 = vector.load %arg3[%c1_101, %c0_102] : memref<2x768xbf16, #tpu.memory_space<vmem>>, vector<1x256xbf16>
    %cst_103 = arith.constant 0.000000e+00 : bf16
    %320 = vector.broadcast %cst_103 : bf16 to vector<24x17xbf16>
    %321 = tpu.concatenate %320, %317, %320 in 1 : vector<24x17xbf16>, vector<24x256xbf16>, vector<24x17xbf16> -> vector<24x290xbf16>
    %322 = vector.extract_strided_slice %321 {offsets = [0, 0], sizes = [24, 256], strides = [1, 1]} : vector<24x290xbf16> to vector<24x256xbf16>
    %323 = vector.broadcast %318 : vector<1x256xbf16> to vector<24x256xbf16>
    %324 = arith.mulf %322, %323 : vector<24x256xbf16>
    %325 = vector.extract_strided_slice %321 {offsets = [0, 1], sizes = [24, 256], strides = [1, 1]} : vector<24x290xbf16> to vector<24x256xbf16>
    %326 = vector.extract_strided_slice %321 {offsets = [0, 2], sizes = [24, 256], strides = [1, 1]} : vector<24x290xbf16> to vector<24x256xbf16>
    %327 = vector.broadcast %319 : vector<1x256xbf16> to vector<24x256xbf16>
    %328 = arith.mulf %326, %327 : vector<24x256xbf16>
    %329 = vector.extract_strided_slice %321 {offsets = [0, 16], sizes = [24, 256], strides = [1, 1]} : vector<24x290xbf16> to vector<24x256xbf16>
    %330 = vector.broadcast %318 : vector<1x256xbf16> to vector<24x256xbf16>
    %331 = arith.mulf %329, %330 : vector<24x256xbf16>
    %332 = vector.extract_strided_slice %321 {offsets = [0, 17], sizes = [24, 256], strides = [1, 1]} : vector<24x290xbf16> to vector<24x256xbf16>
    %333 = vector.extract_strided_slice %321 {offsets = [0, 18], sizes = [24, 256], strides = [1, 1]} : vector<24x290xbf16> to vector<24x256xbf16>
    %334 = vector.broadcast %319 : vector<1x256xbf16> to vector<24x256xbf16>
    %335 = arith.mulf %333, %334 : vector<24x256xbf16>
    %336 = vector.extract_strided_slice %321 {offsets = [0, 32], sizes = [24, 256], strides = [1, 1]} : vector<24x290xbf16> to vector<24x256xbf16>
    %337 = vector.broadcast %318 : vector<1x256xbf16> to vector<24x256xbf16>
    %338 = arith.mulf %336, %337 : vector<24x256xbf16>
    %339 = vector.extract_strided_slice %321 {offsets = [0, 33], sizes = [24, 256], strides = [1, 1]} : vector<24x290xbf16> to vector<24x256xbf16>
    %340 = vector.extract_strided_slice %321 {offsets = [0, 34], sizes = [24, 256], strides = [1, 1]} : vector<24x290xbf16> to vector<24x256xbf16>
    %341 = vector.broadcast %319 : vector<1x256xbf16> to vector<24x256xbf16>
    %342 = arith.mulf %340, %341 : vector<24x256xbf16>
    %cst_104 = arith.constant 1.000000e+00 : bf16
    %343 = vector.broadcast %cst_104 : bf16 to vector<1x256xbf16>
    %344 = tpu.concatenate %324, %325, %328, %331, %332, %335, %338, %339, %342, %343 in 0 : vector<24x256xbf16>, vector<24x256xbf16>, vector<24x256xbf16>, vector<24x256xbf16>, vector<24x256xbf16>, vector<24x256xbf16>, vector<24x256xbf16>, vector<24x256xbf16>, vector<24x256xbf16>, vector<1x256xbf16> -> vector<217x256xbf16>
    %c0_105 = arith.constant 0 : index
    %c2688 = arith.constant 2688 : index
    %345 = vector.load %arg2[%c0_105, %c2688] : memref<32x5632xbf16, #tpu.memory_space<vmem>>, vector<8x217xbf16>
    %cst_106 = arith.constant dense<0.000000e+00> : vector<8x256xf32>
    %346 = tpu.matmul %345, %344, %cst_106 {dimension_numbers = #tpu.dot_dimension_numbers<[1], [0], [0], [1], [0, 0, 1, 1], [], []>} : vector<8x217xbf16>, vector<217x256xbf16>, vector<8x256xf32> -> vector<8x256xf32>
    %cst_107 = arith.constant 0.000000e+00 : f32
    %347 = vector.broadcast %cst_107 : f32 to vector<8x256xf32>
    %348 = arith.maximumf %346, %347 : vector<8x256xf32>
    %349 = arith.truncf %348 : vector<8x256xf32> to vector<8x256xbf16>
    %cst_108 = arith.constant 1.000000e+00 : bf16
    %350 = vector.broadcast %cst_108 : bf16 to vector<1x256xbf16>
    %351 = tpu.concatenate %349, %350 in 0 : vector<8x256xbf16>, vector<1x256xbf16> -> vector<9x256xbf16>
    %c0_109 = arith.constant 0 : index
    %c2944 = arith.constant 2944 : index
    %352 = vector.load %arg2[%c0_109, %c2944] : memref<32x5632xbf16, #tpu.memory_space<vmem>>, vector<3x9xbf16>
    %cst_110 = arith.constant dense<0.000000e+00> : vector<3x256xf32>
    %353 = tpu.matmul %352, %351, %cst_110 {dimension_numbers = #tpu.dot_dimension_numbers<[1], [0], [0], [1], [0, 0, 1, 1], [], []>} : vector<3x9xbf16>, vector<9x256xbf16>, vector<3x256xf32> -> vector<3x256xf32>
    %354 = tpu.concatenate %208, %162, %241 in 0 : vector<32x4xbf16>, vector<32x4xbf16>, vector<32x4xbf16> -> vector<96x4xbf16>
    %c0_111 = arith.constant 0 : index
    %c512_112 = arith.constant 512 : index
    %355 = vector.load %arg3[%c0_111, %c512_112] : memref<2x768xbf16, #tpu.memory_space<vmem>>, vector<1x4xbf16>
    %c1_113 = arith.constant 1 : index
    %c512_114 = arith.constant 512 : index
    %356 = vector.load %arg3[%c1_113, %c512_114] : memref<2x768xbf16, #tpu.memory_space<vmem>>, vector<1x4xbf16>
    %cst_115 = arith.constant 0.000000e+00 : bf16
    %357 = vector.broadcast %cst_115 : bf16 to vector<96x3xbf16>
    %358 = tpu.concatenate %357, %354, %357 in 1 : vector<96x3xbf16>, vector<96x4xbf16>, vector<96x3xbf16> -> vector<96x10xbf16>
    %359 = vector.extract_strided_slice %358 {offsets = [0, 0], sizes = [96, 4], strides = [1, 1]} : vector<96x10xbf16> to vector<96x4xbf16>
    %360 = vector.broadcast %355 : vector<1x4xbf16> to vector<96x4xbf16>
    %361 = arith.mulf %359, %360 : vector<96x4xbf16>
    %362 = vector.extract_strided_slice %358 {offsets = [0, 1], sizes = [96, 4], strides = [1, 1]} : vector<96x10xbf16> to vector<96x4xbf16>
    %363 = vector.extract_strided_slice %358 {offsets = [0, 2], sizes = [96, 4], strides = [1, 1]} : vector<96x10xbf16> to vector<96x4xbf16>
    %364 = vector.broadcast %356 : vector<1x4xbf16> to vector<96x4xbf16>
    %365 = arith.mulf %363, %364 : vector<96x4xbf16>
    %366 = vector.extract_strided_slice %358 {offsets = [0, 2], sizes = [96, 4], strides = [1, 1]} : vector<96x10xbf16> to vector<96x4xbf16>
    %367 = vector.broadcast %355 : vector<1x4xbf16> to vector<96x4xbf16>
    %368 = arith.mulf %366, %367 : vector<96x4xbf16>
    %369 = vector.extract_strided_slice %358 {offsets = [0, 3], sizes = [96, 4], strides = [1, 1]} : vector<96x10xbf16> to vector<96x4xbf16>
    %370 = vector.extract_strided_slice %358 {offsets = [0, 4], sizes = [96, 4], strides = [1, 1]} : vector<96x10xbf16> to vector<96x4xbf16>
    %371 = vector.broadcast %356 : vector<1x4xbf16> to vector<96x4xbf16>
    %372 = arith.mulf %370, %371 : vector<96x4xbf16>
    %373 = vector.extract_strided_slice %358 {offsets = [0, 4], sizes = [96, 4], strides = [1, 1]} : vector<96x10xbf16> to vector<96x4xbf16>
    %374 = vector.broadcast %355 : vector<1x4xbf16> to vector<96x4xbf16>
    %375 = arith.mulf %373, %374 : vector<96x4xbf16>
    %376 = vector.extract_strided_slice %358 {offsets = [0, 5], sizes = [96, 4], strides = [1, 1]} : vector<96x10xbf16> to vector<96x4xbf16>
    %377 = vector.extract_strided_slice %358 {offsets = [0, 6], sizes = [96, 4], strides = [1, 1]} : vector<96x10xbf16> to vector<96x4xbf16>
    %378 = vector.broadcast %356 : vector<1x4xbf16> to vector<96x4xbf16>
    %379 = arith.mulf %377, %378 : vector<96x4xbf16>
    %cst_116 = arith.constant 1.000000e+00 : bf16
    %380 = vector.broadcast %cst_116 : bf16 to vector<1x4xbf16>
    %381 = tpu.concatenate %361, %362, %365, %368, %369, %372, %375, %376, %379, %380 in 0 : vector<96x4xbf16>, vector<96x4xbf16>, vector<96x4xbf16>, vector<96x4xbf16>, vector<96x4xbf16>, vector<96x4xbf16>, vector<96x4xbf16>, vector<96x4xbf16>, vector<96x4xbf16>, vector<1x4xbf16> -> vector<865x4xbf16>
    %c0_117 = arith.constant 0 : index
    %c3072 = arith.constant 3072 : index
    %382 = vector.load %arg2[%c0_117, %c3072] : memref<32x5632xbf16, #tpu.memory_space<vmem>>, vector<32x865xbf16>
    %cst_118 = arith.constant dense<0.000000e+00> : vector<32x4xf32>
    %383 = tpu.matmul %382, %381, %cst_118 {dimension_numbers = #tpu.dot_dimension_numbers<[1], [0], [0], [1], [0, 0, 1, 1], [], []>} : vector<32x865xbf16>, vector<865x4xbf16>, vector<32x4xf32> -> vector<32x4xf32>
    %cst_119 = arith.constant 0.000000e+00 : f32
    %384 = vector.broadcast %cst_119 : f32 to vector<32x4xf32>
    %385 = arith.maximumf %383, %384 : vector<32x4xf32>
    %386 = arith.truncf %385 : vector<32x4xf32> to vector<32x4xbf16>
    %c0_120 = arith.constant 0 : index
    %c0_121 = arith.constant 0 : index
    %387 = vector.load %arg9[%c0_120, %c0_121] : memref<4x16xbf16, #tpu.memory_space<vmem>>, vector<4x16xbf16>
    %cst_122 = arith.constant dense<0.000000e+00> : vector<32x16xf32>
    %388 = tpu.matmul %386, %387, %cst_122 {dimension_numbers = #tpu.dot_dimension_numbers<[1], [0], [0], [1], [0, 0, 1, 1], [], []>} : vector<32x4xbf16>, vector<4x16xbf16>, vector<32x16xf32> -> vector<32x16xf32>
    %389 = arith.truncf %388 : vector<32x16xf32> to vector<32x16xbf16>
    %390 = tpu.concatenate %389, %119, %277 in 0 : vector<32x16xbf16>, vector<16x16xbf16>, vector<16x16xbf16> -> vector<64x16xbf16>
    %c0_123 = arith.constant 0 : index
    %c384_124 = arith.constant 384 : index
    %391 = vector.load %arg3[%c0_123, %c384_124] : memref<2x768xbf16, #tpu.memory_space<vmem>>, vector<1x16xbf16>
    %c1_125 = arith.constant 1 : index
    %c384_126 = arith.constant 384 : index
    %392 = vector.load %arg3[%c1_125, %c384_126] : memref<2x768xbf16, #tpu.memory_space<vmem>>, vector<1x16xbf16>
    %cst_127 = arith.constant 0.000000e+00 : bf16
    %393 = vector.broadcast %cst_127 : bf16 to vector<64x5xbf16>
    %394 = tpu.concatenate %393, %390, %393 in 1 : vector<64x5xbf16>, vector<64x16xbf16>, vector<64x5xbf16> -> vector<64x26xbf16>
    %395 = vector.extract_strided_slice %394 {offsets = [0, 0], sizes = [64, 16], strides = [1, 1]} : vector<64x26xbf16> to vector<64x16xbf16>
    %396 = vector.broadcast %391 : vector<1x16xbf16> to vector<64x16xbf16>
    %397 = arith.mulf %395, %396 : vector<64x16xbf16>
    %398 = vector.extract_strided_slice %394 {offsets = [0, 1], sizes = [64, 16], strides = [1, 1]} : vector<64x26xbf16> to vector<64x16xbf16>
    %399 = vector.extract_strided_slice %394 {offsets = [0, 2], sizes = [64, 16], strides = [1, 1]} : vector<64x26xbf16> to vector<64x16xbf16>
    %400 = vector.broadcast %392 : vector<1x16xbf16> to vector<64x16xbf16>
    %401 = arith.mulf %399, %400 : vector<64x16xbf16>
    %402 = vector.extract_strided_slice %394 {offsets = [0, 4], sizes = [64, 16], strides = [1, 1]} : vector<64x26xbf16> to vector<64x16xbf16>
    %403 = vector.broadcast %391 : vector<1x16xbf16> to vector<64x16xbf16>
    %404 = arith.mulf %402, %403 : vector<64x16xbf16>
    %405 = vector.extract_strided_slice %394 {offsets = [0, 5], sizes = [64, 16], strides = [1, 1]} : vector<64x26xbf16> to vector<64x16xbf16>
    %406 = vector.extract_strided_slice %394 {offsets = [0, 6], sizes = [64, 16], strides = [1, 1]} : vector<64x26xbf16> to vector<64x16xbf16>
    %407 = vector.broadcast %392 : vector<1x16xbf16> to vector<64x16xbf16>
    %408 = arith.mulf %406, %407 : vector<64x16xbf16>
    %409 = vector.extract_strided_slice %394 {offsets = [0, 8], sizes = [64, 16], strides = [1, 1]} : vector<64x26xbf16> to vector<64x16xbf16>
    %410 = vector.broadcast %391 : vector<1x16xbf16> to vector<64x16xbf16>
    %411 = arith.mulf %409, %410 : vector<64x16xbf16>
    %412 = vector.extract_strided_slice %394 {offsets = [0, 9], sizes = [64, 16], strides = [1, 1]} : vector<64x26xbf16> to vector<64x16xbf16>
    %413 = vector.extract_strided_slice %394 {offsets = [0, 10], sizes = [64, 16], strides = [1, 1]} : vector<64x26xbf16> to vector<64x16xbf16>
    %414 = vector.broadcast %392 : vector<1x16xbf16> to vector<64x16xbf16>
    %415 = arith.mulf %413, %414 : vector<64x16xbf16>
    %cst_128 = arith.constant 1.000000e+00 : bf16
    %416 = vector.broadcast %cst_128 : bf16 to vector<1x16xbf16>
    %417 = tpu.concatenate %397, %398, %401, %404, %405, %408, %411, %412, %415, %416 in 0 : vector<64x16xbf16>, vector<64x16xbf16>, vector<64x16xbf16>, vector<64x16xbf16>, vector<64x16xbf16>, vector<64x16xbf16>, vector<64x16xbf16>, vector<64x16xbf16>, vector<64x16xbf16>, vector<1x16xbf16> -> vector<577x16xbf16>
    %c0_129 = arith.constant 0 : index
    %c3968 = arith.constant 3968 : index
    %418 = vector.load %arg2[%c0_129, %c3968] : memref<32x5632xbf16, #tpu.memory_space<vmem>>, vector<16x577xbf16>
    %cst_130 = arith.constant dense<0.000000e+00> : vector<16x16xf32>
    %419 = tpu.matmul %418, %417, %cst_130 {dimension_numbers = #tpu.dot_dimension_numbers<[1], [0], [0], [1], [0, 0, 1, 1], [], []>} : vector<16x577xbf16>, vector<577x16xbf16>, vector<16x16xf32> -> vector<16x16xf32>
    %cst_131 = arith.constant 0.000000e+00 : f32
    %420 = vector.broadcast %cst_131 : f32 to vector<16x16xf32>
    %421 = arith.maximumf %419, %420 : vector<16x16xf32>
    %422 = arith.truncf %421 : vector<16x16xf32> to vector<16x16xbf16>
    %c0_132 = arith.constant 0 : index
    %c0_133 = arith.constant 0 : index
    %423 = vector.load %arg10[%c0_132, %c0_133] : memref<16x64xbf16, #tpu.memory_space<vmem>>, vector<16x64xbf16>
    %cst_134 = arith.constant dense<0.000000e+00> : vector<16x64xf32>
    %424 = tpu.matmul %422, %423, %cst_134 {dimension_numbers = #tpu.dot_dimension_numbers<[1], [0], [0], [1], [0, 0, 1, 1], [], []>} : vector<16x16xbf16>, vector<16x64xbf16>, vector<16x64xf32> -> vector<16x64xf32>
    %425 = arith.truncf %424 : vector<16x64xf32> to vector<16x64xbf16>
    %426 = tpu.concatenate %425, %76, %313 in 0 : vector<16x64xbf16>, vector<16x64xbf16>, vector<16x64xbf16> -> vector<48x64xbf16>
    %c0_135 = arith.constant 0 : index
    %c256_136 = arith.constant 256 : index
    %427 = vector.load %arg3[%c0_135, %c256_136] : memref<2x768xbf16, #tpu.memory_space<vmem>>, vector<1x64xbf16>
    %c1_137 = arith.constant 1 : index
    %c256_138 = arith.constant 256 : index
    %428 = vector.load %arg3[%c1_137, %c256_138] : memref<2x768xbf16, #tpu.memory_space<vmem>>, vector<1x64xbf16>
    %cst_139 = arith.constant 0.000000e+00 : bf16
    %429 = vector.broadcast %cst_139 : bf16 to vector<48x9xbf16>
    %430 = tpu.concatenate %429, %426, %429 in 1 : vector<48x9xbf16>, vector<48x64xbf16>, vector<48x9xbf16> -> vector<48x82xbf16>
    %431 = vector.extract_strided_slice %430 {offsets = [0, 0], sizes = [48, 64], strides = [1, 1]} : vector<48x82xbf16> to vector<48x64xbf16>
    %432 = vector.broadcast %427 : vector<1x64xbf16> to vector<48x64xbf16>
    %433 = arith.mulf %431, %432 : vector<48x64xbf16>
    %434 = vector.extract_strided_slice %430 {offsets = [0, 1], sizes = [48, 64], strides = [1, 1]} : vector<48x82xbf16> to vector<48x64xbf16>
    %435 = vector.extract_strided_slice %430 {offsets = [0, 2], sizes = [48, 64], strides = [1, 1]} : vector<48x82xbf16> to vector<48x64xbf16>
    %436 = vector.broadcast %428 : vector<1x64xbf16> to vector<48x64xbf16>
    %437 = arith.mulf %435, %436 : vector<48x64xbf16>
    %438 = vector.extract_strided_slice %430 {offsets = [0, 8], sizes = [48, 64], strides = [1, 1]} : vector<48x82xbf16> to vector<48x64xbf16>
    %439 = vector.broadcast %427 : vector<1x64xbf16> to vector<48x64xbf16>
    %440 = arith.mulf %438, %439 : vector<48x64xbf16>
    %441 = vector.extract_strided_slice %430 {offsets = [0, 9], sizes = [48, 64], strides = [1, 1]} : vector<48x82xbf16> to vector<48x64xbf16>
    %442 = vector.extract_strided_slice %430 {offsets = [0, 10], sizes = [48, 64], strides = [1, 1]} : vector<48x82xbf16> to vector<48x64xbf16>
    %443 = vector.broadcast %428 : vector<1x64xbf16> to vector<48x64xbf16>
    %444 = arith.mulf %442, %443 : vector<48x64xbf16>
    %445 = vector.extract_strided_slice %430 {offsets = [0, 16], sizes = [48, 64], strides = [1, 1]} : vector<48x82xbf16> to vector<48x64xbf16>
    %446 = vector.broadcast %427 : vector<1x64xbf16> to vector<48x64xbf16>
    %447 = arith.mulf %445, %446 : vector<48x64xbf16>
    %448 = vector.extract_strided_slice %430 {offsets = [0, 17], sizes = [48, 64], strides = [1, 1]} : vector<48x82xbf16> to vector<48x64xbf16>
    %449 = vector.extract_strided_slice %430 {offsets = [0, 18], sizes = [48, 64], strides = [1, 1]} : vector<48x82xbf16> to vector<48x64xbf16>
    %450 = vector.broadcast %428 : vector<1x64xbf16> to vector<48x64xbf16>
    %451 = arith.mulf %449, %450 : vector<48x64xbf16>
    %cst_140 = arith.constant 1.000000e+00 : bf16
    %452 = vector.broadcast %cst_140 : bf16 to vector<1x64xbf16>
    %453 = tpu.concatenate %433, %434, %437, %440, %441, %444, %447, %448, %451, %452 in 0 : vector<48x64xbf16>, vector<48x64xbf16>, vector<48x64xbf16>, vector<48x64xbf16>, vector<48x64xbf16>, vector<48x64xbf16>, vector<48x64xbf16>, vector<48x64xbf16>, vector<48x64xbf16>, vector<1x64xbf16> -> vector<433x64xbf16>
    %c0_141 = arith.constant 0 : index
    %c4608 = arith.constant 4608 : index
    %454 = vector.load %arg2[%c0_141, %c4608] : memref<32x5632xbf16, #tpu.memory_space<vmem>>, vector<16x433xbf16>
    %cst_142 = arith.constant dense<0.000000e+00> : vector<16x64xf32>
    %455 = tpu.matmul %454, %453, %cst_142 {dimension_numbers = #tpu.dot_dimension_numbers<[1], [0], [0], [1], [0, 0, 1, 1], [], []>} : vector<16x433xbf16>, vector<433x64xbf16>, vector<16x64xf32> -> vector<16x64xf32>
    %cst_143 = arith.constant 0.000000e+00 : f32
    %456 = vector.broadcast %cst_143 : f32 to vector<16x64xf32>
    %457 = arith.maximumf %455, %456 : vector<16x64xf32>
    %458 = arith.truncf %457 : vector<16x64xf32> to vector<16x64xbf16>
    %c0_144 = arith.constant 0 : index
    %c0_145 = arith.constant 0 : index
    %459 = vector.load %arg11[%c0_144, %c0_145] : memref<64x256xbf16, #tpu.memory_space<vmem>>, vector<64x256xbf16>
    %cst_146 = arith.constant dense<0.000000e+00> : vector<16x256xf32>
    %460 = tpu.matmul %458, %459, %cst_146 {dimension_numbers = #tpu.dot_dimension_numbers<[1], [0], [0], [1], [0, 0, 1, 1], [], []>} : vector<16x64xbf16>, vector<64x256xbf16>, vector<16x256xf32> -> vector<16x256xf32>
    %461 = arith.truncf %460 : vector<16x256xf32> to vector<16x256xbf16>
    %462 = tpu.concatenate %461, %33, %349 in 0 : vector<16x256xbf16>, vector<8x256xbf16>, vector<8x256xbf16> -> vector<32x256xbf16>
    %c0_147 = arith.constant 0 : index
    %c0_148 = arith.constant 0 : index
    %463 = vector.load %arg3[%c0_147, %c0_148] : memref<2x768xbf16, #tpu.memory_space<vmem>>, vector<1x256xbf16>
    %c1_149 = arith.constant 1 : index
    %c0_150 = arith.constant 0 : index
    %464 = vector.load %arg3[%c1_149, %c0_150] : memref<2x768xbf16, #tpu.memory_space<vmem>>, vector<1x256xbf16>
    %cst_151 = arith.constant 0.000000e+00 : bf16
    %465 = vector.broadcast %cst_151 : bf16 to vector<32x17xbf16>
    %466 = tpu.concatenate %465, %462, %465 in 1 : vector<32x17xbf16>, vector<32x256xbf16>, vector<32x17xbf16> -> vector<32x290xbf16>
    %467 = vector.extract_strided_slice %466 {offsets = [0, 0], sizes = [32, 256], strides = [1, 1]} : vector<32x290xbf16> to vector<32x256xbf16>
    %468 = vector.broadcast %463 : vector<1x256xbf16> to vector<32x256xbf16>
    %469 = arith.mulf %467, %468 : vector<32x256xbf16>
    %470 = vector.extract_strided_slice %466 {offsets = [0, 1], sizes = [32, 256], strides = [1, 1]} : vector<32x290xbf16> to vector<32x256xbf16>
    %471 = vector.extract_strided_slice %466 {offsets = [0, 2], sizes = [32, 256], strides = [1, 1]} : vector<32x290xbf16> to vector<32x256xbf16>
    %472 = vector.broadcast %464 : vector<1x256xbf16> to vector<32x256xbf16>
    %473 = arith.mulf %471, %472 : vector<32x256xbf16>
    %474 = vector.extract_strided_slice %466 {offsets = [0, 16], sizes = [32, 256], strides = [1, 1]} : vector<32x290xbf16> to vector<32x256xbf16>
    %475 = vector.broadcast %463 : vector<1x256xbf16> to vector<32x256xbf16>
    %476 = arith.mulf %474, %475 : vector<32x256xbf16>
    %477 = vector.extract_strided_slice %466 {offsets = [0, 17], sizes = [32, 256], strides = [1, 1]} : vector<32x290xbf16> to vector<32x256xbf16>
    %478 = vector.extract_strided_slice %466 {offsets = [0, 18], sizes = [32, 256], strides = [1, 1]} : vector<32x290xbf16> to vector<32x256xbf16>
    %479 = vector.broadcast %464 : vector<1x256xbf16> to vector<32x256xbf16>
    %480 = arith.mulf %478, %479 : vector<32x256xbf16>
    %481 = vector.extract_strided_slice %466 {offsets = [0, 32], sizes = [32, 256], strides = [1, 1]} : vector<32x290xbf16> to vector<32x256xbf16>
    %482 = vector.broadcast %463 : vector<1x256xbf16> to vector<32x256xbf16>
    %483 = arith.mulf %481, %482 : vector<32x256xbf16>
    %484 = vector.extract_strided_slice %466 {offsets = [0, 33], sizes = [32, 256], strides = [1, 1]} : vector<32x290xbf16> to vector<32x256xbf16>
    %485 = vector.extract_strided_slice %466 {offsets = [0, 34], sizes = [32, 256], strides = [1, 1]} : vector<32x290xbf16> to vector<32x256xbf16>
    %486 = vector.broadcast %464 : vector<1x256xbf16> to vector<32x256xbf16>
    %487 = arith.mulf %485, %486 : vector<32x256xbf16>
    %cst_152 = arith.constant 1.000000e+00 : bf16
    %488 = vector.broadcast %cst_152 : bf16 to vector<1x256xbf16>
    %489 = tpu.concatenate %469, %470, %473, %476, %477, %480, %483, %484, %487, %488 in 0 : vector<32x256xbf16>, vector<32x256xbf16>, vector<32x256xbf16>, vector<32x256xbf16>, vector<32x256xbf16>, vector<32x256xbf16>, vector<32x256xbf16>, vector<32x256xbf16>, vector<32x256xbf16>, vector<1x256xbf16> -> vector<289x256xbf16>
    %c0_153 = arith.constant 0 : index
    %c5120 = arith.constant 5120 : index
    %490 = vector.load %arg2[%c0_153, %c5120] : memref<32x5632xbf16, #tpu.memory_space<vmem>>, vector<8x289xbf16>
    %cst_154 = arith.constant dense<0.000000e+00> : vector<8x256xf32>
    %491 = tpu.matmul %490, %489, %cst_154 {dimension_numbers = #tpu.dot_dimension_numbers<[1], [0], [0], [1], [0, 0, 1, 1], [], []>} : vector<8x289xbf16>, vector<289x256xbf16>, vector<8x256xf32> -> vector<8x256xf32>
    %cst_155 = arith.constant 0.000000e+00 : f32
    %492 = vector.broadcast %cst_155 : f32 to vector<8x256xf32>
    %493 = arith.maximumf %491, %492 : vector<8x256xf32>
    %494 = arith.truncf %493 : vector<8x256xf32> to vector<8x256xbf16>
    %cst_156 = arith.constant 1.000000e+00 : bf16
    %495 = vector.broadcast %cst_156 : bf16 to vector<1x256xbf16>
    %496 = tpu.concatenate %494, %495 in 0 : vector<8x256xbf16>, vector<1x256xbf16> -> vector<9x256xbf16>
    %c0_157 = arith.constant 0 : index
    %c5504 = arith.constant 5504 : index
    %497 = vector.load %arg2[%c0_157, %c5504] : memref<32x5632xbf16, #tpu.memory_space<vmem>>, vector<1x9xbf16>
    %cst_158 = arith.constant dense<0.000000e+00> : vector<1x256xf32>
    %498 = tpu.matmul %497, %496, %cst_158 {dimension_numbers = #tpu.dot_dimension_numbers<[1], [0], [0], [1], [0, 0, 1, 1], [], []>} : vector<1x9xbf16>, vector<9x256xbf16>, vector<1x256xf32> -> vector<1x256xf32>
    %499 = math.tanh %498 : vector<1x256xf32>
    %500 = tpu.concatenate %353, %499 in 0 : vector<3x256xf32>, vector<1x256xf32> -> vector<4x256xf32>
    %c0_159 = arith.constant 0 : index
    %c0_160 = arith.constant 0 : index
    %c0_161 = arith.constant 0 : index
    %501 = vector.load %arg12[%c0_159, %c0_160, %c0_161] : memref<1x4x256xf32, #tpu.memory_space<vmem>>, vector<1x4x256xf32>
    %502 = vector.shape_cast %501 : vector<1x4x256xf32> to vector<4x256xf32>
    %503 = vector.shape_cast %500 : vector<4x256xf32> to vector<1x4x256xf32>
    tpu.vector_store %arg12[%c0_159, %c0_160, %c0_161], %503 {strides = array<i32>} : memref<1x4x256xf32, #tpu.memory_space<vmem>>, vector<1x4x256xf32>,
    return
  }
  func.func @transform_0(%arg0: i32) -> (i32, i32, i32) {
    %c0_i32 = arith.constant 0 : i32
    %c0_i32_0 = arith.constant 0 : i32
    %c0_i32_1 = arith.constant 0 : i32
    return %arg0, %c0_i32, %c0_i32_0 : i32, i32, i32
  }
  func.func @transform_1(%arg0: i32) -> (i32, i32) {
    %c0_i32 = arith.constant 0 : i32
    %c0_i32_0 = arith.constant 0 : i32
    %c0_i32_1 = arith.constant 0 : i32
    return %c0_i32, %c0_i32_0 : i32, i32
  }
  func.func @transform_2(%arg0: i32) -> (i32, i32) {
    %c0_i32 = arith.constant 0 : i32
    %c0_i32_0 = arith.constant 0 : i32
    %c0_i32_1 = arith.constant 0 : i32
    return %c0_i32, %c0_i32_0 : i32, i32
  }
  func.func @transform_3(%arg0: i32) -> (i32, i32) {
    %c0_i32 = arith.constant 0 : i32
    %c0_i32_0 = arith.constant 0 : i32
    %c0_i32_1 = arith.constant 0 : i32
    return %c0_i32, %c0_i32_0 : i32, i32
  }
  func.func @transform_4(%arg0: i32) -> (i32, i32) {
    %c0_i32 = arith.constant 0 : i32
    %c0_i32_0 = arith.constant 0 : i32
    %c0_i32_1 = arith.constant 0 : i32
    return %c0_i32, %c0_i32_0 : i32, i32
  }
  func.func @transform_5(%arg0: i32) -> (i32, i32) {
    %c0_i32 = arith.constant 0 : i32
    %c0_i32_0 = arith.constant 0 : i32
    %c0_i32_1 = arith.constant 0 : i32
    return %c0_i32, %c0_i32_0 : i32, i32
  }
  func.func @transform_6(%arg0: i32) -> (i32, i32) {
    %c0_i32 = arith.constant 0 : i32
    %c0_i32_0 = arith.constant 0 : i32
    %c0_i32_1 = arith.constant 0 : i32
    return %c0_i32, %c0_i32_0 : i32, i32
  }
  func.func @transform_7(%arg0: i32) -> (i32, i32) {
    %c0_i32 = arith.constant 0 : i32
    %c0_i32_0 = arith.constant 0 : i32
    %c0_i32_1 = arith.constant 0 : i32
    return %c0_i32, %c0_i32_0 : i32, i32
  }
  func.func @transform_8(%arg0: i32) -> (i32, i32) {
    %c0_i32 = arith.constant 0 : i32
    %c0_i32_0 = arith.constant 0 : i32
    %c0_i32_1 = arith.constant 0 : i32
    return %c0_i32, %c0_i32_0 : i32, i32
  }
  func.func @transform_9(%arg0: i32) -> (i32, i32) {
    %c0_i32 = arith.constant 0 : i32
    %c0_i32_0 = arith.constant 0 : i32
    %c0_i32_1 = arith.constant 0 : i32
    return %c0_i32, %c0_i32_0 : i32, i32
  }
  func.func @transform_10(%arg0: i32) -> (i32, i32) {
    %c0_i32 = arith.constant 0 : i32
    %c0_i32_0 = arith.constant 0 : i32
    %c0_i32_1 = arith.constant 0 : i32
    return %c0_i32, %c0_i32_0 : i32, i32
  }
  func.func @transform_11(%arg0: i32) -> (i32, i32, i32) {
    %c0_i32 = arith.constant 0 : i32
    %c0_i32_0 = arith.constant 0 : i32
    %c0_i32_1 = arith.constant 0 : i32
    return %arg0, %c0_i32, %c0_i32_0 : i32, i32, i32
  }
}

</mosaic_0001>

<llo_original>
// kernel: pgan_forward.1
$region0: #{pgan_forward.1}
  #allocation0 [shape = 'u32[]', space=smem, size = 0x4, offset = 0x4, fixed_abs, tag = 'smem constant byte address 0x4 - core index']
  #allocation1 [shape = 'u32[144,128]{1,0:T(1,128)}', space=vmem, size = 0x12000, scoped, tag = 'internal scratch']
  %s0 = inlined_call_operand.vmem [shape: bf16[2,4,256], index: 0, kind: input, shape index: {}]
  %s1 = inlined_call_operand.vmem [shape: bf16[32,5632], index: 1, kind: input, shape index: {}]
  %s2 = inlined_call_operand.vmem [shape: bf16[2,768], index: 2, kind: input, shape index: {}]
  %s3 = inlined_call_operand.vmem [shape: bf16[256,64], index: 3, kind: input, shape index: {}]
  %s4 = inlined_call_operand.vmem [shape: bf16[64,16], index: 4, kind: input, shape index: {}]
  %s5 = inlined_call_operand.vmem [shape: bf16[16,4], index: 5, kind: input, shape index: {}]
  %s6 = inlined_call_operand.vmem [shape: bf16[4,1], index: 6, kind: input, shape index: {}]
  %s7 = inlined_call_operand.vmem [shape: bf16[1,4], index: 7, kind: input, shape index: {}]
  %s8 = inlined_call_operand.vmem [shape: bf16[4,16], index: 8, kind: input, shape index: {}]
  %s9 = inlined_call_operand.vmem [shape: bf16[16,64], index: 9, kind: input, shape index: {}]
  %s10 = inlined_call_operand.vmem [shape: bf16[64,256], index: 10, kind: input, shape index: {}]
  %s11 = inlined_call_operand.vmem [shape: f32[2,4,256], index: 11, kind: output, shape index: {}]
  %s12 = sld [smem:[#allocation0]]
  $region77: #{pgan_forward.1} parent=0
    _
  %s14 = ssub.s32 1, %s12
  %s15 = scalar_select 0, %s14, %s12
  loop: start=0, step=1, limit=4
  $region2: #{pgan_forward.1} parent=0 // loop_pre_header
    _
  $region3: #{pgan_forward.1} parent=0 // loop_header
    %s17 = sphi 0, %s21
    %p18 = scmp.ge.s32.totalorder %s17, 4
    %s27 = sphi 0, %s29
    %s30 = sphi 0, %s27
    %s31 = sphi 0, %s30
    %s47 = sphi 0, %s31
    %s51 = sphi 0, %s51
    %s53 = sphi 0, %s51
    %s54 = sphi 0, %s53
    %s68 = sphi 0, %s54
    %s72 = sphi 0, %s72
    %s74 = sphi 0, %s72
    %s75 = sphi 0, %s74
    %s89 = sphi 0, %s75
    %s93 = sphi 0, %s93
    %s95 = sphi 0, %s93
    %s96 = sphi 0, %s95
    %s110 = sphi 0, %s96
    %s114 = sphi 0, %s114
    %s116 = sphi 0, %s114
    %s117 = sphi 0, %s116
    %s131 = sphi 0, %s117
    %s135 = sphi 0, %s135
    %s137 = sphi 0, %s135
    %s138 = sphi 0, %s137
    %s152 = sphi 0, %s138
    %s156 = sphi 0, %s156
    %s158 = sphi 0, %s156
    %s159 = sphi 0, %s158
    %s173 = sphi 0, %s159
    %s177 = sphi 0, %s177
    %s179 = sphi 0, %s177
    %s180 = sphi 0, %s179
    %s194 = sphi 0, %s180
    %s198 = sphi 0, %s198
    %s200 = sphi 0, %s198
    %s201 = sphi 0, %s200
    %s215 = sphi 0, %s201
    %s219 = sphi 0, %s219
    %s221 = sphi 0, %s219
    %s222 = sphi 0, %s221
    %s236 = sphi 0, %s222
    %s240 = sphi 0, %s240
    %s242 = sphi 0, %s240
    %s243 = sphi 0, %s242
    %s257 = sphi 0, %s243
    %s263 = sphi 0, %s265
    %s266 = sphi 0, %s263
    %s267 = sphi 0, %s266
    %s283 = sphi 0, %s267
  $region4: #{pgan_forward.1} parent=0 // loop_header_branch
    %20 = sbr.rel (%p18) target = $region8
  $region5: #{pgan_forward.1} parent=0 // loop_body
    %s22 = ssub.s32 %s17, 1
    %s23 = ssub.s32 %s17, 2
    %s24 = sadd.s32 %s17, 1
    %s25 = ssub.s32 %s17, %s24
    %p26 = scmp.eq.s32.totalorder %s25, 0
    %s28 = sadd.s32 %s27, 1
    %s29 = scalar_select %p26, %s27, %s28
    %p32 = pneg %p26
    %p33 = scmp.eq.s32.totalorder %s17, 1
    %p34 = por %p32, %p33
    %p35 = scmp.ne.s32.totalorder %s27, %s30
    %p36 = scmp.eq.s32.totalorder %s17, 0
    %p37 = por %p35, %p36
    %p38 = scmp.ne.s32.totalorder %s27, %s30
    %p39 = scmp.eq.s32.totalorder %s22, 1
    %p40 = por %p38, %p39
    %p41 = scmp.ne.s32.totalorder %s30, %s31
    %p42 = scmp.eq.s32.totalorder %s22, 0
    %p43 = por %p41, %p42
    %p44 = scmp.ne.s32.totalorder %s30, %s31
    %p45 = scmp.eq.s32.totalorder %s23, 1
    %p46 = por %p44, %p45
    %p48 = scmp.ne.s32.totalorder %s31, %s47
    %p49 = scmp.eq.s32.totalorder %s23, 0
    %p50 = por %p48, %p49
    %s52 = sadd.s32 %s51, 1
    %p55 = scmp.eq.s32.totalorder %s17, 1
    %p56 = scmp.ne.s32.totalorder %s51, %s53
    %p57 = scmp.eq.s32.totalorder %s17, 0
    %p58 = por %p56, %p57
    %p59 = scmp.ne.s32.totalorder %s51, %s53
    %p60 = scmp.eq.s32.totalorder %s22, 1
    %p61 = por %p59, %p60
    %p62 = scmp.ne.s32.totalorder %s53, %s54
    %p63 = scmp.eq.s32.totalorder %s22, 0
    %p64 = por %p62, %p63
    %p65 = scmp.ne.s32.totalorder %s53, %s54
    %p66 = scmp.eq.s32.totalorder %s23, 1
    %p67 = por %p65, %p66
    %p69 = scmp.ne.s32.totalorder %s54, %s68
    %p70 = scmp.eq.s32.totalorder %s23, 0
    %p71 = por %p69, %p70
    %s73 = sadd.s32 %s72, 1
    %p76 = scmp.eq.s32.totalorder %s17, 1
    %p77 = scmp.ne.s32.totalorder %s72, %s74
    %p78 = scmp.eq.s32.totalorder %s17, 0
    %p79 = por %p77, %p78
    %p80 = scmp.ne.s32.totalorder %s72, %s74
    %p81 = scmp.eq.s32.totalorder %s22, 1
    %p82 = por %p80, %p81
    %p83 = scmp.ne.s32.totalorder %s74, %s75
    %p84 = scmp.eq.s32.totalorder %s22, 0
    %p85 = por %p83, %p84
    %p86 = scmp.ne.s32.totalorder %s74, %s75
    %p87 = scmp.eq.s32.totalorder %s23, 1
    %p88 = por %p86, %p87
    %p90 = scmp.ne.s32.totalorder %s75, %s89
    %p91 = scmp.eq.s32.totalorder %s23, 0
    %p92 = por %p90, %p91
    %s94 = sadd.s32 %s93, 1
    %p97 = scmp.eq.s32.totalorder %s17, 1
    %p98 = scmp.ne.s32.totalorder %s93, %s95
    %p99 = scmp.eq.s32.totalorder %s17, 0
    %p100 = por %p98, %p99
    %p101 = scmp.ne.s32.totalorder %s93, %s95
    %p102 = scmp.eq.s32.totalorder %s22, 1
    %p103 = por %p101, %p102
    %p104 = scmp.ne.s32.totalorder %s95, %s96
    %p105 = scmp.eq.s32.totalorder %s22, 0
    %p106 = por %p104, %p105
    %p107 = scmp.ne.s32.totalorder %s95, %s96
    %p108 = scmp.eq.s32.totalorder %s23, 1
    %p109 = por %p107, %p108
    %p111 = scmp.ne.s32.totalorder %s96, %s110
    %p112 = scmp.eq.s32.totalorder %s23, 0
    %p113 = por %p111, %p112
    %s115 = sadd.s32 %s114, 1
    %p118 = scmp.eq.s32.totalorder %s17, 1
    %p119 = scmp.ne.s32.totalorder %s114, %s116
    %p120 = scmp.eq.s32.totalorder %s17, 0
    %p121 = por %p119, %p120
    %p122 = scmp.ne.s32.totalorder %s114, %s116
    %p123 = scmp.eq.s32.totalorder %s22, 1
    %p124 = por %p122, %p123
    %p125 = scmp.ne.s32.totalorder %s116, %s117
    %p126 = scmp.eq.s32.totalorder %s22, 0
    %p127 = por %p125, %p126
    %p128 = scmp.ne.s32.totalorder %s116, %s117
    %p129 = scmp.eq.s32.totalorder %s23, 1
    %p130 = por %p128, %p129
    %p132 = scmp.ne.s32.totalorder %s117, %s131
    %p133 = scmp.eq.s32.totalorder %s23, 0
    %p134 = por %p132, %p133
    %s136 = sadd.s32 %s135, 1
    %p139 = scmp.eq.s32.totalorder %s17, 1
    %p140 = scmp.ne.s32.totalorder %s135, %s137
    %p141 = scmp.eq.s32.totalorder %s17, 0
    %p142 = por %p140, %p141
    %p143 = scmp.ne.s32.totalorder %s135, %s137
    %p144 = scmp.eq.s32.totalorder %s22, 1
    %p145 = por %p143, %p144
    %p146 = scmp.ne.s32.totalorder %s137, %s138
    %p147 = scmp.eq.s32.totalorder %s22, 0
    %p148 = por %p146, %p147
    %p149 = scmp.ne.s32.totalorder %s137, %s138
    %p150 = scmp.eq.s32.totalorder %s23, 1
    %p151 = por %p149, %p150
    %p153 = scmp.ne.s32.totalorder %s138, %s152
    %p154 = scmp.eq.s32.totalorder %s23, 0
    %p155 = por %p153, %p154
    %s157 = sadd.s32 %s156, 1
    %p160 = scmp.eq.s32.totalorder %s17, 1
    %p161 = scmp.ne.s32.totalorder %s156, %s158
    %p162 = scmp.eq.s32.totalorder %s17, 0
    %p163 = por %p161, %p162
    %p164 = scmp.ne.s32.totalorder %s156, %s158
    %p165 = scmp.eq.s32.totalorder %s22, 1
    %p166 = por %p164, %p165
    %p167 = scmp.ne.s32.totalorder %s158, %s159
    %p168 = scmp.eq.s32.totalorder %s22, 0
    %p169 = por %p167, %p168
    %p170 = scmp.ne.s32.totalorder %s158, %s159
    %p171 = scmp.eq.s32.totalorder %s23, 1
    %p172 = por %p170, %p171
    %p174 = scmp.ne.s32.totalorder %s159, %s173
    %p175 = scmp.eq.s32.totalorder %s23, 0
    %p176 = por %p174, %p175
    %s178 = sadd.s32 %s177, 1
    %p181 = scmp.eq.s32.totalorder %s17, 1
    %p182 = scmp.ne.s32.totalorder %s177, %s179
    %p183 = scmp.eq.s32.totalorder %s17, 0
    %p184 = por %p182, %p183
    %p185 = scmp.ne.s32.totalorder %s177, %s179
    %p186 = scmp.eq.s32.totalorder %s22, 1
    %p187 = por %p185, %p186
    %p188 = scmp.ne.s32.totalorder %s179, %s180
    %p189 = scmp.eq.s32.totalorder %s22, 0
    %p190 = por %p188, %p189
    %p191 = scmp.ne.s32.totalorder %s179, %s180
    %p192 = scmp.eq.s32.totalorder %s23, 1
    %p193 = por %p191, %p192
    %p195 = scmp.ne.s32.totalorder %s180, %s194
    %p196 = scmp.eq.s32.totalorder %s23, 0
    %p197 = por %p195, %p196
    %s199 = sadd.s32 %s198, 1
    %p202 = scmp.eq.s32.totalorder %s17, 1
    %p203 = scmp.ne.s32.totalorder %s198, %s200
    %p204 = scmp.eq.s32.totalorder %s17, 0
    %p205 = por %p203, %p204
    %p206 = scmp.ne.s32.totalorder %s198, %s200
    %p207 = scmp.eq.s32.totalorder %s22, 1
    %p208 = por %p206, %p207
    %p209 = scmp.ne.s32.totalorder %s200, %s201
    %p210 = scmp.eq.s32.totalorder %s22, 0
    %p211 = por %p209, %p210
    %p212 = scmp.ne.s32.totalorder %s200, %s201
    %p213 = scmp.eq.s32.totalorder %s23, 1
    %p214 = por %p212, %p213
    %p216 = scmp.ne.s32.totalorder %s201, %s215
    %p217 = scmp.eq.s32.totalorder %s23, 0
    %p218 = por %p216, %p217
    %s220 = sadd.s32 %s219, 1
    %p223 = scmp.eq.s32.totalorder %s17, 1
    %p224 = scmp.ne.s32.totalorder %s219, %s221
    %p225 = scmp.eq.s32.totalorder %s17, 0
    %p226 = por %p224, %p225
    %p227 = scmp.ne.s32.totalorder %s219, %s221
    %p228 = scmp.eq.s32.totalorder %s22, 1
    %p229 = por %p227, %p228
    %p230 = scmp.ne.s32.totalorder %s221, %s222
    %p231 = scmp.eq.s32.totalorder %s22, 0
    %p232 = por %p230, %p231
    %p233 = scmp.ne.s32.totalorder %s221, %s222
    %p234 = scmp.eq.s32.totalorder %s23, 1
    %p235 = por %p233, %p234
    %p237 = scmp.ne.s32.totalorder %s222, %s236
    %p238 = scmp.eq.s32.totalorder %s23, 0
    %p239 = por %p237, %p238
    %s241 = sadd.s32 %s240, 1
    %p244 = scmp.eq.s32.totalorder %s17, 1
    %p245 = scmp.ne.s32.totalorder %s240, %s242
    %p246 = scmp.eq.s32.totalorder %s17, 0
    %p247 = por %p245, %p246
    %p248 = scmp.ne.s32.totalorder %s240, %s242
    %p249 = scmp.eq.s32.totalorder %s22, 1
    %p250 = por %p248, %p249
    %p251 = scmp.ne.s32.totalorder %s242, %s243
    %p252 = scmp.eq.s32.totalorder %s22, 0
    %p253 = por %p251, %p252
    %p254 = scmp.ne.s32.totalorder %s242, %s243
    %p255 = scmp.eq.s32.totalorder %s23, 1
    %p256 = por %p254, %p255
    %p258 = scmp.ne.s32.totalorder %s243, %s257
    %p259 = scmp.eq.s32.totalorder %s23, 0
    %p260 = por %p258, %p259
    %s261 = ssub.s32 %s17, %s24
    %p262 = scmp.eq.s32.totalorder %s261, 0
    %s264 = sadd.s32 %s263, 1
    %s265 = scalar_select %p262, %s263, %s264
    %p268 = pneg %p262
    %p269 = scmp.eq.s32.totalorder %s17, 1
    %p270 = por %p268, %p269
    %p271 = scmp.ne.s32.totalorder %s263, %s266
    %p272 = scmp.eq.s32.totalorder %s17, 0
    %p273 = por %p271, %p272
    %p274 = scmp.ne.s32.totalorder %s263, %s266
    %p275 = scmp.eq.s32.totalorder %s22, 1
    %p276 = por %p274, %p275
    %p277 = scmp.ne.s32.totalorder %s266, %s267
    %p278 = scmp.eq.s32.totalorder %s22, 0
    %p279 = por %p277, %p278
    %p280 = scmp.ne.s32.totalorder %s266, %s267
    %p281 = scmp.eq.s32.totalorder %s23, 1
    %p282 = por %p280, %p281
    %p284 = scmp.ne.s32.totalorder %s267, %s283
    %p285 = scmp.eq.s32.totalorder %s23, 0
    %p286 = por %p284, %p285
    %p287 = scmp.le.s32.totalorder 1, %s17
    %p288 = scmp.lt.s32.totalorder %s17, 3
    %p289 = pnand %p287, %p288
    %p290 = pneg %p289
    // Predicated region
    $region9: #{pgan_forward.1} parent=5 // pred_check
      _
    $region10: #{pgan_forward.1} parent=5 // pred_check_branch
      %292 = sbr.rel (%p289) target = $region12
    $region11: #{pgan_forward.1} parent=5 // pred_region
      %s293 = ssub.s32 %s17, 1
      // Predicated region
      $region13: #{pgan_forward.1} parent=11 // pred_check
        %p294 = pneg %p64
      $region14: #{pgan_forward.1} parent=11 // pred_check_branch
        %296 = sbr.rel (%p294) target = $region16
      $region15: #{pgan_forward.1} parent=11 // pred_region
        _
      $region16: #{pgan_forward.1} parent=11 // pred_fallthru
        _
      // Predicated region
      $region17: #{pgan_forward.1} parent=11 // pred_check
        %p297 = pneg %p85
      $region18: #{pgan_forward.1} parent=11 // pred_check_branch
        %299 = sbr.rel (%p297) target = $region20
      $region19: #{pgan_forward.1} parent=11 // pred_region
        _
      $region20: #{pgan_forward.1} parent=11 // pred_fallthru
        _
      // Predicated region
      $region21: #{pgan_forward.1} parent=11 // pred_check
        %p300 = pneg %p106
      $region22: #{pgan_forward.1} parent=11 // pred_check_branch
        %302 = sbr.rel (%p300) target = $region24
      $region23: #{pgan_forward.1} parent=11 // pred_region
        _
      $region24: #{pgan_forward.1} parent=11 // pred_fallthru
        _
      // Predicated region
      $region25: #{pgan_forward.1} parent=11 // pred_check
        %p303 = pneg %p127
      $region26: #{pgan_forward.1} parent=11 // pred_check_branch
        %305 = sbr.rel (%p303) target = $region28
      $region27: #{pgan_forward.1} parent=11 // pred_region
        _
      $region28: #{pgan_forward.1} parent=11 // pred_fallthru
        _
      // Predicated region
      $region29: #{pgan_forward.1} parent=11 // pred_check
        %p306 = pneg %p148
      $region30: #{pgan_forward.1} parent=11 // pred_check_branch
        %308 = sbr.rel (%p306) target = $region32
      $region31: #{pgan_forward.1} parent=11 // pred_region
        _
      $region32: #{pgan_forward.1} parent=11 // pred_fallthru
        _
      // Predicated region
      $region33: #{pgan_forward.1} parent=11 // pred_check
        %p309 = pneg %p169
      $region34: #{pgan_forward.1} parent=11 // pred_check_branch
        %311 = sbr.rel (%p309) target = $region36
      $region35: #{pgan_forward.1} parent=11 // pred_region
        _
      $region36: #{pgan_forward.1} parent=11 // pred_fallthru
        _
      // Predicated region
      $region37: #{pgan_forward.1} parent=11 // pred_check
        %p312 = pneg %p190
      $region38: #{pgan_forward.1} parent=11 // pred_check_branch
        %314 = sbr.rel (%p312) target = $region40
      $region39: #{pgan_forward.1} parent=11 // pred_region
        _
      $region40: #{pgan_forward.1} parent=11 // pred_fallthru
        _
      // Predicated region
      $region41: #{pgan_forward.1} parent=11 // pred_check
        %p315 = pneg %p211
      $region42: #{pgan_forward.1} parent=11 // pred_check_branch
        %317 = sbr.rel (%p315) target = $region44
      $region43: #{pgan_forward.1} parent=11 // pred_region
        _
      $region44: #{pgan_forward.1} parent=11 // pred_fallthru
        _
      // Predicated region
      $region45: #{pgan_forward.1} parent=11 // pred_check
        %p318 = pneg %p232
      $region46: #{pgan_forward.1} parent=11 // pred_check_branch
        %320 = sbr.rel (%p318) target = $region48
      $region47: #{pgan_forward.1} parent=11 // pred_region
        _
      $region48: #{pgan_forward.1} parent=11 // pred_fallthru
        _
      // Predicated region
      $region49: #{pgan_forward.1} parent=11 // pred_check
        %p321 = pneg %p253
      $region50: #{pgan_forward.1} parent=11 // pred_check_branch
        %323 = sbr.rel (%p321) target = $region52
      $region51: #{pgan_forward.1} parent=11 // pred_region
        _
      $region52: #{pgan_forward.1} parent=11 // pred_fallthru
        _
    $region12: #{pgan_forward.1} parent=5 // pred_fallthru
      _
    %p324 = scmp.lt.s32.totalorder %s17, 2
    // Predicated region
    $region53: #{pgan_forward.1} parent=5 // pred_check
      %p325 = pneg %p324
    $region54: #{pgan_forward.1} parent=5 // pred_check_branch
      %327 = sbr.rel (%p325) target = $region56
    $region55: #{pgan_forward.1} parent=5 // pred_region
      // Predicated region
      $region57: #{pgan_forward.1} parent=55 // pred_check
        %p328 = pneg %p37
      $region58: #{pgan_forward.1} parent=55 // pred_check_branch
        %330 = sbr.rel (%p328) target = $region60
      $region59: #{pgan_forward.1} parent=55 // pred_region
        %p331 = scmp.lt.s32.totalorder %s17, 1
        %s332 = scalar_select %p331, %s17, 1
        %s333 = smul.addr %s332, 2
        %s334 = smul.addr %s333, 2
        %s335 = scalar_lea.vmem %s0, %s334
      $region60: #{pgan_forward.1} parent=55 // pred_fallthru
        _
    $region56: #{pgan_forward.1} parent=5 // pred_fallthru
      _
    %p336 = scmp.le.s32.totalorder 1, %s17
    %p337 = scmp.lt.s32.totalorder %s17, 3
    %p338 = pnand %p336, %p337
    %p339 = pneg %p338
    // Predicated region
    $region61: #{pgan_forward.1} parent=5 // pred_check
      _
    $region62: #{pgan_forward.1} parent=5 // pred_check_branch
      %341 = sbr.rel (%p338) target = $region64
    $region63: #{pgan_forward.1} parent=5 // pred_region
      %s342 = ssub.s32 %s17, 1
      %p343 = scmp.lt.s32.totalorder %s22, 1
      %s344 = scalar_select %p343, %s22, 1
      %s345 = smul.addr %s344, 2
      %s346 = smul.addr %s345, 2
      %s347 = scalar_lea.vmem %s0, %s346
      %p348 = pneg %p43
      %p349 = pneg %p40
      %p350 = pneg %p64
      %p351 = pneg %p61
      %p352 = pneg %p85
      %p353 = pneg %p82
      %p354 = pneg %p106
      %p355 = pneg %p103
      %p356 = pneg %p127
      %p357 = pneg %p124
      %p358 = pneg %p148
      %p359 = pneg %p145
      %p360 = pneg %p169
      %p361 = pneg %p166
      %p362 = pneg %p190
      %p363 = pneg %p187
      %p364 = pneg %p211
      %p365 = pneg %p208
      %p366 = pneg %p232
      %p367 = pneg %p229
      %p368 = pneg %p253
      %p369 = pneg %p250
      %p370 = pneg %p279
      %p371 = pneg %p276
      %p372 = scmp.lt.s32.totalorder %s22, 1
      %s373 = scalar_select %p372, %s22, 1
      %s374 = smul.addr %s373, 2
      %s375 = smul.addr %s374, 4
      %s376 = scalar_lea.vmem %s11, %s375
      %p377 = scmp.lt.s32.totalorder %s22, 1
      %s378 = scalar_select %p377, %s22, 1
      %s379 = smul.addr %s378, 2
      %s380 = smul.addr %s379, 2
      %s381 = scalar_lea.vmem %s0, %s380
      %p382 = scmp.lt.s32.totalorder %s22, 1
      %s383 = scalar_select %p382, %s22, 1
      %s384 = smul.addr %s383, 2
      %s385 = smul.addr %s384, 4
      %s386 = scalar_lea.vmem %s11, %s385
      %v389 = vld [vmem:[%s381] sm:$0xf]
      %v390 = vld [vmem:[%s2] sm:$0x3]
      %v393 = vunpack.c.l.s4 1983009808
      %v394 = vunpack.c.0.s8 %v393
      %v395 = vlaneseq
      %v396 = vshrl.u32 %v395, 7
      %v397 = vsub.s32 %v394, %v396
      %v398 = vrot.slane %v389, %v397
      %v399 = vcombine.high %v398, %v398
      %400 = vrot.lane.b32.xlu0 %v398, 17
      %v401 = vpop.permute.xlu0 %400
      %402 = vrot.lane.b32.xlu0 %v399, 17
      %v403 = vpop.permute.xlu0 %402
      %vm404 = vcmask 138240
      %v405 = vsel %vm404, %v401, %v403
      %vm407 = vcmask 138240
      %v410 = vsel %vm407, 0, %v401
      %v413 = vsel %vm407, %v403, 0
      %v417 = vunpack.c.l.s4 1966171168
      %v418 = vunpack.c.0.s8 %v417
      %v419 = vlaneseq
      %v420 = vshrl.u32 %v419, 7
      %v421 = vsub.s32 %v418, %v420
      %v422 = vrot.slane %v390, %v421
      %v423 = vcombine.high %v422, %v422
      %v425 = vunpack.c.l.s4 1966171168
      %v426 = vunpack.c.0.s8 %v425
      %v427 = vlaneseq
      %v428 = vshrl.u32 %v427, 7
      %v429 = vsub.s32 %v426, %v428
      %v430 = vrot.slane %v422, %v429
      %v432 = vunpack.c.l.s4 1966171168
      %v433 = vunpack.c.0.s8 %v432
      %v434 = vlaneseq
      %v435 = vshrl.u32 %v434, 7
      %v436 = vsub.s32 %v433, %v435
      %v437 = vrot.slane %v423, %v436
      %v439 = vpack.i.b16 %v430, %v430
      %v441 = vlaneseq
      %v442 = vshrl.u32 %v441, 7
      %v443 = vsub.s32 0, %v442
      %v444 = vrot.slane %v439, %v443
      %v446 = vpack.i.b16 %v437, %v437
      %v448 = vlaneseq
      %v449 = vshrl.u32 %v448, 7
      %v450 = vsub.s32 0, %v449
      %v451 = vrot.slane %v446, %v450
      %v452 = vmul.bf16 %v410, %v444
      %v453 = vmul.bf16 %v405, %v451
      %v454 = vshrl.u32 %v430, 16
      %v455 = vpack.i.b16 %v454, %v454
      %v457 = vlaneseq
      %v458 = vshrl.u32 %v457, 7
      %v459 = vsub.s32 0, %v458
      %v460 = vrot.slane %v455, %v459
      %v461 = vshrl.u32 %v437, 16
      %v462 = vpack.i.b16 %v461, %v461
      %v464 = vlaneseq
      %v465 = vshrl.u32 %v464, 7
      %v466 = vsub.s32 0, %v465
      %v467 = vrot.slane %v462, %v466
      %470 = vrot.lane.b32.xlu0 %v460, 2
      %v471 = vpop.permute.xlu0 %470
      %472 = vrot.lane.b32.xlu0 %v467, 2
      %v473 = vpop.permute.xlu0 %472
      %vm474 = vcmask 15360
      %v475 = vsel %vm474, %v471, %v473
      %v479 = vmul.bf16 %v410, %v471
      %v480 = vmul.bf16 %v405, %v475
      %v481 = vmul.bf16 %v413, %v473
      %484 = vrot.lane.b32.xlu0 %v444, 16
      %v485 = vpop.permute.xlu0 %484
      %486 = vrot.lane.b32.xlu0 %v451, 16
      %v487 = vpop.permute.xlu0 %486
      %vm488 = vcmask 130048
      %v489 = vsel %vm488, %v485, %v487
      %v493 = vmul.bf16 %v410, %v485
      %v494 = vmul.bf16 %v405, %v489
      %v495 = vmul.bf16 %v413, %v487
      %496 = vrot.lane.b32.xlu0 %v460, 18
      %v497 = vpop.permute.xlu0 %496
      %498 = vrot.lane.b32.xlu0 %v467, 18
      %v499 = vpop.permute.xlu0 %498
      %vm500 = vcmask 146432
      %v501 = vsel %vm500, %v497, %v499
      %v505 = vmul.bf16 %v410, %v497
      %v506 = vmul.bf16 %v405, %v501
      %v507 = vmul.bf16 %v413, %v499
      %508 = vrot.lane.b32.xlu0 %v444, 32
      %v509 = vpop.permute.xlu0 %508
      %510 = vrot.lane.b32.xlu0 %v451, 32
      %v511 = vpop.permute.xlu0 %510
      %vm512 = vcmask 261120
      %v513 = vsel %vm512, %v509, %v511
      %v517 = vmul.bf16 %v410, %v509
      %v518 = vmul.bf16 %v405, %v513
      %v519 = vmul.bf16 %v413, %v511
      %520 = vrot.lane.b32.xlu0 %v460, 34
      %v521 = vpop.permute.xlu0 %520
      %522 = vrot.lane.b32.xlu0 %v467, 34
      %v523 = vpop.permute.xlu0 %522
      %vm524 = vcmask 277504
      %v525 = vsel %vm524, %v521, %v523
      %v529 = vmul.bf16 %v410, %v521
      %v530 = vmul.bf16 %v405, %v525
      %v531 = vmul.bf16 %v413, %v523
      %v534 = vrot.slane %v410, 6
      %v535 = vrot.slane %v405, 6
      %v536 = vrot.slane %v413, 6
      %537 = vrot.lane.b32.xlu0 %v534, 127
      %v538 = vpop.permute.xlu0 %537
      %539 = vrot.lane.b32.xlu0 %v535, 127
      %v540 = vpop.permute.xlu0 %539
      %541 = vrot.lane.b32.xlu0 %v536, 127
      %v542 = vpop.permute.xlu0 %541
      %vm543 = vcmask 1039360
      %v544 = vsel %vm543, %v538, %v540
      %v545 = vsel %vm543, %v540, %v542
      %v549 = vrot.slane %v479, 4
      %v550 = vrot.slane %v480, 4
      %v551 = vrot.slane %v481, 4
      %552 = vrot.lane.b32.xlu0 %v549, 126
      %v553 = vpop.permute.xlu0 %552
      %554 = vrot.lane.b32.xlu0 %v550, 126
      %v555 = vpop.permute.xlu0 %554
      %556 = vrot.lane.b32.xlu0 %v551, 126
      %v557 = vpop.permute.xlu0 %556
      %vm558 = vcmask 1031168
      %v559 = vsel %vm558, %v553, %v555
      %v560 = vsel %vm558, %v555, %v557
      %v564 = vrot.slane %v493, 2
      %v565 = vrot.slane %v494, 2
      %v566 = vrot.slane %v495, 2
      %567 = vrot.lane.b32.xlu0 %v564, 112
      %v568 = vpop.permute.xlu0 %567
      %569 = vrot.lane.b32.xlu0 %v565, 112
      %v570 = vpop.permute.xlu0 %569
      %571 = vrot.lane.b32.xlu0 %v566, 112
      %v572 = vpop.permute.xlu0 %571
      %vm573 = vcmask 916480
      %v574 = vsel %vm573, %v568, %v570
      %v575 = vsel %vm573, %v570, %v572
      %576 = vrot.lane.b32.xlu0 %v410, 111
      %v577 = vpop.permute.xlu0 %576
      %578 = vrot.lane.b32.xlu0 %v405, 111
      %v579 = vpop.permute.xlu0 %578
      %580 = vrot.lane.b32.xlu0 %v413, 111
      %v581 = vpop.permute.xlu0 %580
      %vm582 = vcmask 908288
      %v583 = vsel %vm582, %v577, %v579
      %v584 = vsel %vm582, %v579, %v581
      %v588 = vrot.slane %v505, 6
      %v589 = vrot.slane %v506, 6
      %v590 = vrot.slane %v507, 6
      %591 = vrot.lane.b32.xlu0 %v588, 110
      %v592 = vpop.permute.xlu0 %591
      %593 = vrot.lane.b32.xlu0 %v589, 110
      %v594 = vpop.permute.xlu0 %593
      %595 = vrot.lane.b32.xlu0 %v590, 110
      %v596 = vpop.permute.xlu0 %595
      %vm597 = vcmask 900096
      %v598 = vsel %vm597, %v592, %v594
      %v599 = vsel %vm597, %v594, %v596
      %v603 = vrot.slane %v517, 4
      %v604 = vrot.slane %v518, 4
      %v605 = vrot.slane %v519, 4
      %606 = vrot.lane.b32.xlu0 %v603, 96
      %v607 = vpop.permute.xlu0 %606
      %608 = vrot.lane.b32.xlu0 %v604, 96
      %v609 = vpop.permute.xlu0 %608
      %610 = vrot.lane.b32.xlu0 %v605, 96
      %v611 = vpop.permute.xlu0 %610
      %vm612 = vcmask 785408
      %v613 = vsel %vm612, %v607, %v609
      %v614 = vsel %vm612, %v609, %v611
      %v615 = vrot.slane %v410, 2
      %v616 = vrot.slane %v405, 2
      %v617 = vrot.slane %v413, 2
      %618 = vrot.lane.b32.xlu0 %v615, 95
      %v619 = vpop.permute.xlu0 %618
      %620 = vrot.lane.b32.xlu0 %v616, 95
      %v621 = vpop.permute.xlu0 %620
      %622 = vrot.lane.b32.xlu0 %v617, 95
      %v623 = vpop.permute.xlu0 %622
      %vm624 = vcmask 777216
      %v625 = vsel %vm624, %v619, %v621
      %v626 = vsel %vm624, %v621, %v623
      %630 = vrot.lane.b32.xlu0 %v529, 94
      %v631 = vpop.permute.xlu0 %630
      %632 = vrot.lane.b32.xlu0 %v530, 94
      %v633 = vpop.permute.xlu0 %632
      %634 = vrot.lane.b32.xlu0 %v531, 94
      %v635 = vpop.permute.xlu0 %634
      %vm636 = vcmask 769024
      %v637 = vsel %vm636, %v631, %v633
      %v638 = vsel %vm636, %v633, %v635
      %vm639 = vcmask 1041408
      %v642 = vsel %vm639, %v452, %v544
      %v645 = vsel %vm639, %v453, %v545
      %vm646 = vcmask 1043456
      %v648 = vsel %vm646, %v642, %v559
      %v650 = vsel %vm646, %v645, %v560
      %vm651 = vcmask 1045504
      %v653 = vsel %vm651, %v648, %v574
      %v656 = vsel %vm651, %v650, %v575
      %v660 = vsel %vm639, %v583, %v598
      %v663 = vsel %vm639, %v584, %v599
      %v665 = vsel %vm646, %v660, %v613
      %v667 = vsel %vm646, %v663, %v614
      %v669 = vsel %vm651, %v665, %v625
      %v672 = vsel %vm651, %v667, %v626
      %v676 = vsel %vm639, %v637, 1065369472
      %v678 = vsel %vm639, %v638, 1065369472
      %v679 = vld [vmem:[%s1] sm:$0xf]
      %vm680 = vcmask 302080
      %v682 = vsel %vm680, %v679, 0
      %vm684 = vcmask 1042432
      %v685 = vsel %vm639, 4294967295, 65535
      %v686 = vsel %vm684, %v685, 0
      %v687 = vand.u32 %v676, %v686
      %v689 = vand.u32 %v678, %v686
      %691 = vmatprep.subr.bf16.mxu0 0
      %692 = vmatpush1.bf16.msra.mxu0 0
      %693 = vmatprep.subr.bf16.mxu0 0
      %694 = vmatpush1.bf16.msra.mxu0 0
      %695 = vmatprep.subr.bf16.mxu0 0
      %696 = vmatpush1.bf16.msra.mxu0 0
      %697 = vmatprep.subr.bf16.mxu0 0
      %698 = vmatpush1.bf16.msra.mxu0 0
      %699 = vmatprep.subr.bf16.mxu0 0
      %700 = vmatpush1.bf16.msra.mxu0 0
      %701 = vmatprep.subr.bf16.mxu0 %v689
      %702 = vmatpush1.bf16.msra.mxu0 %v687
      %703 = vmatprep.subr.bf16.mxu0 %v672
      %704 = vmatpush1.bf16.msra.mxu0 %v669
      %705 = vmatprep.subr.bf16.mxu0 %v656
      %706 = vmatpush1.bf16.msra.mxu0 %v653
      %707 = vmatprep.subr.bf16.mxu0 0
      %708 = vmatpush2.bf16.msra.mxu0 0
      %709 = vmatprep.subr.bf16.mxu0 0
      %710 = vmatpush2.bf16.msra.mxu0 0
      %711 = vmatprep.subr.bf16.mxu0 0
      %712 = vmatpush2.bf16.msra.mxu0 0
      %713 = vmatprep.subr.bf16.mxu0 0
      %714 = vmatpush2.bf16.msra.mxu0 0
      %715 = vmatprep.subr.bf16.mxu0 0
      %716 = vmatpush2.bf16.msra.mxu0 0
      %717 = vmatprep.subr.bf16.mxu0 0
      %718 = vmatpush2.bf16.msra.mxu0 0
      %719 = vmatprep.subr.bf16.mxu0 0
      %720 = vmatpush2.bf16.msra.mxu0 0
      %721 = vmatprep.subr.bf16.mxu0 0
      %722 = vmatpush2.bf16.msra.mxu0 0
      %723 = vmatprep.mubr.bf16.mxu0 0
      %724 = vmatmul.mubr.bf16.gmra.mxu0 %v682
      %v725 = vpop.f32.mrf.mxu0
      %v726 = vadd.f32 0.0, %v725
      %v727 = vpop.f32.mrf.mxu0
      %v728 = vadd.f32 0.0, %v727
      %v729 = vpop.f32.mrf.mxu0
      %v730 = vpop.f32.mrf.mxu0
      %731 = vdwg.mxu0
      %v732 = vmax.f32 %v726, 0.0
      %v733 = vmax.f32 %v728, 0.0
      %v734 = vpack.c.bf16 %v732, %v732
      %v735 = vpack.c.bf16 %v733, %v733
      %v736 = vld [vmem:[%s3] sm:$0xf]
      %v737 = vld [vmem:[%s3 + $0x4] sm:$0xf]
      %v738 = vld [vmem:[%s3 + $0x8] sm:$0xf]
      %v739 = vld [vmem:[%s3 + $0xc] sm:$0xf]
      %v740 = vld [vmem:[%s3 + $0x10] sm:$0xf]
      %v741 = vld [vmem:[%s3 + $0x14] sm:$0xf]
      %v742 = vld [vmem:[%s3 + $0x18] sm:$0xf]
      %v743 = vld [vmem:[%s3 + $0x1c] sm:$0xf]
      %v744 = vld [vmem:[%s3 + $0x20] sm:$0xf]
      %v745 = vld [vmem:[%s3 + $0x24] sm:$0xf]
      %v746 = vld [vmem:[%s3 + $0x28] sm:$0xf]
      %v747 = vld [vmem:[%s3 + $0x2c] sm:$0xf]
      %v748 = vld [vmem:[%s3 + $0x30] sm:$0xf]
      %v749 = vld [vmem:[%s3 + $0x34] sm:$0xf]
      %v750 = vld [vmem:[%s3 + $0x38] sm:$0xf]
      %v751 = vld [vmem:[%s3 + $0x3c] sm:$0xf]
      %v752 = vld [vmem:[%s3 + $0x40] sm:$0xf]
      %v753 = vld [vmem:[%s3 + $0x44] sm:$0xf]
      %v754 = vld [vmem:[%s3 + $0x48] sm:$0xf]
      %v755 = vld [vmem:[%s3 + $0x4c] sm:$0xf]
      %v756 = vld [vmem:[%s3 + $0x50] sm:$0xf]
      %v757 = vld [vmem:[%s3 + $0x54] sm:$0xf]
      %v758 = vld [vmem:[%s3 + $0x58] sm:$0xf]
      %v759 = vld [vmem:[%s3 + $0x5c] sm:$0xf]
      %v760 = vld [vmem:[%s3 + $0x60] sm:$0xf]
      %v761 = vld [vmem:[%s3 + $0x64] sm:$0xf]
      %v762 = vld [vmem:[%s3 + $0x68] sm:$0xf]
      %v763 = vld [vmem:[%s3 + $0x6c] sm:$0xf]
      %v764 = vld [vmem:[%s3 + $0x70] sm:$0xf]
      %v765 = vld [vmem:[%s3 + $0x74] sm:$0xf]
      %v766 = vld [vmem:[%s3 + $0x78] sm:$0xf]
      %v767 = vld [vmem:[%s3 + $0x7c] sm:$0xf]
      %771 = vrot.lane.b32.xlu0 %v734, 127
      %v772 = vpop.permute.xlu0 %771
      %773 = vrot.lane.b32.xlu0 %v735, 127
      %v774 = vpop.permute.xlu0 %773
      %775 = vrot.lane.b32.xlu0 0, 127
      %v776 = vpop.permute.xlu0 %775
      %v777 = vsel %vm543, %v772, %v774
      %v778 = vsel %vm543, %v774, %v776
      %v781 = vmax.bf16 %v734, %v777
      %v782 = vmax.bf16 %v735, %v778
      %783 = vrot.lane.b32.xlu0 %v734, 112
      %v784 = vpop.permute.xlu0 %783
      %785 = vrot.lane.b32.xlu0 %v735, 112
      %v786 = vpop.permute.xlu0 %785
      %787 = vrot.lane.b32.xlu0 0, 112
      %v788 = vpop.permute.xlu0 %787
      %v789 = vsel %vm573, %v784, %v786
      %v790 = vsel %vm573, %v786, %v788
      %v793 = vmax.bf16 %v781, %v789
      %v794 = vmax.bf16 %v782, %v790
      %795 = vrot.lane.b32.xlu0 %v734, 111
      %v796 = vpop.permute.xlu0 %795
      %797 = vrot.lane.b32.xlu0 %v735, 111
      %v798 = vpop.permute.xlu0 %797
      %799 = vrot.lane.b32.xlu0 0, 111
      %v800 = vpop.permute.xlu0 %799
      %v801 = vsel %vm582, %v796, %v798
      %v802 = vsel %vm582, %v798, %v800
      %v805 = vmax.bf16 %v793, %v801
      %v806 = vmax.bf16 %v794, %v802
      %v839 = vunpack.c.l.b16 %v736
      %v840 = vunpack.c.l.b16 %v737
      %v841 = vunpack.c.l.b16 %v738
      %v842 = vunpack.c.l.b16 %v739
      %v843 = vunpack.c.l.b16 %v740
      %v844 = vunpack.c.l.b16 %v741
      %v845 = vunpack.c.l.b16 %v742
      %v846 = vunpack.c.l.b16 %v743
      %v847 = vunpack.c.l.b16 %v744
      %v848 = vunpack.c.l.b16 %v745
      %v849 = vunpack.c.l.b16 %v746
      %v850 = vunpack.c.l.b16 %v747
      %v851 = vunpack.c.l.b16 %v748
      %v852 = vunpack.c.l.b16 %v749
      %v853 = vunpack.c.l.b16 %v750
      %v854 = vunpack.c.l.b16 %v751
      %v855 = vunpack.c.l.b16 %v752
      %v856 = vunpack.c.l.b16 %v753
      %v857 = vunpack.c.l.b16 %v754
      %v858 = vunpack.c.l.b16 %v755
      %v859 = vunpack.c.l.b16 %v756
      %v860 = vunpack.c.l.b16 %v757
      %v861 = vunpack.c.l.b16 %v758
      %v862 = vunpack.c.l.b16 %v759
      %v863 = vunpack.c.l.b16 %v760
      %v864 = vunpack.c.l.b16 %v761
      %v865 = vunpack.c.l.b16 %v762
      %v866 = vunpack.c.l.b16 %v763
      %v867 = vunpack.c.l.b16 %v764
      %v868 = vunpack.c.l.b16 %v765
      %v869 = vunpack.c.l.b16 %v766
      %v870 = vunpack.c.l.b16 %v767
      %v871 = vpack.c.b16 %v840, %v839
      %v872 = vpack.c.b16 %v842, %v841
      %v873 = vpack.c.b16 %v844, %v843
      %v874 = vpack.c.b16 %v846, %v845
      %v875 = vpack.c.b16 %v848, %v847
      %v876 = vpack.c.b16 %v850, %v849
      %v877 = vpack.c.b16 %v852, %v851
      %v878 = vpack.c.b16 %v854, %v853
      %v879 = vpack.c.b16 %v856, %v855
      %v880 = vpack.c.b16 %v858, %v857
      %v881 = vpack.c.b16 %v860, %v859
      %v882 = vpack.c.b16 %v862, %v861
      %v883 = vpack.c.b16 %v864, %v863
      %v884 = vpack.c.b16 %v866, %v865
      %v885 = vpack.c.b16 %v868, %v867
      %v886 = vpack.c.b16 %v870, %v869
      %903 = vmatprep.subr.bf16.mxu0 0
      %904 = vmatpush1.bf16.msra.mxu0 %v878
      %905 = vmatprep.subr.bf16.mxu0 0
      %906 = vmatpush1.bf16.msra.mxu0 %v877
      %907 = vmatprep.subr.bf16.mxu0 0
      %908 = vmatpush1.bf16.msra.mxu0 %v876
      %909 = vmatprep.subr.bf16.mxu0 0
      %910 = vmatpush1.bf16.msra.mxu0 %v875
      %911 = vmatprep.subr.bf16.mxu0 0
      %912 = vmatpush1.bf16.msra.mxu0 %v874
      %913 = vmatprep.subr.bf16.mxu0 0
      %914 = vmatpush1.bf16.msra.mxu0 %v873
      %915 = vmatprep.subr.bf16.mxu0 0
      %916 = vmatpush1.bf16.msra.mxu0 %v872
      %917 = vmatprep.subr.bf16.mxu0 0
      %918 = vmatpush1.bf16.msra.mxu0 %v871
      %919 = vmatprep.subr.bf16.mxu0 0
      %920 = vmatpush2.bf16.msra.mxu0 %v886
      %921 = vmatprep.subr.bf16.mxu0 0
      %922 = vmatpush2.bf16.msra.mxu0 %v885
      %923 = vmatprep.subr.bf16.mxu0 0
      %924 = vmatpush2.bf16.msra.mxu0 %v884
      %925 = vmatprep.subr.bf16.mxu0 0
      %926 = vmatpush2.bf16.msra.mxu0 %v883
      %927 = vmatprep.subr.bf16.mxu0 0
      %928 = vmatpush2.bf16.msra.mxu0 %v882
      %929 = vmatprep.subr.bf16.mxu0 0
      %930 = vmatpush2.bf16.msra.mxu0 %v881
      %931 = vmatprep.subr.bf16.mxu0 0
      %932 = vmatpush2.bf16.msra.mxu0 %v880
      %933 = vmatprep.subr.bf16.mxu0 0
      %934 = vmatpush2.bf16.msra.mxu0 %v879
      %935 = vmatprep.mubr.bf16.mxu0 %v806
      %936 = vmatmul.mubr.bf16.gmra.mxu0 %v805
      %v937 = vpop.f32.mrf.mxu0
      %v938 = vadd.f32 0.0, %v937
      %v939 = vpop.f32.mrf.mxu0
      %v940 = vpop.f32.mrf.mxu0
      %v941 = vpop.f32.mrf.mxu0
      %942 = vdwg.mxu0
      %v943 = vpack.c.bf16 %v938, %v938
      %v944 = vld [vmem:[%s2 + $0x2] sm:$0x1]
      %946 = vrot.lane.b32.xlu0 %v943, 9
      %v947 = vpop.permute.xlu0 %946
      %vm948 = vcmask 72704
      %v950 = vsel %vm948, 0, %v947
      %vm951 = vcmask 596992
      %v952 = vsel %vm951, %v950, 0
      %v955 = vpack.i.b16 %v944, %v944
      %v957 = vlaneseq
      %v958 = vshrl.u32 %v957, 7
      %v959 = vsub.s32 0, %v958
      %v960 = vrot.slane %v955, %v959
      %v961 = vmul.bf16 %v952, %v960
      %v962 = vshrl.u32 %v944, 16
      %v963 = vpack.i.b16 %v962, %v962
      %v965 = vlaneseq
      %v966 = vshrl.u32 %v965, 7
      %v967 = vsub.s32 0, %v966
      %v968 = vrot.slane %v963, %v967
      %970 = vrot.lane.b32.xlu0 %v968, 2
      %v971 = vpop.permute.xlu0 %970
      %v973 = vmul.bf16 %v952, %v971
      %975 = vrot.lane.b32.xlu0 %v960, 8
      %v976 = vpop.permute.xlu0 %975
      %v978 = vmul.bf16 %v952, %v976
      %979 = vrot.lane.b32.xlu0 %v968, 10
      %v980 = vpop.permute.xlu0 %979
      %v982 = vmul.bf16 %v952, %v980
      %983 = vrot.lane.b32.xlu0 %v960, 16
      %v984 = vpop.permute.xlu0 %983
      %v986 = vmul.bf16 %v952, %v984
      %987 = vrot.lane.b32.xlu0 %v968, 18
      %v988 = vpop.permute.xlu0 %987
      %v990 = vmul.bf16 %v952, %v988
      %v992 = vrot.slane %v952, 4
      %993 = vrot.lane.b32.xlu0 %v992, 127
      %v994 = vpop.permute.xlu0 %993
      %996 = vrot.lane.b32.xlu0 %v973, 126
      %v997 = vpop.permute.xlu0 %996
      %v999 = vrot.slane %v978, 4
      %1000 = vrot.lane.b32.xlu0 %v999, 120
      %v1001 = vpop.permute.xlu0 %1000
      %1002 = vrot.lane.b32.xlu0 %v952, 119
      %v1003 = vpop.permute.xlu0 %1002
      %v1005 = vrot.slane %v982, 4
      %1006 = vrot.lane.b32.xlu0 %v1005, 118
      %v1007 = vpop.permute.xlu0 %1006
      %1009 = vrot.lane.b32.xlu0 %v986, 112
      %v1010 = vpop.permute.xlu0 %1009
      %1011 = vrot.lane.b32.xlu0 %v992, 111
      %v1012 = vpop.permute.xlu0 %1011
      %1014 = vrot.lane.b32.xlu0 %v990, 110
      %v1015 = vpop.permute.xlu0 %1014
      %v1018 = vsel %vm646, %v961, %v994
      %v1022 = vsel %vm646, %v997, %v1001
      %v1026 = vsel %vm646, %v1003, %v1007
      %v1030 = vsel %vm646, %v1010, %v1012
      %v1033 = vsel %vm646, %v1015, 1065369472
      %v1034 = vld [vmem:[%s1 + $0x4] sm:$0xf]
      %v1035 = vld [vmem:[%s1 + $0xb4] sm:$0xf]
      %v1038 = vunpack.c.l.b16 %v1034
      %v1039 = vunpack.c.l.b16 %v1035
      %v1040 = vpack.c.b16 %v1039, %v1038
      %v1042 = vsel %vm951, %v1040, 0
      %vm1044 = vcmask 1044480
      %v1045 = vsel %vm646, 4294967295, 65535
      %v1046 = vsel %vm1044, %v1045, 0
      %v1047 = vand.u32 %v1033, %v1046
      %1049 = vmatprep.subr.bf16.mxu0 0
      %1050 = vmatpush1.bf16.msra.mxu0 0
      %1051 = vmatprep.subr.bf16.mxu0 0
      %1052 = vmatpush1.bf16.msra.mxu0 0
      %1053 = vmatprep.subr.bf16.mxu0 0
      %1054 = vmatpush1.bf16.msra.mxu0 0
      %1055 = vmatprep.subr.bf16.mxu0 0
      %1056 = vmatpush1.bf16.msra.mxu0 %v1047
      %1057 = vmatprep.subr.bf16.mxu0 0
      %1058 = vmatpush1.bf16.msra.mxu0 %v1030
      %1059 = vmatprep.subr.bf16.mxu0 0
      %1060 = vmatpush1.bf16.msra.mxu0 %v1026
      %1061 = vmatprep.subr.bf16.mxu0 0
      %1062 = vmatpush1.bf16.msra.mxu0 %v1022
      %1063 = vmatprep.subr.bf16.mxu0 0
      %1064 = vmatpush1.bf16.msra.mxu0 %v1018
      %1065 = vmatprep.subr.bf16.mxu0 0
      %1066 = vmatpush2.bf16.msra.mxu0 0
      %1067 = vmatprep.subr.bf16.mxu0 0
      %1068 = vmatpush2.bf16.msra.mxu0 0
      %1069 = vmatprep.subr.bf16.mxu0 0
      %1070 = vmatpush2.bf16.msra.mxu0 0
      %1071 = vmatprep.subr.bf16.mxu0 0
      %1072 = vmatpush2.bf16.msra.mxu0 0
      %1073 = vmatprep.subr.bf16.mxu0 0
      %1074 = vmatpush2.bf16.msra.mxu0 0
      %1075 = vmatprep.subr.bf16.mxu0 0
      %1076 = vmatpush2.bf16.msra.mxu0 0
      %1077 = vmatprep.subr.bf16.mxu0 0
      %1078 = vmatpush2.bf16.msra.mxu0 0
      %1079 = vmatprep.subr.bf16.mxu0 0
      %1080 = vmatpush2.bf16.msra.mxu0 0
      %1081 = vmatprep.mubr.bf16.mxu0 0
      %1082 = vmatmul.mubr.bf16.gmra.mxu0 %v1042
      %v1083 = vpop.f32.mrf.mxu0
      %v1084 = vadd.f32 0.0, %v1083
      %v1085 = vpop.f32.mrf.mxu0
      %v1086 = vpop.f32.mrf.mxu0
      %v1087 = vadd.f32 0.0, %v1086
      %v1088 = vpop.f32.mrf.mxu0
      %1089 = vdwg.mxu0
      %v1090 = vmax.f32 %v1084, 0.0
      %v1091 = vmax.f32 %v1087, 0.0
      %v1092 = vpack.c.bf16 %v1091, %v1090
      %v1093 = vld [vmem:[%s4] sm:$0xf]
      %v1094 = vld [vmem:[%s4 + $0x4] sm:$0xf]
      %v1095 = vld [vmem:[%s4 + $0x8] sm:$0xf]
      %v1096 = vld [vmem:[%s4 + $0xc] sm:$0xf]
      %v1097 = vld [vmem:[%s4 + $0x10] sm:$0xf]
      %v1098 = vld [vmem:[%s4 + $0x14] sm:$0xf]
      %v1099 = vld [vmem:[%s4 + $0x18] sm:$0xf]
      %v1100 = vld [vmem:[%s4 + $0x1c] sm:$0xf]
      %vm1101 = vcmask 523264
      %v1103 = vsel %vm1101, %v1092, 0
      %1105 = vrot.lane.b32.xlu0 %v1103, 127
      %v1106 = vpop.permute.xlu0 %1105
      %v1108 = vmax.bf16 %v1092, %v1106
      %1109 = vrot.lane.b32.xlu0 %v1103, 120
      %v1110 = vpop.permute.xlu0 %1109
      %v1112 = vmax.bf16 %v1108, %v1110
      %1113 = vrot.lane.b32.xlu0 %v1103, 119
      %v1114 = vpop.permute.xlu0 %1113
      %v1116 = vmax.bf16 %v1112, %v1114
      %v1125 = vunpack.c.l.b16 %v1093
      %v1126 = vunpack.c.l.b16 %v1094
      %v1127 = vunpack.c.l.b16 %v1095
      %v1128 = vunpack.c.l.b16 %v1096
      %v1129 = vunpack.c.l.b16 %v1097
      %v1130 = vunpack.c.l.b16 %v1098
      %v1131 = vunpack.c.l.b16 %v1099
      %v1132 = vunpack.c.l.b16 %v1100
      %v1133 = vpack.c.b16 %v1126, %v1125
      %v1134 = vpack.c.b16 %v1128, %v1127
      %v1135 = vpack.c.b16 %v1130, %v1129
      %v1136 = vpack.c.b16 %v1132, %v1131
      %v1142 = vsel %vm1101, %v1116, 0
      %1144 = vmatprep.subr.bf16.mxu0 0
      %1145 = vmatpush1.bf16.msra.mxu0 0
      %1146 = vmatprep.subr.bf16.mxu0 0
      %1147 = vmatpush1.bf16.msra.mxu0 0
      %1148 = vmatprep.subr.bf16.mxu0 0
      %1149 = vmatpush1.bf16.msra.mxu0 0
      %1150 = vmatprep.subr.bf16.mxu0 0
      %1151 = vmatpush1.bf16.msra.mxu0 0
      %1152 = vmatprep.subr.bf16.mxu0 0
      %1153 = vmatpush1.bf16.msra.mxu0 %v1136
      %1154 = vmatprep.subr.bf16.mxu0 0
      %1155 = vmatpush1.bf16.msra.mxu0 %v1135
      %1156 = vmatprep.subr.bf16.mxu0 0
      %1157 = vmatpush1.bf16.msra.mxu0 %v1134
      %1158 = vmatprep.subr.bf16.mxu0 0
      %1159 = vmatpush1.bf16.msra.mxu0 %v1133
      %1160 = vmatprep.subr.bf16.mxu0 0
      %1161 = vmatpush2.bf16.msra.mxu0 0
      %1162 = vmatprep.subr.bf16.mxu0 0
      %1163 = vmatpush2.bf16.msra.mxu0 0
      %1164 = vmatprep.subr.bf16.mxu0 0
      %1165 = vmatpush2.bf16.msra.mxu0 0
      %1166 = vmatprep.subr.bf16.mxu0 0
      %1167 = vmatpush2.bf16.msra.mxu0 0
      %1168 = vmatprep.subr.bf16.mxu0 0
      %1169 = vmatpush2.bf16.msra.mxu0 0
      %1170 = vmatprep.subr.bf16.mxu0 0
      %1171 = vmatpush2.bf16.msra.mxu0 0
      %1172 = vmatprep.subr.bf16.mxu0 0
      %1173 = vmatpush2.bf16.msra.mxu0 0
      %1174 = vmatprep.subr.bf16.mxu0 0
      %1175 = vmatpush2.bf16.msra.mxu0 0
      %1176 = vmatprep.mubr.bf16.mxu0 0
      %1177 = vmatmul.mubr.bf16.gmra.mxu0 %v1142
      %v1178 = vpop.f32.mrf.mxu0
      %v1179 = vadd.f32 0.0, %v1178
      %v1180 = vpop.f32.mrf.mxu0
      %v1181 = vpop.f32.mrf.mxu0
      %v1182 = vadd.f32 0.0, %v1181
      %v1183 = vpop.f32.mrf.mxu0
      %1184 = vdwg.mxu0
      %v1185 = vpack.c.bf16 %v1182, %v1179
      %v1186 = vld [vmem:[%s2 + $0x3] sm:$0x1]
      %1188 = vrot.lane.b32.xlu0 %v1185, 5
      %v1189 = vpop.permute.xlu0 %1188
      %vm1190 = vcmask 39936
      %v1192 = vsel %vm1190, 0, %v1189
      %vm1193 = vcmask 171008
      %v1194 = vsel %vm1193, %v1192, 0
      %v1197 = vpack.i.b16 %v1186, %v1186
      %v1199 = vlaneseq
      %v1200 = vshrl.u32 %v1199, 7
      %v1201 = vsub.s32 0, %v1200
      %v1202 = vrot.slane %v1197, %v1201
      %v1203 = vmul.bf16 %v1194, %v1202
      %v1204 = vshrl.u32 %v1186, 16
      %v1205 = vpack.i.b16 %v1204, %v1204
      %v1207 = vlaneseq
      %v1208 = vshrl.u32 %v1207, 7
      %v1209 = vsub.s32 0, %v1208
      %v1210 = vrot.slane %v1205, %v1209
      %1212 = vrot.lane.b32.xlu0 %v1210, 2
      %v1213 = vpop.permute.xlu0 %1212
      %v1215 = vmul.bf16 %v1194, %v1213
      %1217 = vrot.lane.b32.xlu0 %v1202, 4
      %v1218 = vpop.permute.xlu0 %1217
      %v1220 = vmul.bf16 %v1194, %v1218
      %1221 = vrot.lane.b32.xlu0 %v1210, 6
      %v1222 = vpop.permute.xlu0 %1221
      %v1224 = vmul.bf16 %v1194, %v1222
      %1225 = vrot.lane.b32.xlu0 %v1202, 8
      %v1226 = vpop.permute.xlu0 %1225
      %v1228 = vmul.bf16 %v1194, %v1226
      %1229 = vrot.lane.b32.xlu0 %v1210, 10
      %v1230 = vpop.permute.xlu0 %1229
      %v1232 = vmul.bf16 %v1194, %v1230
      %1234 = vrot.lane.b32.xlu0 %v1194, 127
      %v1235 = vpop.permute.xlu0 %1234
      %1238 = vrot.lane.b32.xlu0 %v1215, 126
      %v1239 = vpop.permute.xlu0 %1238
      %1242 = vrot.lane.b32.xlu0 %v1220, 124
      %v1243 = vpop.permute.xlu0 %1242
      %1245 = vrot.lane.b32.xlu0 %v1194, 123
      %v1246 = vpop.permute.xlu0 %1245
      %1249 = vrot.lane.b32.xlu0 %v1224, 122
      %v1250 = vpop.permute.xlu0 %1249
      %1253 = vrot.lane.b32.xlu0 %v1228, 120
      %v1254 = vpop.permute.xlu0 %1253
      %1256 = vrot.lane.b32.xlu0 %v1194, 119
      %v1257 = vpop.permute.xlu0 %1256
      %1260 = vrot.lane.b32.xlu0 %v1232, 118
      %v1261 = vpop.permute.xlu0 %1260
      %v1263 = vld [vmem:[%s1 + $0x8] sm:$0xff]
      %v1264 = vld [vmem:[%s1 + $0xb8] sm:$0xff]
      %v1267 = vunpack.c.l.b16 %v1263
      %v1268 = vunpack.c.h.b16 %v1263
      %v1269 = vunpack.c.l.b16 %v1264
      %v1270 = vunpack.c.h.b16 %v1264
      %v1271 = vpack.c.b16 %v1269, %v1267
      %v1272 = vpack.c.b16 %v1270, %v1268
      %v1275 = vsel %vm407, %v1272, 0
      %vm1277 = vcmask 1040384
      %v1278 = vsel 0, 4294967295, 65535
      %v1279 = vsel %vm1277, %v1278, 0
      %v1280 = vand.u32 1065369472, %v1279
      %1282 = vmatprep.subr.bf16.mxu0 0
      %1283 = vmatpush1.bf16.msra.mxu0 %v1257
      %1284 = vmatprep.subr.bf16.mxu0 0
      %1285 = vmatpush1.bf16.msra.mxu0 %v1254
      %1286 = vmatprep.subr.bf16.mxu0 0
      %1287 = vmatpush1.bf16.msra.mxu0 %v1250
      %1288 = vmatprep.subr.bf16.mxu0 0
      %1289 = vmatpush1.bf16.msra.mxu0 %v1246
      %1290 = vmatprep.subr.bf16.mxu0 0
      %1291 = vmatpush1.bf16.msra.mxu0 %v1243
      %1292 = vmatprep.subr.bf16.mxu0 0
      %1293 = vmatpush1.bf16.msra.mxu0 %v1239
      %1294 = vmatprep.subr.bf16.mxu0 0
      %1295 = vmatpush1.bf16.msra.mxu0 %v1235
      %1296 = vmatprep.subr.bf16.mxu0 0
      %1297 = vmatpush1.bf16.msra.mxu0 %v1203
      %1298 = vmatprep.subr.bf16.mxu0 0
      %1299 = vmatpush2.bf16.msra.mxu0 0
      %1300 = vmatprep.subr.bf16.mxu0 0
      %1301 = vmatpush2.bf16.msra.mxu0 0
      %1302 = vmatprep.subr.bf16.mxu0 0
      %1303 = vmatpush2.bf16.msra.mxu0 0
      %1304 = vmatprep.subr.bf16.mxu0 0
      %1305 = vmatpush2.bf16.msra.mxu0 0
      %1306 = vmatprep.subr.bf16.mxu0 0
      %1307 = vmatpush2.bf16.msra.mxu0 0
      %1308 = vmatprep.subr.bf16.mxu0 0
      %1309 = vmatpush2.bf16.msra.mxu0 0
      %1310 = vmatprep.subr.bf16.mxu0 0
      %1311 = vmatpush2.bf16.msra.mxu0 %v1280
      %1312 = vmatprep.subr.bf16.mxu0 0
      %1313 = vmatpush2.bf16.msra.mxu0 %v1261
      %1314 = vmatprep.mubr.bf16.mxu0 %v1275
      %1315 = vmatmul.mubr.bf16.gmra.mxu0 %v1271
      %v1316 = vpop.f32.mrf.mxu0
      %v1317 = vadd.f32 0.0, %v1316
      %v1318 = vpop.f32.mrf.mxu0
      %v1319 = vpop.f32.mrf.mxu0
      %v1320 = vadd.f32 0.0, %v1319
      %v1321 = vpop.f32.mrf.mxu0
      %1322 = vdwg.mxu0
      %v1323 = vmax.f32 %v1317, 0.0
      %v1324 = vmax.f32 %v1320, 0.0
      %v1325 = vpack.c.bf16 %v1324, %v1323
      %v1326 = vld [vmem:[%s5] sm:$0xf]
      %v1327 = vld [vmem:[%s5 + $0x4] sm:$0xf]
      %vm1328 = vcmask 130048
      %v1330 = vsel %vm1328, %v1325, 0
      %1332 = vrot.lane.b32.xlu0 %v1330, 127
      %v1333 = vpop.permute.xlu0 %1332
      %v1335 = vmax.bf16 %v1325, %v1333
      %1336 = vrot.lane.b32.xlu0 %v1330, 124
      %v1337 = vpop.permute.xlu0 %1336
      %v1339 = vmax.bf16 %v1335, %v1337
      %1340 = vrot.lane.b32.xlu0 %v1330, 123
      %v1341 = vpop.permute.xlu0 %1340
      %v1343 = vmax.bf16 %v1339, %v1341
      %v1346 = vunpack.c.l.b16 %v1326
      %v1347 = vunpack.c.l.b16 %v1327
      %v1348 = vpack.c.b16 %v1347, %v1346
      %v1351 = vsel %vm1328, %v1343, 0
      %1353 = vmatprep.subr.bf16.mxu0 0
      %1354 = vmatpush1.bf16.msra.mxu0 0
      %1355 = vmatprep.subr.bf16.mxu0 0
      %1356 = vmatpush1.bf16.msra.mxu0 0
      %1357 = vmatprep.subr.bf16.mxu0 0
      %1358 = vmatpush1.bf16.msra.mxu0 0
      %1359 = vmatprep.subr.bf16.mxu0 0
      %1360 = vmatpush1.bf16.msra.mxu0 0
      %1361 = vmatprep.subr.bf16.mxu0 0
      %1362 = vmatpush1.bf16.msra.mxu0 0
      %1363 = vmatprep.subr.bf16.mxu0 0
      %1364 = vmatpush1.bf16.msra.mxu0 0
      %1365 = vmatprep.subr.bf16.mxu0 0
      %1366 = vmatpush1.bf16.msra.mxu0 0
      %1367 = vmatprep.subr.bf16.mxu0 0
      %1368 = vmatpush1.bf16.msra.mxu0 %v1348
      %1369 = vmatprep.subr.bf16.mxu0 0
      %1370 = vmatpush2.bf16.msra.mxu0 0
      %1371 = vmatprep.subr.bf16.mxu0 0
      %1372 = vmatpush2.bf16.msra.mxu0 0
      %1373 = vmatprep.subr.bf16.mxu0 0
      %1374 = vmatpush2.bf16.msra.mxu0 0
      %1375 = vmatprep.subr.bf16.mxu0 0
      %1376 = vmatpush2.bf16.msra.mxu0 0
      %1377 = vmatprep.subr.bf16.mxu0 0
      %1378 = vmatpush2.bf16.msra.mxu0 0
      %1379 = vmatprep.subr.bf16.mxu0 0
      %1380 = vmatpush2.bf16.msra.mxu0 0
      %1381 = vmatprep.subr.bf16.mxu0 0
      %1382 = vmatpush2.bf16.msra.mxu0 0
      %1383 = vmatprep.subr.bf16.mxu0 0
      %1384 = vmatpush2.bf16.msra.mxu0 0
      %1385 = vmatprep.mubr.bf16.mxu0 0
      %1386 = vmatmul.mubr.bf16.gmra.mxu0 %v1351
      %v1387 = vpop.f32.mrf.mxu0
      %v1388 = vadd.f32 0.0, %v1387
      %v1389 = vpop.f32.mrf.mxu0
      %v1390 = vpop.f32.mrf.mxu0
      %v1391 = vadd.f32 0.0, %v1390
      %v1392 = vpop.f32.mrf.mxu0
      %1393 = vdwg.mxu0
      %v1394 = vpack.c.bf16 %v1391, %v1388
      %v1395 = vld [vmem:[%s2 + $0x4] sm:$0x1]
      %1397 = vrot.lane.b32.xlu0 %v1394, 3
      %v1398 = vpop.permute.xlu0 %1397
      %vm1399 = vcmask 23552
      %v1401 = vsel %vm1399, 0, %v1398
      %vm1402 = vcmask 56320
      %v1403 = vsel %vm1402, %v1401, 0
      %v1406 = vpack.i.b16 %v1395, %v1395
      %v1408 = vlaneseq
      %v1409 = vshrl.u32 %v1408, 7
      %v1410 = vsub.s32 0, %v1409
      %v1411 = vrot.slane %v1406, %v1410
      %v1412 = vmul.bf16 %v1403, %v1411
      %v1413 = vshrl.u32 %v1395, 16
      %v1414 = vpack.i.b16 %v1413, %v1413
      %v1416 = vlaneseq
      %v1417 = vshrl.u32 %v1416, 7
      %v1418 = vsub.s32 0, %v1417
      %v1419 = vrot.slane %v1414, %v1418
      %1421 = vrot.lane.b32.xlu0 %v1419, 2
      %v1422 = vpop.permute.xlu0 %1421
      %v1424 = vmul.bf16 %v1403, %v1422
      %1426 = vrot.lane.b32.xlu0 %v1411, 2
      %v1427 = vpop.permute.xlu0 %1426
      %v1429 = vmul.bf16 %v1403, %v1427
      %1430 = vrot.lane.b32.xlu0 %v1419, 4
      %v1431 = vpop.permute.xlu0 %1430
      %v1433 = vmul.bf16 %v1403, %v1431
      %1434 = vrot.lane.b32.xlu0 %v1411, 4
      %v1435 = vpop.permute.xlu0 %1434
      %v1437 = vmul.bf16 %v1403, %v1435
      %1438 = vrot.lane.b32.xlu0 %v1419, 6
      %v1439 = vpop.permute.xlu0 %1438
      %v1441 = vmul.bf16 %v1403, %v1439
      %1443 = vrot.lane.b32.xlu0 %v1403, 127
      %v1444 = vpop.permute.xlu0 %1443
      %1447 = vrot.lane.b32.xlu0 %v1424, 126
      %v1448 = vpop.permute.xlu0 %1447
      %1451 = vrot.lane.b32.xlu0 %v1429, 126
      %v1452 = vpop.permute.xlu0 %1451
      %1454 = vrot.lane.b32.xlu0 %v1403, 125
      %v1455 = vpop.permute.xlu0 %1454
      %1458 = vrot.lane.b32.xlu0 %v1433, 124
      %v1459 = vpop.permute.xlu0 %1458
      %1462 = vrot.lane.b32.xlu0 %v1437, 124
      %v1463 = vpop.permute.xlu0 %1462
      %1465 = vrot.lane.b32.xlu0 %v1403, 123
      %v1466 = vpop.permute.xlu0 %1465
      %1469 = vrot.lane.b32.xlu0 %v1441, 122
      %v1470 = vpop.permute.xlu0 %1469
      %v1472 = vld [vmem:[%s1 + $0x10] sm:$0xff]
      %v1473 = vld [vmem:[%s1 + $0xc0] sm:$0xff]
      %v1474 = vld [vmem:[%s1 + $0x170] sm:$0xff]
      %v1475 = vld [vmem:[%s1 + $0x220] sm:$0xff]
      %v1480 = vunpack.c.l.b16 %v1472
      %v1481 = vunpack.c.h.b16 %v1472
      %v1482 = vunpack.c.l.b16 %v1473
      %v1483 = vunpack.c.h.b16 %v1473
      %v1484 = vunpack.c.l.b16 %v1474
      %v1485 = vunpack.c.h.b16 %v1474
      %v1486 = vunpack.c.l.b16 %v1475
      %v1487 = vunpack.c.h.b16 %v1475
      %v1488 = vpack.c.b16 %v1482, %v1480
      %v1489 = vpack.c.b16 %v1483, %v1481
      %v1490 = vpack.c.b16 %v1486, %v1484
      %v1491 = vpack.c.b16 %v1487, %v1485
      %v1495 = vsel %vm407, %v1489, 0
      %v1498 = vsel %vm407, %v1491, 0
      %1500 = vmatprep.subr.bf16.mxu0 0
      %1501 = vmatpush1.bf16.msra.mxu0 %v1466
      %1502 = vmatprep.subr.bf16.mxu0 0
      %1503 = vmatpush1.bf16.msra.mxu0 %v1463
      %1504 = vmatprep.subr.bf16.mxu0 0
      %1505 = vmatpush1.bf16.msra.mxu0 %v1459
      %1506 = vmatprep.subr.bf16.mxu0 0
      %1507 = vmatpush1.bf16.msra.mxu0 %v1455
      %1508 = vmatprep.subr.bf16.mxu0 0
      %1509 = vmatpush1.bf16.msra.mxu0 %v1452
      %1510 = vmatprep.subr.bf16.mxu0 0
      %1511 = vmatpush1.bf16.msra.mxu0 %v1448
      %1512 = vmatprep.subr.bf16.mxu0 0
      %1513 = vmatpush1.bf16.msra.mxu0 %v1444
      %1514 = vmatprep.subr.bf16.mxu0 0
      %1515 = vmatpush1.bf16.msra.mxu0 %v1412
      %1516 = vmatprep.subr.bf16.mxu0 0
      %1517 = vmatpush2.bf16.msra.mxu0 0
      %1518 = vmatprep.subr.bf16.mxu0 0
      %1519 = vmatpush2.bf16.msra.mxu0 0
      %1520 = vmatprep.subr.bf16.mxu0 0
      %1521 = vmatpush2.bf16.msra.mxu0 0
      %1522 = vmatprep.subr.bf16.mxu0 0
      %1523 = vmatpush2.bf16.msra.mxu0 0
      %1524 = vmatprep.subr.bf16.mxu0 0
      %1525 = vmatpush2.bf16.msra.mxu0 0
      %1526 = vmatprep.subr.bf16.mxu0 0
      %1527 = vmatpush2.bf16.msra.mxu0 0
      %1528 = vmatprep.subr.bf16.mxu0 0
      %1529 = vmatpush2.bf16.msra.mxu0 %v1280
      %1530 = vmatprep.subr.bf16.mxu0 0
      %1531 = vmatpush2.bf16.msra.mxu0 %v1470
      %1532 = vmatprep.mubr.bf16.mxu0 %v1495
      %1533 = vmatmul.mubr.bf16.gmra.mxu0 %v1488
      %v1534 = vpop.f32.mrf.mxu0
      %v1535 = vadd.f32 0.0, %v1534
      %v1536 = vpop.f32.mrf.mxu0
      %v1537 = vpop.f32.mrf.mxu0
      %v1538 = vadd.f32 0.0, %v1537
      %v1539 = vpop.f32.mrf.mxu0
      %1540 = vmatprep.mubr.bf16.mxu0 %v1498
      %1541 = vmatmul.mubr.bf16.gmra.mxu0 %v1490
      %v1542 = vpop.f32.mrf.mxu0
      %v1543 = vadd.f32 0.0, %v1542
      %v1544 = vpop.f32.mrf.mxu0
      %v1545 = vpop.f32.mrf.mxu0
      %v1546 = vadd.f32 0.0, %v1545
      %v1547 = vpop.f32.mrf.mxu0
      %1548 = vdwg.mxu0
      %v1549 = vmax.f32 %v1535, 0.0
      %v1550 = vmax.f32 %v1538, 0.0
      %v1551 = vmax.f32 %v1543, 0.0
      %v1552 = vmax.f32 %v1546, 0.0
      %v1553 = vpack.c.bf16 %v1550, %v1549
      %v1554 = vpack.c.bf16 %v1552, %v1551
      %v1555 = vld [vmem:[%s6] sm:$0x3]
      %vm1556 = vcmask 31744
      %v1558 = vsel %vm1556, %v1553, 0
      %v1560 = vsel %vm1556, %v1554, 0
      %1563 = vrot.lane.b32.xlu0 %v1558, 127
      %v1564 = vpop.permute.xlu0 %1563
      %1565 = vrot.lane.b32.xlu0 %v1560, 127
      %v1566 = vpop.permute.xlu0 %1565
      %v1569 = vmax.bf16 %v1553, %v1564
      %v1570 = vmax.bf16 %v1554, %v1566
      %1571 = vrot.lane.b32.xlu0 %v1558, 126
      %v1572 = vpop.permute.xlu0 %1571
      %1573 = vrot.lane.b32.xlu0 %v1560, 126
      %v1574 = vpop.permute.xlu0 %1573
      %v1577 = vmax.bf16 %v1569, %v1572
      %v1578 = vmax.bf16 %v1570, %v1574
      %1579 = vrot.lane.b32.xlu0 %v1558, 125
      %v1580 = vpop.permute.xlu0 %1579
      %1581 = vrot.lane.b32.xlu0 %v1560, 125
      %v1582 = vpop.permute.xlu0 %1581
      %v1585 = vmax.bf16 %v1577, %v1580
      %v1586 = vmax.bf16 %v1578, %v1582
      %v1588 = vsel %vm1556, %v1585, 0
      %v1591 = vsel %vm1556, %v1586, 0
      %v1594 = vsel %vm639, %v1555, 0
      %1596 = vmatprep.subr.bf16.mxu0 0
      %1597 = vmatpush1.bf16.msra.mxu0 0
      %1598 = vmatprep.subr.bf16.mxu0 0
      %1599 = vmatpush1.bf16.msra.mxu0 0
      %1600 = vmatprep.subr.bf16.mxu0 0
      %1601 = vmatpush1.bf16.msra.mxu0 0
      %1602 = vmatprep.subr.bf16.mxu0 0
      %1603 = vmatpush1.bf16.msra.mxu0 0
      %1604 = vmatprep.subr.bf16.mxu0 0
      %1605 = vmatpush1.bf16.msra.mxu0 0
      %1606 = vmatprep.subr.bf16.mxu0 0
      %1607 = vmatpush1.bf16.msra.mxu0 0
      %1608 = vmatprep.subr.bf16.mxu0 0
      %1609 = vmatpush1.bf16.msra.mxu0 0
      %1610 = vmatprep.subr.bf16.mxu0 0
      %1611 = vmatpush1.bf16.msra.mxu0 %v1594
      %1612 = vmatprep.subr.bf16.mxu0 0
      %1613 = vmatpush2.bf16.msra.mxu0 0
      %1614 = vmatprep.subr.bf16.mxu0 0
      %1615 = vmatpush2.bf16.msra.mxu0 0
      %1616 = vmatprep.subr.bf16.mxu0 0
      %1617 = vmatpush2.bf16.msra.mxu0 0
      %1618 = vmatprep.subr.bf16.mxu0 0
      %1619 = vmatpush2.bf16.msra.mxu0 0
      %1620 = vmatprep.subr.bf16.mxu0 0
      %1621 = vmatpush2.bf16.msra.mxu0 0
      %1622 = vmatprep.subr.bf16.mxu0 0
      %1623 = vmatpush2.bf16.msra.mxu0 0
      %1624 = vmatprep.subr.bf16.mxu0 0
      %1625 = vmatpush2.bf16.msra.mxu0 0
      %1626 = vmatprep.subr.bf16.mxu0 0
      %1627 = vmatpush2.bf16.msra.mxu0 0
      %1628 = vmatprep.mubr.bf16.mxu0 0
      %1629 = vmatmul.mubr.bf16.gmra.mxu0 %v1588
      %v1630 = vpop.f32.mrf.mxu0
      %v1631 = vadd.f32 0.0, %v1630
      %v1632 = vpop.f32.mrf.mxu0
      %v1633 = vpop.f32.mrf.mxu0
      %v1634 = vadd.f32 0.0, %v1633
      %v1635 = vpop.f32.mrf.mxu0
      %1636 = vmatprep.mubr.bf16.mxu0 0
      %1637 = vmatmul.mubr.bf16.gmra.mxu0 %v1591
      %v1638 = vpop.f32.mrf.mxu0
      %v1639 = vadd.f32 0.0, %v1638
      %v1640 = vpop.f32.mrf.mxu0
      %v1641 = vpop.f32.mrf.mxu0
      %v1642 = vadd.f32 0.0, %v1641
      %v1643 = vpop.f32.mrf.mxu0
      %1644 = vdwg.mxu0
      %v1645 = vpack.c.bf16 %v1634, %v1631
      %v1646 = vpack.c.bf16 %v1642, %v1639
      %v1647 = vld [vmem:[%s2 + $0x5] sm:$0x1]
      %1650 = vrot.lane.b32.xlu0 %v1645, 2
      %v1651 = vpop.permute.xlu0 %1650
      %1652 = vrot.lane.b32.xlu0 %v1646, 2
      %v1653 = vpop.permute.xlu0 %1652
      %vm1654 = vcmask 15360
      %v1656 = vsel %vm1654, 0, %v1651
      %v1658 = vsel %vm1654, 0, %v1653
      %v1659 = vsel %vm1399, %v1656, 0
      %v1661 = vsel %vm1399, %v1658, 0
      %v1664 = vpack.i.b16 %v1647, %v1647
      %v1666 = vlaneseq
      %v1667 = vshrl.u32 %v1666, 7
      %v1668 = vsub.s32 0, %v1667
      %v1669 = vrot.slane %v1664, %v1668
      %v1670 = vmul.bf16 %v1659, %v1669
      %v1671 = vmul.bf16 %v1661, %v1669
      %v1672 = vshrl.u32 %v1647, 16
      %v1673 = vpack.i.b16 %v1672, %v1672
      %v1675 = vlaneseq
      %v1676 = vshrl.u32 %v1675, 7
      %v1677 = vsub.s32 0, %v1676
      %v1678 = vrot.slane %v1673, %v1677
      %1680 = vrot.lane.b32.xlu0 %v1678, 2
      %v1681 = vpop.permute.xlu0 %1680
      %v1683 = vmul.bf16 %v1659, %v1681
      %v1684 = vmul.bf16 %v1661, %v1681
      %1686 = vrot.lane.b32.xlu0 %v1669, 1
      %v1687 = vpop.permute.xlu0 %1686
      %v1689 = vmul.bf16 %v1659, %v1687
      %v1690 = vmul.bf16 %v1661, %v1687
      %1691 = vrot.lane.b32.xlu0 %v1678, 3
      %v1692 = vpop.permute.xlu0 %1691
      %v1694 = vmul.bf16 %v1659, %v1692
      %v1695 = vmul.bf16 %v1661, %v1692
      %1696 = vrot.lane.b32.xlu0 %v1669, 2
      %v1697 = vpop.permute.xlu0 %1696
      %v1699 = vmul.bf16 %v1659, %v1697
      %v1700 = vmul.bf16 %v1661, %v1697
      %1701 = vrot.lane.b32.xlu0 %v1678, 4
      %v1702 = vpop.permute.xlu0 %1701
      %v1704 = vmul.bf16 %v1659, %v1702
      %v1705 = vmul.bf16 %v1661, %v1702
      %1708 = vrot.lane.b32.xlu0 %v1659, 127
      %v1709 = vpop.permute.xlu0 %1708
      %1710 = vrot.lane.b32.xlu0 %v1661, 127
      %v1711 = vpop.permute.xlu0 %1710
      %1716 = vrot.lane.b32.xlu0 %v1683, 126
      %v1717 = vpop.permute.xlu0 %1716
      %1718 = vrot.lane.b32.xlu0 %v1684, 126
      %v1719 = vpop.permute.xlu0 %1718
      %1724 = vrot.lane.b32.xlu0 %v1689, 127
      %v1725 = vpop.permute.xlu0 %1724
      %1726 = vrot.lane.b32.xlu0 %v1690, 127
      %v1727 = vpop.permute.xlu0 %1726
      %1730 = vrot.lane.b32.xlu0 %v1659, 126
      %v1731 = vpop.permute.xlu0 %1730
      %1732 = vrot.lane.b32.xlu0 %v1661, 126
      %v1733 = vpop.permute.xlu0 %1732
      %1738 = vrot.lane.b32.xlu0 %v1694, 125
      %v1739 = vpop.permute.xlu0 %1738
      %1740 = vrot.lane.b32.xlu0 %v1695, 125
      %v1741 = vpop.permute.xlu0 %1740
      %1746 = vrot.lane.b32.xlu0 %v1699, 126
      %v1747 = vpop.permute.xlu0 %1746
      %1748 = vrot.lane.b32.xlu0 %v1700, 126
      %v1749 = vpop.permute.xlu0 %1748
      %1752 = vrot.lane.b32.xlu0 %v1659, 125
      %v1753 = vpop.permute.xlu0 %1752
      %1754 = vrot.lane.b32.xlu0 %v1661, 125
      %v1755 = vpop.permute.xlu0 %1754
      %1760 = vrot.lane.b32.xlu0 %v1704, 124
      %v1761 = vpop.permute.xlu0 %1760
      %1762 = vrot.lane.b32.xlu0 %v1705, 124
      %v1763 = vpop.permute.xlu0 %1762
      %v1766 = vld [vmem:[%s1 + $0x18] sm:$0xff]
      %v1767 = vld [vmem:[%s1 + $0x20] sm:$0xf]
      %v1768 = vld [vmem:[%s1 + $0xc8] sm:$0xff]
      %v1769 = vld [vmem:[%s1 + $0xd0] sm:$0xf]
      %v1770 = vld [vmem:[%s1 + $0x178] sm:$0xff]
      %v1771 = vld [vmem:[%s1 + $0x180] sm:$0xf]
      %v1772 = vld [vmem:[%s1 + $0x228] sm:$0xff]
      %v1773 = vld [vmem:[%s1 + $0x230] sm:$0xf]
      %v1782 = vunpack.c.l.b16 %v1766
      %v1783 = vunpack.c.h.b16 %v1766
      %v1784 = vunpack.c.l.b16 %v1767
      %v1785 = vunpack.c.l.b16 %v1768
      %v1786 = vunpack.c.h.b16 %v1768
      %v1787 = vunpack.c.l.b16 %v1769
      %v1788 = vunpack.c.l.b16 %v1770
      %v1789 = vunpack.c.h.b16 %v1770
      %v1790 = vunpack.c.l.b16 %v1771
      %v1791 = vunpack.c.l.b16 %v1772
      %v1792 = vunpack.c.h.b16 %v1772
      %v1793 = vunpack.c.l.b16 %v1773
      %v1794 = vpack.c.b16 %v1785, %v1782
      %v1795 = vpack.c.b16 %v1786, %v1783
      %v1796 = vpack.c.b16 %v1787, %v1784
      %v1797 = vpack.c.b16 %v1791, %v1788
      %v1798 = vpack.c.b16 %v1792, %v1789
      %v1799 = vpack.c.b16 %v1793, %v1790
      %vm1804 = vcmask 269312
      %v1806 = vsel %vm1804, %v1796, 0
      %v1809 = vsel %vm1804, %v1799, 0
      %1811 = vmatprep.subr.bf16.mxu0 0
      %1812 = vmatpush1.bf16.msra.mxu0 %v1727
      %1813 = vmatprep.subr.bf16.mxu0 0
      %1814 = vmatpush1.bf16.msra.mxu0 %v1725
      %1815 = vmatprep.subr.bf16.mxu0 0
      %1816 = vmatpush1.bf16.msra.mxu0 %v1719
      %1817 = vmatprep.subr.bf16.mxu0 0
      %1818 = vmatpush1.bf16.msra.mxu0 %v1717
      %1819 = vmatprep.subr.bf16.mxu0 0
      %1820 = vmatpush1.bf16.msra.mxu0 %v1711
      %1821 = vmatprep.subr.bf16.mxu0 0
      %1822 = vmatpush1.bf16.msra.mxu0 %v1709
      %1823 = vmatprep.subr.bf16.mxu0 0
      %1824 = vmatpush1.bf16.msra.mxu0 %v1671
      %1825 = vmatprep.subr.bf16.mxu0 0
      %1826 = vmatpush1.bf16.msra.mxu0 %v1670
      %1827 = vmatprep.subr.bf16.mxu0 0
      %1828 = vmatpush2.bf16.msra.mxu0 %v1755
      %1829 = vmatprep.subr.bf16.mxu0 0
      %1830 = vmatpush2.bf16.msra.mxu0 %v1753
      %1831 = vmatprep.subr.bf16.mxu0 0
      %1832 = vmatpush2.bf16.msra.mxu0 %v1749
      %1833 = vmatprep.subr.bf16.mxu0 0
      %1834 = vmatpush2.bf16.msra.mxu0 %v1747
      %1835 = vmatprep.subr.bf16.mxu0 0
      %1836 = vmatpush2.bf16.msra.mxu0 %v1741
      %1837 = vmatprep.subr.bf16.mxu0 0
      %1838 = vmatpush2.bf16.msra.mxu0 %v1739
      %1839 = vmatprep.subr.bf16.mxu0 0
      %1840 = vmatpush2.bf16.msra.mxu0 %v1733
      %1841 = vmatprep.subr.bf16.mxu0 0
      %1842 = vmatpush2.bf16.msra.mxu0 %v1731
      %1843 = vmatprep.mubr.bf16.mxu0 %v1795
      %1844 = vmatmul.mubr.bf16.gmra.mxu0 %v1794
      %v1845 = vpop.f32.mrf.mxu0
      %v1846 = vadd.f32 0.0, %v1845
      %v1847 = vpop.f32.mrf.mxu0
      %v1848 = vpop.f32.mrf.mxu0
      %v1849 = vadd.f32 0.0, %v1848
      %v1850 = vpop.f32.mrf.mxu0
      %1851 = vmatprep.mubr.bf16.mxu0 %v1798
      %1852 = vmatmul.mubr.bf16.gmra.mxu0 %v1797
      %v1853 = vpop.f32.mrf.mxu0
      %v1854 = vadd.f32 0.0, %v1853
      %v1855 = vpop.f32.mrf.mxu0
      %v1856 = vpop.f32.mrf.mxu0
      %v1857 = vadd.f32 0.0, %v1856
      %v1858 = vpop.f32.mrf.mxu0
      %1859 = vdwg.mxu0
      %1860 = vmatprep.subr.bf16.mxu0 0
      %1861 = vmatpush1.bf16.msra.mxu0 0
      %1862 = vmatprep.subr.bf16.mxu0 0
      %1863 = vmatpush1.bf16.msra.mxu0 0
      %1864 = vmatprep.subr.bf16.mxu0 0
      %1865 = vmatpush1.bf16.msra.mxu0 0
      %1866 = vmatprep.subr.bf16.mxu0 0
      %1867 = vmatpush1.bf16.msra.mxu0 0
      %1868 = vmatprep.subr.bf16.mxu0 0
      %1869 = vmatpush1.bf16.msra.mxu0 0
      %1870 = vmatprep.subr.bf16.mxu0 0
      %1871 = vmatpush1.bf16.msra.mxu0 %v1280
      %1872 = vmatprep.subr.bf16.mxu0 0
      %1873 = vmatpush1.bf16.msra.mxu0 %v1763
      %1874 = vmatprep.subr.bf16.mxu0 0
      %1875 = vmatpush1.bf16.msra.mxu0 %v1761
      %1876 = vmatprep.subr.bf16.mxu0 0
      %1877 = vmatpush2.bf16.msra.mxu0 0
      %1878 = vmatprep.subr.bf16.mxu0 0
      %1879 = vmatpush2.bf16.msra.mxu0 0
      %1880 = vmatprep.subr.bf16.mxu0 0
      %1881 = vmatpush2.bf16.msra.mxu0 0
      %1882 = vmatprep.subr.bf16.mxu0 0
      %1883 = vmatpush2.bf16.msra.mxu0 0
      %1884 = vmatprep.subr.bf16.mxu0 0
      %1885 = vmatpush2.bf16.msra.mxu0 0
      %1886 = vmatprep.subr.bf16.mxu0 0
      %1887 = vmatpush2.bf16.msra.mxu0 0
      %1888 = vmatprep.subr.bf16.mxu0 0
      %1889 = vmatpush2.bf16.msra.mxu0 0
      %1890 = vmatprep.subr.bf16.mxu0 0
      %1891 = vmatpush2.bf16.msra.mxu0 0
      %1892 = vmatprep.mubr.bf16.mxu0 0
      %1893 = vmatmul.mubr.bf16.gmra.mxu0 %v1806
      %v1894 = vpop.f32.mrf.mxu0
      %v1895 = vadd.f32 %v1846, %v1894
      %v1896 = vpop.f32.mrf.mxu0
      %v1897 = vpop.f32.mrf.mxu0
      %v1898 = vadd.f32 %v1849, %v1897
      %v1899 = vpop.f32.mrf.mxu0
      %1900 = vmatprep.mubr.bf16.mxu0 0
      %1901 = vmatmul.mubr.bf16.gmra.mxu0 %v1809
      %v1902 = vpop.f32.mrf.mxu0
      %v1903 = vadd.f32 %v1854, %v1902
      %v1904 = vpop.f32.mrf.mxu0
      %v1905 = vpop.f32.mrf.mxu0
      %v1906 = vadd.f32 %v1857, %v1905
      %v1907 = vpop.f32.mrf.mxu0
      %1908 = vdwg.mxu0
      %v1909 = vmax.f32 %v1895, 0.0
      %v1910 = vmax.f32 %v1898, 0.0
      %v1911 = vmax.f32 %v1903, 0.0
      %v1912 = vmax.f32 %v1906, 0.0
      %v1913 = vpack.c.bf16 %v1910, %v1909
      %v1914 = vpack.c.bf16 %v1912, %v1911
      %v1915 = vld [vmem:[%s7] sm:$0x1]
      %vm1916 = vcmask 7168
      %v1918 = vsel %vm1916, %v1913, 0
      %v1921 = vsel %vm1916, %v1914, 0
      %v1924 = vand.u32 %v1915, %v1279
      %1926 = vmatprep.subr.bf16.mxu0 0
      %1927 = vmatpush1.bf16.msra.mxu0 0
      %1928 = vmatprep.subr.bf16.mxu0 0
      %1929 = vmatpush1.bf16.msra.mxu0 0
      %1930 = vmatprep.subr.bf16.mxu0 0
      %1931 = vmatpush1.bf16.msra.mxu0 0
      %1932 = vmatprep.subr.bf16.mxu0 0
      %1933 = vmatpush1.bf16.msra.mxu0 0
      %1934 = vmatprep.subr.bf16.mxu0 0
      %1935 = vmatpush1.bf16.msra.mxu0 0
      %1936 = vmatprep.subr.bf16.mxu0 0
      %1937 = vmatpush1.bf16.msra.mxu0 0
      %1938 = vmatprep.subr.bf16.mxu0 0
      %1939 = vmatpush1.bf16.msra.mxu0 0
      %1940 = vmatprep.subr.bf16.mxu0 0
      %1941 = vmatpush1.bf16.msra.mxu0 %v1924
      %1942 = vmatprep.subr.bf16.mxu0 0
      %1943 = vmatpush2.bf16.msra.mxu0 0
      %1944 = vmatprep.subr.bf16.mxu0 0
      %1945 = vmatpush2.bf16.msra.mxu0 0
      %1946 = vmatprep.subr.bf16.mxu0 0
      %1947 = vmatpush2.bf16.msra.mxu0 0
      %1948 = vmatprep.subr.bf16.mxu0 0
      %1949 = vmatpush2.bf16.msra.mxu0 0
      %1950 = vmatprep.subr.bf16.mxu0 0
      %1951 = vmatpush2.bf16.msra.mxu0 0
      %1952 = vmatprep.subr.bf16.mxu0 0
      %1953 = vmatpush2.bf16.msra.mxu0 0
      %1954 = vmatprep.subr.bf16.mxu0 0
      %1955 = vmatpush2.bf16.msra.mxu0 0
      %1956 = vmatprep.subr.bf16.mxu0 0
      %1957 = vmatpush2.bf16.msra.mxu0 0
      %1958 = vmatprep.mubr.bf16.mxu0 0
      %1959 = vmatmul.mubr.bf16.gmra.mxu0 %v1918
      %v1960 = vpop.f32.mrf.mxu0
      %v1961 = vadd.f32 0.0, %v1960
      %v1962 = vpop.f32.mrf.mxu0
      %v1963 = vpop.f32.mrf.mxu0
      %v1964 = vadd.f32 0.0, %v1963
      %v1965 = vpop.f32.mrf.mxu0
      %1966 = vmatprep.mubr.bf16.mxu0 0
      %1967 = vmatmul.mubr.bf16.gmra.mxu0 %v1921
      %v1968 = vpop.f32.mrf.mxu0
      %v1969 = vadd.f32 0.0, %v1968
      %v1970 = vpop.f32.mrf.mxu0
      %v1971 = vpop.f32.mrf.mxu0
      %v1972 = vadd.f32 0.0, %v1971
      %v1973 = vpop.f32.mrf.mxu0
      %1974 = vdwg.mxu0
      %v1975 = vpack.c.bf16 %v1964, %v1961
      %v1976 = vpack.c.bf16 %v1972, %v1969
      %1981 = vrot.lane.b32.xlu0 %v1975, 3
      %v1982 = vpop.permute.xlu0 %1981
      %1983 = vrot.lane.b32.xlu0 %v1976, 3
      %v1984 = vpop.permute.xlu0 %1983
      %1985 = vrot.lane.b32.xlu0 %v1553, 3
      %v1986 = vpop.permute.xlu0 %1985
      %1987 = vrot.lane.b32.xlu0 %v1554, 3
      %v1988 = vpop.permute.xlu0 %1987
      %v1990 = vsel %vm1399, 0, %v1982
      %v1992 = vsel %vm1399, 0, %v1984
      %v1994 = vsel %vm1399, 0, %v1986
      %v1996 = vsel %vm1399, 0, %v1988
      %v1997 = vsel %vm1402, %v1990, 0
      %v1999 = vsel %vm1402, %v1992, 0
      %v2001 = vsel %vm1402, %v1994, 0
      %v2003 = vsel %vm1402, %v1996, 0
      %v2005 = vmul.bf16 %v1997, %v1411
      %v2006 = vmul.bf16 %v1999, %v1411
      %v2007 = vmul.bf16 %v2001, %v1411
      %v2008 = vmul.bf16 %v2003, %v1411
      %v2009 = vmul.bf16 %v1997, %v1422
      %v2010 = vmul.bf16 %v1999, %v1422
      %v2011 = vmul.bf16 %v2001, %v1422
      %v2012 = vmul.bf16 %v2003, %v1422
      %v2013 = vmul.bf16 %v1997, %v1427
      %v2014 = vmul.bf16 %v1999, %v1427
      %v2015 = vmul.bf16 %v2001, %v1427
      %v2016 = vmul.bf16 %v2003, %v1427
      %v2017 = vmul.bf16 %v1997, %v1431
      %v2018 = vmul.bf16 %v1999, %v1431
      %v2019 = vmul.bf16 %v2001, %v1431
      %v2020 = vmul.bf16 %v2003, %v1431
      %v2021 = vmul.bf16 %v1997, %v1435
      %v2022 = vmul.bf16 %v1999, %v1435
      %v2023 = vmul.bf16 %v2001, %v1435
      %v2024 = vmul.bf16 %v2003, %v1435
      %v2025 = vmul.bf16 %v1997, %v1439
      %v2026 = vmul.bf16 %v1999, %v1439
      %v2027 = vmul.bf16 %v2001, %v1439
      %v2028 = vmul.bf16 %v2003, %v1439
      %2033 = vrot.lane.b32.xlu0 %v1997, 127
      %v2034 = vpop.permute.xlu0 %2033
      %2035 = vrot.lane.b32.xlu0 %v1999, 127
      %v2036 = vpop.permute.xlu0 %2035
      %2037 = vrot.lane.b32.xlu0 %v2001, 127
      %v2038 = vpop.permute.xlu0 %2037
      %2039 = vrot.lane.b32.xlu0 %v2003, 127
      %v2040 = vpop.permute.xlu0 %2039
      %2049 = vrot.lane.b32.xlu0 %v2009, 126
      %v2050 = vpop.permute.xlu0 %2049
      %2051 = vrot.lane.b32.xlu0 %v2010, 126
      %v2052 = vpop.permute.xlu0 %2051
      %2053 = vrot.lane.b32.xlu0 %v2011, 126
      %v2054 = vpop.permute.xlu0 %2053
      %2055 = vrot.lane.b32.xlu0 %v2012, 126
      %v2056 = vpop.permute.xlu0 %2055
      %2065 = vrot.lane.b32.xlu0 %v2013, 126
      %v2066 = vpop.permute.xlu0 %2065
      %2067 = vrot.lane.b32.xlu0 %v2014, 126
      %v2068 = vpop.permute.xlu0 %2067
      %2069 = vrot.lane.b32.xlu0 %v2015, 126
      %v2070 = vpop.permute.xlu0 %2069
      %2071 = vrot.lane.b32.xlu0 %v2016, 126
      %v2072 = vpop.permute.xlu0 %2071
      %2077 = vrot.lane.b32.xlu0 %v1997, 125
      %v2078 = vpop.permute.xlu0 %2077
      %2079 = vrot.lane.b32.xlu0 %v1999, 125
      %v2080 = vpop.permute.xlu0 %2079
      %2081 = vrot.lane.b32.xlu0 %v2001, 125
      %v2082 = vpop.permute.xlu0 %2081
      %2083 = vrot.lane.b32.xlu0 %v2003, 125
      %v2084 = vpop.permute.xlu0 %2083
      %2093 = vrot.lane.b32.xlu0 %v2017, 124
      %v2094 = vpop.permute.xlu0 %2093
      %2095 = vrot.lane.b32.xlu0 %v2018, 124
      %v2096 = vpop.permute.xlu0 %2095
      %2097 = vrot.lane.b32.xlu0 %v2019, 124
      %v2098 = vpop.permute.xlu0 %2097
      %2099 = vrot.lane.b32.xlu0 %v2020, 124
      %v2100 = vpop.permute.xlu0 %2099
      %2109 = vrot.lane.b32.xlu0 %v2021, 124
      %v2110 = vpop.permute.xlu0 %2109
      %2111 = vrot.lane.b32.xlu0 %v2022, 124
      %v2112 = vpop.permute.xlu0 %2111
      %2113 = vrot.lane.b32.xlu0 %v2023, 124
      %v2114 = vpop.permute.xlu0 %2113
      %2115 = vrot.lane.b32.xlu0 %v2024, 124
      %v2116 = vpop.permute.xlu0 %2115
      %2121 = vrot.lane.b32.xlu0 %v1997, 123
      %v2122 = vpop.permute.xlu0 %2121
      %2123 = vrot.lane.b32.xlu0 %v1999, 123
      %v2124 = vpop.permute.xlu0 %2123
      %2125 = vrot.lane.b32.xlu0 %v2001, 123
      %v2126 = vpop.permute.xlu0 %2125
      %2127 = vrot.lane.b32.xlu0 %v2003, 123
      %v2128 = vpop.permute.xlu0 %2127
      %2137 = vrot.lane.b32.xlu0 %v2025, 122
      %v2138 = vpop.permute.xlu0 %2137
      %2139 = vrot.lane.b32.xlu0 %v2026, 122
      %v2140 = vpop.permute.xlu0 %2139
      %2141 = vrot.lane.b32.xlu0 %v2027, 122
      %v2142 = vpop.permute.xlu0 %2141
      %2143 = vrot.lane.b32.xlu0 %v2028, 122
      %v2144 = vpop.permute.xlu0 %2143
      %v2149 = vld [vmem:[%s1 + $0x24] sm:$0xff]
      %v2150 = vld [vmem:[%s1 + $0x2c] sm:$0xff]
      %v2151 = vld [vmem:[%s1 + $0x34] sm:$0xf]
      %v2152 = vld [vmem:[%s1 + $0xd4] sm:$0xff]
      %v2153 = vld [vmem:[%s1 + $0xdc] sm:$0xff]
      %v2154 = vld [vmem:[%s1 + $0xe4] sm:$0xf]
      %v2155 = vld [vmem:[%s1 + $0x184] sm:$0xff]
      %v2156 = vld [vmem:[%s1 + $0x18c] sm:$0xff]
      %v2157 = vld [vmem:[%s1 + $0x194] sm:$0xf]
      %v2158 = vld [vmem:[%s1 + $0x234] sm:$0xff]
      %v2159 = vld [vmem:[%s1 + $0x23c] sm:$0xff]
      %v2160 = vld [vmem:[%s1 + $0x244] sm:$0xf]
      %v2173 = vunpack.c.l.b16 %v2149
      %v2174 = vunpack.c.h.b16 %v2149
      %v2175 = vunpack.c.l.b16 %v2150
      %v2176 = vunpack.c.h.b16 %v2150
      %v2177 = vunpack.c.l.b16 %v2151
      %v2178 = vunpack.c.l.b16 %v2152
      %v2179 = vunpack.c.h.b16 %v2152
      %v2180 = vunpack.c.l.b16 %v2153
      %v2181 = vunpack.c.h.b16 %v2153
      %v2182 = vunpack.c.l.b16 %v2154
      %v2183 = vunpack.c.l.b16 %v2155
      %v2184 = vunpack.c.h.b16 %v2155
      %v2185 = vunpack.c.l.b16 %v2156
      %v2186 = vunpack.c.h.b16 %v2156
      %v2187 = vunpack.c.l.b16 %v2157
      %v2188 = vunpack.c.l.b16 %v2158
      %v2189 = vunpack.c.h.b16 %v2158
      %v2190 = vunpack.c.l.b16 %v2159
      %v2191 = vunpack.c.h.b16 %v2159
      %v2192 = vunpack.c.l.b16 %v2160
      %v2193 = vpack.c.b16 %v2178, %v2173
      %v2194 = vpack.c.b16 %v2179, %v2174
      %v2195 = vpack.c.b16 %v2180, %v2175
      %v2196 = vpack.c.b16 %v2181, %v2176
      %v2197 = vpack.c.b16 %v2182, %v2177
      %v2198 = vpack.c.b16 %v2188, %v2183
      %v2199 = vpack.c.b16 %v2189, %v2184
      %v2200 = vpack.c.b16 %v2190, %v2185
      %v2201 = vpack.c.b16 %v2191, %v2186
      %v2202 = vpack.c.b16 %v2192, %v2187
      %vm2211 = vcmask 531456
      %v2213 = vsel %vm2211, %v2197, 0
      %v2216 = vsel %vm2211, %v2202, 0
      %2218 = vmatprep.subr.bf16.mxu0 0
      %2219 = vmatpush1.bf16.msra.mxu0 %v2040
      %2220 = vmatprep.subr.bf16.mxu0 0
      %2221 = vmatpush1.bf16.msra.mxu0 %v2038
      %2222 = vmatprep.subr.bf16.mxu0 0
      %2223 = vmatpush1.bf16.msra.mxu0 %v2036
      %2224 = vmatprep.subr.bf16.mxu0 0
      %2225 = vmatpush1.bf16.msra.mxu0 %v2034
      %2226 = vmatprep.subr.bf16.mxu0 0
      %2227 = vmatpush1.bf16.msra.mxu0 %v2008
      %2228 = vmatprep.subr.bf16.mxu0 0
      %2229 = vmatpush1.bf16.msra.mxu0 %v2007
      %2230 = vmatprep.subr.bf16.mxu0 0
      %2231 = vmatpush1.bf16.msra.mxu0 %v2006
      %2232 = vmatprep.subr.bf16.mxu0 0
      %2233 = vmatpush1.bf16.msra.mxu0 %v2005
      %2234 = vmatprep.subr.bf16.mxu0 0
      %2235 = vmatpush2.bf16.msra.mxu0 %v2072
      %2236 = vmatprep.subr.bf16.mxu0 0
      %2237 = vmatpush2.bf16.msra.mxu0 %v2070
      %2238 = vmatprep.subr.bf16.mxu0 0
      %2239 = vmatpush2.bf16.msra.mxu0 %v2068
      %2240 = vmatprep.subr.bf16.mxu0 0
      %2241 = vmatpush2.bf16.msra.mxu0 %v2066
      %2242 = vmatprep.subr.bf16.mxu0 0
      %2243 = vmatpush2.bf16.msra.mxu0 %v2056
      %2244 = vmatprep.subr.bf16.mxu0 0
      %2245 = vmatpush2.bf16.msra.mxu0 %v2054
      %2246 = vmatprep.subr.bf16.mxu0 0
      %2247 = vmatpush2.bf16.msra.mxu0 %v2052
      %2248 = vmatprep.subr.bf16.mxu0 0
      %2249 = vmatpush2.bf16.msra.mxu0 %v2050
      %2250 = vmatprep.mubr.bf16.mxu0 %v2194
      %2251 = vmatmul.mubr.bf16.gmra.mxu0 %v2193
      %v2252 = vpop.f32.mrf.mxu0
      %v2253 = vadd.f32 0.0, %v2252
      %v2254 = vpop.f32.mrf.mxu0
      %v2255 = vpop.f32.mrf.mxu0
      %v2256 = vadd.f32 0.0, %v2255
      %v2257 = vpop.f32.mrf.mxu0
      %2258 = vmatprep.mubr.bf16.mxu0 %v2199
      %2259 = vmatmul.mubr.bf16.gmra.mxu0 %v2198
      %v2260 = vpop.f32.mrf.mxu0
      %v2261 = vadd.f32 0.0, %v2260
      %v2262 = vpop.f32.mrf.mxu0
      %v2263 = vpop.f32.mrf.mxu0
      %v2264 = vadd.f32 0.0, %v2263
      %v2265 = vpop.f32.mrf.mxu0
      %2266 = vdwg.mxu0
      %2267 = vmatprep.subr.bf16.mxu0 0
      %2268 = vmatpush1.bf16.msra.mxu0 %v2100
      %2269 = vmatprep.subr.bf16.mxu0 0
      %2270 = vmatpush1.bf16.msra.mxu0 %v2098
      %2271 = vmatprep.subr.bf16.mxu0 0
      %2272 = vmatpush1.bf16.msra.mxu0 %v2096
      %2273 = vmatprep.subr.bf16.mxu0 0
      %2274 = vmatpush1.bf16.msra.mxu0 %v2094
      %2275 = vmatprep.subr.bf16.mxu0 0
      %2276 = vmatpush1.bf16.msra.mxu0 %v2084
      %2277 = vmatprep.subr.bf16.mxu0 0
      %2278 = vmatpush1.bf16.msra.mxu0 %v2082
      %2279 = vmatprep.subr.bf16.mxu0 0
      %2280 = vmatpush1.bf16.msra.mxu0 %v2080
      %2281 = vmatprep.subr.bf16.mxu0 0
      %2282 = vmatpush1.bf16.msra.mxu0 %v2078
      %2283 = vmatprep.subr.bf16.mxu0 0
      %2284 = vmatpush2.bf16.msra.mxu0 %v2128
      %2285 = vmatprep.subr.bf16.mxu0 0
      %2286 = vmatpush2.bf16.msra.mxu0 %v2126
      %2287 = vmatprep.subr.bf16.mxu0 0
      %2288 = vmatpush2.bf16.msra.mxu0 %v2124
      %2289 = vmatprep.subr.bf16.mxu0 0
      %2290 = vmatpush2.bf16.msra.mxu0 %v2122
      %2291 = vmatprep.subr.bf16.mxu0 0
      %2292 = vmatpush2.bf16.msra.mxu0 %v2116
      %2293 = vmatprep.subr.bf16.mxu0 0
      %2294 = vmatpush2.bf16.msra.mxu0 %v2114
      %2295 = vmatprep.subr.bf16.mxu0 0
      %2296 = vmatpush2.bf16.msra.mxu0 %v2112
      %2297 = vmatprep.subr.bf16.mxu0 0
      %2298 = vmatpush2.bf16.msra.mxu0 %v2110
      %2299 = vmatprep.mubr.bf16.mxu0 %v2196
      %2300 = vmatmul.mubr.bf16.gmra.mxu0 %v2195
      %v2301 = vpop.f32.mrf.mxu0
      %v2302 = vadd.f32 %v2253, %v2301
      %v2303 = vpop.f32.mrf.mxu0
      %v2304 = vpop.f32.mrf.mxu0
      %v2305 = vadd.f32 %v2256, %v2304
      %v2306 = vpop.f32.mrf.mxu0
      %2307 = vmatprep.mubr.bf16.mxu0 %v2201
      %2308 = vmatmul.mubr.bf16.gmra.mxu0 %v2200
      %v2309 = vpop.f32.mrf.mxu0
      %v2310 = vadd.f32 %v2261, %v2309
      %v2311 = vpop.f32.mrf.mxu0
      %v2312 = vpop.f32.mrf.mxu0
      %v2313 = vadd.f32 %v2264, %v2312
      %v2314 = vpop.f32.mrf.mxu0
      %2315 = vdwg.mxu0
      %2316 = vmatprep.subr.bf16.mxu0 0
      %2317 = vmatpush1.bf16.msra.mxu0 0
      %2318 = vmatprep.subr.bf16.mxu0 0
      %2319 = vmatpush1.bf16.msra.mxu0 0
      %2320 = vmatprep.subr.bf16.mxu0 0
      %2321 = vmatpush1.bf16.msra.mxu0 0
      %2322 = vmatprep.subr.bf16.mxu0 0
      %2323 = vmatpush1.bf16.msra.mxu0 %v1280
      %2324 = vmatprep.subr.bf16.mxu0 0
      %2325 = vmatpush1.bf16.msra.mxu0 %v2144
      %2326 = vmatprep.subr.bf16.mxu0 0
      %2327 = vmatpush1.bf16.msra.mxu0 %v2142
      %2328 = vmatprep.subr.bf16.mxu0 0
      %2329 = vmatpush1.bf16.msra.mxu0 %v2140
      %2330 = vmatprep.subr.bf16.mxu0 0
      %2331 = vmatpush1.bf16.msra.mxu0 %v2138
      %2332 = vmatprep.subr.bf16.mxu0 0
      %2333 = vmatpush2.bf16.msra.mxu0 0
      %2334 = vmatprep.subr.bf16.mxu0 0
      %2335 = vmatpush2.bf16.msra.mxu0 0
      %2336 = vmatprep.subr.bf16.mxu0 0
      %2337 = vmatpush2.bf16.msra.mxu0 0
      %2338 = vmatprep.subr.bf16.mxu0 0
      %2339 = vmatpush2.bf16.msra.mxu0 0
      %2340 = vmatprep.subr.bf16.mxu0 0
      %2341 = vmatpush2.bf16.msra.mxu0 0
      %2342 = vmatprep.subr.bf16.mxu0 0
      %2343 = vmatpush2.bf16.msra.mxu0 0
      %2344 = vmatprep.subr.bf16.mxu0 0
      %2345 = vmatpush2.bf16.msra.mxu0 0
      %2346 = vmatprep.subr.bf16.mxu0 0
      %2347 = vmatpush2.bf16.msra.mxu0 0
      %2348 = vmatprep.mubr.bf16.mxu0 0
      %2349 = vmatmul.mubr.bf16.gmra.mxu0 %v2213
      %v2350 = vpop.f32.mrf.mxu0
      %v2351 = vadd.f32 %v2302, %v2350
      %v2352 = vpop.f32.mrf.mxu0
      %v2353 = vpop.f32.mrf.mxu0
      %v2354 = vadd.f32 %v2305, %v2353
      %v2355 = vpop.f32.mrf.mxu0
      %2356 = vmatprep.mubr.bf16.mxu0 0
      %2357 = vmatmul.mubr.bf16.gmra.mxu0 %v2216
      %v2358 = vpop.f32.mrf.mxu0
      %v2359 = vadd.f32 %v2310, %v2358
      %v2360 = vpop.f32.mrf.mxu0
      %v2361 = vpop.f32.mrf.mxu0
      %v2362 = vadd.f32 %v2313, %v2361
      %v2363 = vpop.f32.mrf.mxu0
      %2364 = vdwg.mxu0
      %v2365 = vmax.f32 %v2351, 0.0
      %v2366 = vmax.f32 %v2354, 0.0
      %v2367 = vmax.f32 %v2359, 0.0
      %v2368 = vmax.f32 %v2362, 0.0
      %v2369 = vpack.c.bf16 %v2366, %v2365
      %v2370 = vpack.c.bf16 %v2368, %v2367
      %v2371 = vld [vmem:[%s8] sm:$0x3]
      %v2373 = vsel %vm1556, %v2369, 0
      %v2376 = vsel %vm1556, %v2370, 0
      %v2379 = vsel %vm639, %v2371, 0
      %2381 = vmatprep.subr.bf16.mxu0 0
      %2382 = vmatpush1.bf16.msra.mxu0 0
      %2383 = vmatprep.subr.bf16.mxu0 0
      %2384 = vmatpush1.bf16.msra.mxu0 0
      %2385 = vmatprep.subr.bf16.mxu0 0
      %2386 = vmatpush1.bf16.msra.mxu0 0
      %2387 = vmatprep.subr.bf16.mxu0 0
      %2388 = vmatpush1.bf16.msra.mxu0 0
      %2389 = vmatprep.subr.bf16.mxu0 0
      %2390 = vmatpush1.bf16.msra.mxu0 0
      %2391 = vmatprep.subr.bf16.mxu0 0
      %2392 = vmatpush1.bf16.msra.mxu0 0
      %2393 = vmatprep.subr.bf16.mxu0 0
      %2394 = vmatpush1.bf16.msra.mxu0 0
      %2395 = vmatprep.subr.bf16.mxu0 0
      %2396 = vmatpush1.bf16.msra.mxu0 %v2379
      %2397 = vmatprep.subr.bf16.mxu0 0
      %2398 = vmatpush2.bf16.msra.mxu0 0
      %2399 = vmatprep.subr.bf16.mxu0 0
      %2400 = vmatpush2.bf16.msra.mxu0 0
      %2401 = vmatprep.subr.bf16.mxu0 0
      %2402 = vmatpush2.bf16.msra.mxu0 0
      %2403 = vmatprep.subr.bf16.mxu0 0
      %2404 = vmatpush2.bf16.msra.mxu0 0
      %2405 = vmatprep.subr.bf16.mxu0 0
      %2406 = vmatpush2.bf16.msra.mxu0 0
      %2407 = vmatprep.subr.bf16.mxu0 0
      %2408 = vmatpush2.bf16.msra.mxu0 0
      %2409 = vmatprep.subr.bf16.mxu0 0
      %2410 = vmatpush2.bf16.msra.mxu0 0
      %2411 = vmatprep.subr.bf16.mxu0 0
      %2412 = vmatpush2.bf16.msra.mxu0 0
      %2413 = vmatprep.mubr.bf16.mxu0 0
      %2414 = vmatmul.mubr.bf16.gmra.mxu0 %v2373
      %v2415 = vpop.f32.mrf.mxu0
      %v2416 = vadd.f32 0.0, %v2415
      %v2417 = vpop.f32.mrf.mxu0
      %v2418 = vpop.f32.mrf.mxu0
      %v2419 = vadd.f32 0.0, %v2418
      %v2420 = vpop.f32.mrf.mxu0
      %2421 = vmatprep.mubr.bf16.mxu0 0
      %2422 = vmatmul.mubr.bf16.gmra.mxu0 %v2376
      %v2423 = vpop.f32.mrf.mxu0
      %v2424 = vadd.f32 0.0, %v2423
      %v2425 = vpop.f32.mrf.mxu0
      %v2426 = vpop.f32.mrf.mxu0
      %v2427 = vadd.f32 0.0, %v2426
      %v2428 = vpop.f32.mrf.mxu0
      %2429 = vdwg.mxu0
      %v2430 = vpack.c.bf16 %v2419, %v2416
      %v2431 = vpack.c.bf16 %v2427, %v2424
      %2435 = vrot.lane.b32.xlu0 %v2430, 5
      %v2436 = vpop.permute.xlu0 %2435
      %2437 = vrot.lane.b32.xlu0 %v2431, 5
      %v2438 = vpop.permute.xlu0 %2437
      %2439 = vrot.lane.b32.xlu0 %v1325, 5
      %v2440 = vpop.permute.xlu0 %2439
      %v2442 = vsel %vm1190, 0, %v2436
      %v2444 = vsel %vm1190, 0, %v2438
      %v2446 = vsel %vm1190, 0, %v2440
      %v2447 = vsel %vm1193, %v2442, 0
      %v2449 = vsel %vm1193, %v2444, 0
      %v2451 = vsel %vm1193, %v2446, 0
      %v2453 = vmul.bf16 %v2447, %v1202
      %v2454 = vmul.bf16 %v2449, %v1202
      %v2455 = vmul.bf16 %v2451, %v1202
      %v2456 = vmul.bf16 %v2447, %v1213
      %v2457 = vmul.bf16 %v2449, %v1213
      %v2458 = vmul.bf16 %v2451, %v1213
      %v2459 = vmul.bf16 %v2447, %v1218
      %v2460 = vmul.bf16 %v2449, %v1218
      %v2461 = vmul.bf16 %v2451, %v1218
      %v2462 = vmul.bf16 %v2447, %v1222
      %v2463 = vmul.bf16 %v2449, %v1222
      %v2464 = vmul.bf16 %v2451, %v1222
      %v2465 = vmul.bf16 %v2447, %v1226
      %v2466 = vmul.bf16 %v2449, %v1226
      %v2467 = vmul.bf16 %v2451, %v1226
      %v2468 = vmul.bf16 %v2447, %v1230
      %v2469 = vmul.bf16 %v2449, %v1230
      %v2470 = vmul.bf16 %v2451, %v1230
      %2474 = vrot.lane.b32.xlu0 %v2447, 127
      %v2475 = vpop.permute.xlu0 %2474
      %2476 = vrot.lane.b32.xlu0 %v2449, 127
      %v2477 = vpop.permute.xlu0 %2476
      %2478 = vrot.lane.b32.xlu0 %v2451, 127
      %v2479 = vpop.permute.xlu0 %2478
      %2486 = vrot.lane.b32.xlu0 %v2456, 126
      %v2487 = vpop.permute.xlu0 %2486
      %2488 = vrot.lane.b32.xlu0 %v2457, 126
      %v2489 = vpop.permute.xlu0 %2488
      %2490 = vrot.lane.b32.xlu0 %v2458, 126
      %v2491 = vpop.permute.xlu0 %2490
      %2498 = vrot.lane.b32.xlu0 %v2459, 124
      %v2499 = vpop.permute.xlu0 %2498
      %2500 = vrot.lane.b32.xlu0 %v2460, 124
      %v2501 = vpop.permute.xlu0 %2500
      %2502 = vrot.lane.b32.xlu0 %v2461, 124
      %v2503 = vpop.permute.xlu0 %2502
      %2507 = vrot.lane.b32.xlu0 %v2447, 123
      %v2508 = vpop.permute.xlu0 %2507
      %2509 = vrot.lane.b32.xlu0 %v2449, 123
      %v2510 = vpop.permute.xlu0 %2509
      %2511 = vrot.lane.b32.xlu0 %v2451, 123
      %v2512 = vpop.permute.xlu0 %2511
      %2519 = vrot.lane.b32.xlu0 %v2462, 122
      %v2520 = vpop.permute.xlu0 %2519
      %2521 = vrot.lane.b32.xlu0 %v2463, 122
      %v2522 = vpop.permute.xlu0 %2521
      %2523 = vrot.lane.b32.xlu0 %v2464, 122
      %v2524 = vpop.permute.xlu0 %2523
      %2531 = vrot.lane.b32.xlu0 %v2465, 120
      %v2532 = vpop.permute.xlu0 %2531
      %2533 = vrot.lane.b32.xlu0 %v2466, 120
      %v2534 = vpop.permute.xlu0 %2533
      %2535 = vrot.lane.b32.xlu0 %v2467, 120
      %v2536 = vpop.permute.xlu0 %2535
      %2540 = vrot.lane.b32.xlu0 %v2447, 119
      %v2541 = vpop.permute.xlu0 %2540
      %2542 = vrot.lane.b32.xlu0 %v2449, 119
      %v2543 = vpop.permute.xlu0 %2542
      %2544 = vrot.lane.b32.xlu0 %v2451, 119
      %v2545 = vpop.permute.xlu0 %2544
      %2552 = vrot.lane.b32.xlu0 %v2468, 118
      %v2553 = vpop.permute.xlu0 %2552
      %2554 = vrot.lane.b32.xlu0 %v2469, 118
      %v2555 = vpop.permute.xlu0 %2554
      %2556 = vrot.lane.b32.xlu0 %v2470, 118
      %v2557 = vpop.permute.xlu0 %2556
      %v2561 = vld [vmem:[%s1 + $0x38] sm:$0xff]
      %v2562 = vld [vmem:[%s1 + $0x40] sm:$0xff]
      %v2563 = vld [vmem:[%s1 + $0xe8] sm:$0xff]
      %v2564 = vld [vmem:[%s1 + $0xf0] sm:$0xff]
      %v2569 = vunpack.c.l.b16 %v2561
      %v2570 = vunpack.c.h.b16 %v2561
      %v2571 = vunpack.c.l.b16 %v2562
      %v2572 = vunpack.c.h.b16 %v2562
      %v2573 = vunpack.c.l.b16 %v2563
      %v2574 = vunpack.c.h.b16 %v2563
      %v2575 = vunpack.c.l.b16 %v2564
      %v2576 = vunpack.c.h.b16 %v2564
      %v2577 = vpack.c.b16 %v2573, %v2569
      %v2578 = vpack.c.b16 %v2574, %v2570
      %v2579 = vpack.c.b16 %v2575, %v2571
      %v2580 = vpack.c.b16 %v2576, %v2572
      %vm2584 = vcmask 400384
      %v2586 = vsel %vm2584, %v2580, 0
      %2588 = vmatprep.subr.bf16.mxu0 0
      %2589 = vmatpush1.bf16.msra.mxu0 %v2489
      %2590 = vmatprep.subr.bf16.mxu0 0
      %2591 = vmatpush1.bf16.msra.mxu0 %v2487
      %2592 = vmatprep.subr.bf16.mxu0 0
      %2593 = vmatpush1.bf16.msra.mxu0 %v2479
      %2594 = vmatprep.subr.bf16.mxu0 0
      %2595 = vmatpush1.bf16.msra.mxu0 %v2477
      %2596 = vmatprep.subr.bf16.mxu0 0
      %2597 = vmatpush1.bf16.msra.mxu0 %v2475
      %2598 = vmatprep.subr.bf16.mxu0 0
      %2599 = vmatpush1.bf16.msra.mxu0 %v2455
      %2600 = vmatprep.subr.bf16.mxu0 0
      %2601 = vmatpush1.bf16.msra.mxu0 %v2454
      %2602 = vmatprep.subr.bf16.mxu0 0
      %2603 = vmatpush1.bf16.msra.mxu0 %v2453
      %2604 = vmatprep.subr.bf16.mxu0 0
      %2605 = vmatpush2.bf16.msra.mxu0 %v2520
      %2606 = vmatprep.subr.bf16.mxu0 0
      %2607 = vmatpush2.bf16.msra.mxu0 %v2512
      %2608 = vmatprep.subr.bf16.mxu0 0
      %2609 = vmatpush2.bf16.msra.mxu0 %v2510
      %2610 = vmatprep.subr.bf16.mxu0 0
      %2611 = vmatpush2.bf16.msra.mxu0 %v2508
      %2612 = vmatprep.subr.bf16.mxu0 0
      %2613 = vmatpush2.bf16.msra.mxu0 %v2503
      %2614 = vmatprep.subr.bf16.mxu0 0
      %2615 = vmatpush2.bf16.msra.mxu0 %v2501
      %2616 = vmatprep.subr.bf16.mxu0 0
      %2617 = vmatpush2.bf16.msra.mxu0 %v2499
      %2618 = vmatprep.subr.bf16.mxu0 0
      %2619 = vmatpush2.bf16.msra.mxu0 %v2491
      %2620 = vmatprep.mubr.bf16.mxu0 %v2578
      %2621 = vmatmul.mubr.bf16.gmra.mxu0 %v2577
      %v2622 = vpop.f32.mrf.mxu0
      %v2623 = vadd.f32 0.0, %v2622
      %v2624 = vpop.f32.mrf.mxu0
      %v2625 = vpop.f32.mrf.mxu0
      %v2626 = vadd.f32 0.0, %v2625
      %v2627 = vpop.f32.mrf.mxu0
      %2628 = vdwg.mxu0
      %2629 = vmatprep.subr.bf16.mxu0 0
      %2630 = vmatpush1.bf16.msra.mxu0 %v2545
      %2631 = vmatprep.subr.bf16.mxu0 0
      %2632 = vmatpush1.bf16.msra.mxu0 %v2543
      %2633 = vmatprep.subr.bf16.mxu0 0
      %2634 = vmatpush1.bf16.msra.mxu0 %v2541
      %2635 = vmatprep.subr.bf16.mxu0 0
      %2636 = vmatpush1.bf16.msra.mxu0 %v2536
      %2637 = vmatprep.subr.bf16.mxu0 0
      %2638 = vmatpush1.bf16.msra.mxu0 %v2534
      %2639 = vmatprep.subr.bf16.mxu0 0
      %2640 = vmatpush1.bf16.msra.mxu0 %v2532
      %2641 = vmatprep.subr.bf16.mxu0 0
      %2642 = vmatpush1.bf16.msra.mxu0 %v2524
      %2643 = vmatprep.subr.bf16.mxu0 0
      %2644 = vmatpush1.bf16.msra.mxu0 %v2522
      %2645 = vmatprep.subr.bf16.mxu0 0
      %2646 = vmatpush2.bf16.msra.mxu0 0
      %2647 = vmatprep.subr.bf16.mxu0 0
      %2648 = vmatpush2.bf16.msra.mxu0 0
      %2649 = vmatprep.subr.bf16.mxu0 0
      %2650 = vmatpush2.bf16.msra.mxu0 0
      %2651 = vmatprep.subr.bf16.mxu0 0
      %2652 = vmatpush2.bf16.msra.mxu0 0
      %2653 = vmatprep.subr.bf16.mxu0 0
      %2654 = vmatpush2.bf16.msra.mxu0 %v1280
      %2655 = vmatprep.subr.bf16.mxu0 0
      %2656 = vmatpush2.bf16.msra.mxu0 %v2557
      %2657 = vmatprep.subr.bf16.mxu0 0
      %2658 = vmatpush2.bf16.msra.mxu0 %v2555
      %2659 = vmatprep.subr.bf16.mxu0 0
      %2660 = vmatpush2.bf16.msra.mxu0 %v2553
      %2661 = vmatprep.mubr.bf16.mxu0 %v2586
      %2662 = vmatmul.mubr.bf16.gmra.mxu0 %v2579
      %v2663 = vpop.f32.mrf.mxu0
      %v2664 = vadd.f32 %v2623, %v2663
      %v2665 = vpop.f32.mrf.mxu0
      %v2666 = vpop.f32.mrf.mxu0
      %v2667 = vadd.f32 %v2626, %v2666
      %v2668 = vpop.f32.mrf.mxu0
      %2669 = vdwg.mxu0
      %v2670 = vmax.f32 %v2664, 0.0
      %v2671 = vmax.f32 %v2667, 0.0
      %v2672 = vpack.c.bf16 %v2671, %v2670
      %v2673 = vld [vmem:[%s9] sm:$0xf]
      %v2674 = vld [vmem:[%s9 + $0x4] sm:$0xf]
      %v2677 = vunpack.c.l.b16 %v2673
      %v2678 = vunpack.c.l.b16 %v2674
      %v2679 = vpack.c.b16 %v2678, %v2677
      %v2682 = vsel %vm1328, %v2672, 0
      %2684 = vmatprep.subr.bf16.mxu0 0
      %2685 = vmatpush1.bf16.msra.mxu0 0
      %2686 = vmatprep.subr.bf16.mxu0 0
      %2687 = vmatpush1.bf16.msra.mxu0 0
      %2688 = vmatprep.subr.bf16.mxu0 0
      %2689 = vmatpush1.bf16.msra.mxu0 0
      %2690 = vmatprep.subr.bf16.mxu0 0
      %2691 = vmatpush1.bf16.msra.mxu0 0
      %2692 = vmatprep.subr.bf16.mxu0 0
      %2693 = vmatpush1.bf16.msra.mxu0 0
      %2694 = vmatprep.subr.bf16.mxu0 0
      %2695 = vmatpush1.bf16.msra.mxu0 0
      %2696 = vmatprep.subr.bf16.mxu0 0
      %2697 = vmatpush1.bf16.msra.mxu0 0
      %2698 = vmatprep.subr.bf16.mxu0 0
      %2699 = vmatpush1.bf16.msra.mxu0 %v2679
      %2700 = vmatprep.subr.bf16.mxu0 0
      %2701 = vmatpush2.bf16.msra.mxu0 0
      %2702 = vmatprep.subr.bf16.mxu0 0
      %2703 = vmatpush2.bf16.msra.mxu0 0
      %2704 = vmatprep.subr.bf16.mxu0 0
      %2705 = vmatpush2.bf16.msra.mxu0 0
      %2706 = vmatprep.subr.bf16.mxu0 0
      %2707 = vmatpush2.bf16.msra.mxu0 0
      %2708 = vmatprep.subr.bf16.mxu0 0
      %2709 = vmatpush2.bf16.msra.mxu0 0
      %2710 = vmatprep.subr.bf16.mxu0 0
      %2711 = vmatpush2.bf16.msra.mxu0 0
      %2712 = vmatprep.subr.bf16.mxu0 0
      %2713 = vmatpush2.bf16.msra.mxu0 0
      %2714 = vmatprep.subr.bf16.mxu0 0
      %2715 = vmatpush2.bf16.msra.mxu0 0
      %2716 = vmatprep.mubr.bf16.mxu0 0
      %2717 = vmatmul.mubr.bf16.gmra.mxu0 %v2682
      %v2718 = vpop.f32.mrf.mxu0
      %v2719 = vadd.f32 0.0, %v2718
      %v2720 = vpop.f32.mrf.mxu0
      %v2721 = vpop.f32.mrf.mxu0
      %v2722 = vadd.f32 0.0, %v2721
      %v2723 = vpop.f32.mrf.mxu0
      %2724 = vdwg.mxu0
      %v2725 = vpack.c.bf16 %v2722, %v2719
      %2728 = vrot.lane.b32.xlu0 %v2725, 9
      %v2729 = vpop.permute.xlu0 %2728
      %2730 = vrot.lane.b32.xlu0 %v1092, 9
      %v2731 = vpop.permute.xlu0 %2730
      %v2733 = vsel %vm948, 0, %v2729
      %v2735 = vsel %vm948, 0, %v2731
      %v2736 = vsel %vm951, %v2733, 0
      %v2738 = vsel %vm951, %v2735, 0
      %v2740 = vmul.bf16 %v2736, %v960
      %v2741 = vmul.bf16 %v2738, %v960
      %v2742 = vmul.bf16 %v2736, %v971
      %v2743 = vmul.bf16 %v2738, %v971
      %v2744 = vmul.bf16 %v2736, %v976
      %v2745 = vmul.bf16 %v2738, %v976
      %v2746 = vmul.bf16 %v2736, %v980
      %v2747 = vmul.bf16 %v2738, %v980
      %v2748 = vmul.bf16 %v2736, %v984
      %v2749 = vmul.bf16 %v2738, %v984
      %v2750 = vmul.bf16 %v2736, %v988
      %v2751 = vmul.bf16 %v2738, %v988
      %2754 = vrot.lane.b32.xlu0 %v2736, 127
      %v2755 = vpop.permute.xlu0 %2754
      %2756 = vrot.lane.b32.xlu0 %v2738, 127
      %v2757 = vpop.permute.xlu0 %2756
      %2762 = vrot.lane.b32.xlu0 %v2742, 126
      %v2763 = vpop.permute.xlu0 %2762
      %2764 = vrot.lane.b32.xlu0 %v2743, 126
      %v2765 = vpop.permute.xlu0 %2764
      %2770 = vrot.lane.b32.xlu0 %v2744, 120
      %v2771 = vpop.permute.xlu0 %2770
      %2772 = vrot.lane.b32.xlu0 %v2745, 120
      %v2773 = vpop.permute.xlu0 %2772
      %2776 = vrot.lane.b32.xlu0 %v2736, 119
      %v2777 = vpop.permute.xlu0 %2776
      %2778 = vrot.lane.b32.xlu0 %v2738, 119
      %v2779 = vpop.permute.xlu0 %2778
      %2784 = vrot.lane.b32.xlu0 %v2746, 118
      %v2785 = vpop.permute.xlu0 %2784
      %2786 = vrot.lane.b32.xlu0 %v2747, 118
      %v2787 = vpop.permute.xlu0 %2786
      %2792 = vrot.lane.b32.xlu0 %v2748, 112
      %v2793 = vpop.permute.xlu0 %2792
      %2794 = vrot.lane.b32.xlu0 %v2749, 112
      %v2795 = vpop.permute.xlu0 %2794
      %2798 = vrot.lane.b32.xlu0 %v2736, 111
      %v2799 = vpop.permute.xlu0 %2798
      %2800 = vrot.lane.b32.xlu0 %v2738, 111
      %v2801 = vpop.permute.xlu0 %2800
      %2806 = vrot.lane.b32.xlu0 %v2750, 110
      %v2807 = vpop.permute.xlu0 %2806
      %2808 = vrot.lane.b32.xlu0 %v2751, 110
      %v2809 = vpop.permute.xlu0 %2808
      %v2812 = vld [vmem:[%s1 + $0x48] sm:$0xff]
      %v2813 = vld [vmem:[%s1 + $0x50] sm:$0xf]
      %v2814 = vld [vmem:[%s1 + $0xf8] sm:$0xff]
      %v2815 = vld [vmem:[%s1 + $0x100] sm:$0xf]
      %v2820 = vunpack.c.l.b16 %v2812
      %v2821 = vunpack.c.h.b16 %v2812
      %v2822 = vunpack.c.l.b16 %v2813
      %v2823 = vunpack.c.l.b16 %v2814
      %v2824 = vunpack.c.h.b16 %v2814
      %v2825 = vunpack.c.l.b16 %v2815
      %v2826 = vpack.c.b16 %v2823, %v2820
      %v2827 = vpack.c.b16 %v2824, %v2821
      %v2828 = vpack.c.b16 %v2825, %v2822
      %v2832 = vsel %vm1804, %v2828, 0
      %2834 = vmatprep.subr.bf16.mxu0 0
      %2835 = vmatpush1.bf16.msra.mxu0 %v2773
      %2836 = vmatprep.subr.bf16.mxu0 0
      %2837 = vmatpush1.bf16.msra.mxu0 %v2771
      %2838 = vmatprep.subr.bf16.mxu0 0
      %2839 = vmatpush1.bf16.msra.mxu0 %v2765
      %2840 = vmatprep.subr.bf16.mxu0 0
      %2841 = vmatpush1.bf16.msra.mxu0 %v2763
      %2842 = vmatprep.subr.bf16.mxu0 0
      %2843 = vmatpush1.bf16.msra.mxu0 %v2757
      %2844 = vmatprep.subr.bf16.mxu0 0
      %2845 = vmatpush1.bf16.msra.mxu0 %v2755
      %2846 = vmatprep.subr.bf16.mxu0 0
      %2847 = vmatpush1.bf16.msra.mxu0 %v2741
      %2848 = vmatprep.subr.bf16.mxu0 0
      %2849 = vmatpush1.bf16.msra.mxu0 %v2740
      %2850 = vmatprep.subr.bf16.mxu0 0
      %2851 = vmatpush2.bf16.msra.mxu0 %v2801
      %2852 = vmatprep.subr.bf16.mxu0 0
      %2853 = vmatpush2.bf16.msra.mxu0 %v2799
      %2854 = vmatprep.subr.bf16.mxu0 0
      %2855 = vmatpush2.bf16.msra.mxu0 %v2795
      %2856 = vmatprep.subr.bf16.mxu0 0
      %2857 = vmatpush2.bf16.msra.mxu0 %v2793
      %2858 = vmatprep.subr.bf16.mxu0 0
      %2859 = vmatpush2.bf16.msra.mxu0 %v2787
      %2860 = vmatprep.subr.bf16.mxu0 0
      %2861 = vmatpush2.bf16.msra.mxu0 %v2785
      %2862 = vmatprep.subr.bf16.mxu0 0
      %2863 = vmatpush2.bf16.msra.mxu0 %v2779
      %2864 = vmatprep.subr.bf16.mxu0 0
      %2865 = vmatpush2.bf16.msra.mxu0 %v2777
      %2866 = vmatprep.mubr.bf16.mxu0 %v2827
      %2867 = vmatmul.mubr.bf16.gmra.mxu0 %v2826
      %v2868 = vpop.f32.mrf.mxu0
      %v2869 = vadd.f32 0.0, %v2868
      %v2870 = vpop.f32.mrf.mxu0
      %v2871 = vpop.f32.mrf.mxu0
      %v2872 = vadd.f32 0.0, %v2871
      %v2873 = vpop.f32.mrf.mxu0
      %2874 = vdwg.mxu0
      %2875 = vmatprep.subr.bf16.mxu0 0
      %2876 = vmatpush1.bf16.msra.mxu0 0
      %2877 = vmatprep.subr.bf16.mxu0 0
      %2878 = vmatpush1.bf16.msra.mxu0 0
      %2879 = vmatprep.subr.bf16.mxu0 0
      %2880 = vmatpush1.bf16.msra.mxu0 0
      %2881 = vmatprep.subr.bf16.mxu0 0
      %2882 = vmatpush1.bf16.msra.mxu0 0
      %2883 = vmatprep.subr.bf16.mxu0 0
      %2884 = vmatpush1.bf16.msra.mxu0 0
      %2885 = vmatprep.subr.bf16.mxu0 0
      %2886 = vmatpush1.bf16.msra.mxu0 %v1280
      %2887 = vmatprep.subr.bf16.mxu0 0
      %2888 = vmatpush1.bf16.msra.mxu0 %v2809
      %2889 = vmatprep.subr.bf16.mxu0 0
      %2890 = vmatpush1.bf16.msra.mxu0 %v2807
      %2891 = vmatprep.subr.bf16.mxu0 0
      %2892 = vmatpush2.bf16.msra.mxu0 0
      %2893 = vmatprep.subr.bf16.mxu0 0
      %2894 = vmatpush2.bf16.msra.mxu0 0
      %2895 = vmatprep.subr.bf16.mxu0 0
      %2896 = vmatpush2.bf16.msra.mxu0 0
      %2897 = vmatprep.subr.bf16.mxu0 0
      %2898 = vmatpush2.bf16.msra.mxu0 0
      %2899 = vmatprep.subr.bf16.mxu0 0
      %2900 = vmatpush2.bf16.msra.mxu0 0
      %2901 = vmatprep.subr.bf16.mxu0 0
      %2902 = vmatpush2.bf16.msra.mxu0 0
      %2903 = vmatprep.subr.bf16.mxu0 0
      %2904 = vmatpush2.bf16.msra.mxu0 0
      %2905 = vmatprep.subr.bf16.mxu0 0
      %2906 = vmatpush2.bf16.msra.mxu0 0
      %2907 = vmatprep.mubr.bf16.mxu0 0
      %2908 = vmatmul.mubr.bf16.gmra.mxu0 %v2832
      %v2909 = vpop.f32.mrf.mxu0
      %v2910 = vadd.f32 %v2869, %v2909
      %v2911 = vpop.f32.mrf.mxu0
      %v2912 = vpop.f32.mrf.mxu0
      %v2913 = vadd.f32 %v2872, %v2912
      %v2914 = vpop.f32.mrf.mxu0
      %2915 = vdwg.mxu0
      %v2916 = vmax.f32 %v2910, 0.0
      %v2917 = vmax.f32 %v2913, 0.0
      %v2918 = vpack.c.bf16 %v2917, %v2916
      %v2919 = vld [vmem:[%s10] sm:$0xff]
      %v2920 = vld [vmem:[%s10 + $0x8] sm:$0xff]
      %v2921 = vld [vmem:[%s10 + $0x10] sm:$0xff]
      %v2922 = vld [vmem:[%s10 + $0x18] sm:$0xff]
      %v2923 = vld [vmem:[%s10 + $0x20] sm:$0xff]
      %v2924 = vld [vmem:[%s10 + $0x28] sm:$0xff]
      %v2925 = vld [vmem:[%s10 + $0x30] sm:$0xff]
      %v2926 = vld [vmem:[%s10 + $0x38] sm:$0xff]
      %v2935 = vunpack.c.l.b16 %v2919
      %v2936 = vunpack.c.h.b16 %v2919
      %v2937 = vunpack.c.l.b16 %v2920
      %v2938 = vunpack.c.h.b16 %v2920
      %v2939 = vunpack.c.l.b16 %v2921
      %v2940 = vunpack.c.h.b16 %v2921
      %v2941 = vunpack.c.l.b16 %v2922
      %v2942 = vunpack.c.h.b16 %v2922
      %v2943 = vunpack.c.l.b16 %v2923
      %v2944 = vunpack.c.h.b16 %v2923
      %v2945 = vunpack.c.l.b16 %v2924
      %v2946 = vunpack.c.h.b16 %v2924
      %v2947 = vunpack.c.l.b16 %v2925
      %v2948 = vunpack.c.h.b16 %v2925
      %v2949 = vunpack.c.l.b16 %v2926
      %v2950 = vunpack.c.h.b16 %v2926
      %v2951 = vpack.c.b16 %v2937, %v2935
      %v2952 = vpack.c.b16 %v2938, %v2936
      %v2953 = vpack.c.b16 %v2941, %v2939
      %v2954 = vpack.c.b16 %v2942, %v2940
      %v2955 = vpack.c.b16 %v2945, %v2943
      %v2956 = vpack.c.b16 %v2946, %v2944
      %v2957 = vpack.c.b16 %v2949, %v2947
      %v2958 = vpack.c.b16 %v2950, %v2948
      %v2968 = vsel %vm1101, %v2918, 0
      %2970 = vmatprep.subr.bf16.mxu0 0
      %2971 = vmatpush1.bf16.msra.mxu0 0
      %2972 = vmatprep.subr.bf16.mxu0 0
      %2973 = vmatpush1.bf16.msra.mxu0 0
      %2974 = vmatprep.subr.bf16.mxu0 0
      %2975 = vmatpush1.bf16.msra.mxu0 0
      %2976 = vmatprep.subr.bf16.mxu0 0
      %2977 = vmatpush1.bf16.msra.mxu0 0
      %2978 = vmatprep.subr.bf16.mxu0 %v2958
      %2979 = vmatpush1.bf16.msra.mxu0 %v2957
      %2980 = vmatprep.subr.bf16.mxu0 %v2956
      %2981 = vmatpush1.bf16.msra.mxu0 %v2955
      %2982 = vmatprep.subr.bf16.mxu0 %v2954
      %2983 = vmatpush1.bf16.msra.mxu0 %v2953
      %2984 = vmatprep.subr.bf16.mxu0 %v2952
      %2985 = vmatpush1.bf16.msra.mxu0 %v2951
      %2986 = vmatprep.subr.bf16.mxu0 0
      %2987 = vmatpush2.bf16.msra.mxu0 0
      %2988 = vmatprep.subr.bf16.mxu0 0
      %2989 = vmatpush2.bf16.msra.mxu0 0
      %2990 = vmatprep.subr.bf16.mxu0 0
      %2991 = vmatpush2.bf16.msra.mxu0 0
      %2992 = vmatprep.subr.bf16.mxu0 0
      %2993 = vmatpush2.bf16.msra.mxu0 0
      %2994 = vmatprep.subr.bf16.mxu0 0
      %2995 = vmatpush2.bf16.msra.mxu0 0
      %2996 = vmatprep.subr.bf16.mxu0 0
      %2997 = vmatpush2.bf16.msra.mxu0 0
      %2998 = vmatprep.subr.bf16.mxu0 0
      %2999 = vmatpush2.bf16.msra.mxu0 0
      %3000 = vmatprep.subr.bf16.mxu0 0
      %3001 = vmatpush2.bf16.msra.mxu0 0
      %3002 = vmatprep.mubr.bf16.mxu0 0
      %3003 = vmatmul.mubr.bf16.gmra.mxu0 %v2968
      %v3004 = vpop.f32.mrf.mxu0
      %v3005 = vadd.f32 0.0, %v3004
      %v3006 = vpop.f32.mrf.mxu0
      %v3007 = vadd.f32 0.0, %v3006
      %v3008 = vpop.f32.mrf.mxu0
      %v3009 = vadd.f32 0.0, %v3008
      %v3010 = vpop.f32.mrf.mxu0
      %v3011 = vadd.f32 0.0, %v3010
      %3012 = vdwg.mxu0
      %v3013 = vpack.c.bf16 %v3009, %v3005
      %v3014 = vpack.c.bf16 %v3011, %v3007
      %3017 = vrot.lane.b32.xlu0 %v3013, 17
      %v3018 = vpop.permute.xlu0 %3017
      %3019 = vrot.lane.b32.xlu0 %v3014, 17
      %v3020 = vpop.permute.xlu0 %3019
      %3021 = vrot.lane.b32.xlu0 %v734, 17
      %v3022 = vpop.permute.xlu0 %3021
      %3023 = vrot.lane.b32.xlu0 %v735, 17
      %v3024 = vpop.permute.xlu0 %3023
      %v3025 = vsel %vm404, %v3018, %v3020
      %v3026 = vsel %vm404, %v3022, %v3024
      %v3030 = vsel %vm407, 0, %v3018
      %v3033 = vsel %vm407, 0, %v3022
      %v3036 = vsel %vm407, %v3020, 0
      %v3039 = vsel %vm407, %v3024, 0
      %v3041 = vmul.bf16 %v3030, %v444
      %v3042 = vmul.bf16 %v3025, %v451
      %v3043 = vmul.bf16 %v3033, %v444
      %v3044 = vmul.bf16 %v3026, %v451
      %v3045 = vmul.bf16 %v3030, %v471
      %v3046 = vmul.bf16 %v3025, %v475
      %v3047 = vmul.bf16 %v3036, %v473
      %v3048 = vmul.bf16 %v3033, %v471
      %v3049 = vmul.bf16 %v3026, %v475
      %v3050 = vmul.bf16 %v3039, %v473
      %v3051 = vmul.bf16 %v3030, %v485
      %v3052 = vmul.bf16 %v3025, %v489
      %v3053 = vmul.bf16 %v3036, %v487
      %v3054 = vmul.bf16 %v3033, %v485
      %v3055 = vmul.bf16 %v3026, %v489
      %v3056 = vmul.bf16 %v3039, %v487
      %v3057 = vmul.bf16 %v3030, %v497
      %v3058 = vmul.bf16 %v3025, %v501
      %v3059 = vmul.bf16 %v3036, %v499
      %v3060 = vmul.bf16 %v3033, %v497
      %v3061 = vmul.bf16 %v3026, %v501
      %v3062 = vmul.bf16 %v3039, %v499
      %v3063 = vmul.bf16 %v3030, %v509
      %v3064 = vmul.bf16 %v3025, %v513
      %v3065 = vmul.bf16 %v3036, %v511
      %v3066 = vmul.bf16 %v3033, %v509
      %v3067 = vmul.bf16 %v3026, %v513
      %v3068 = vmul.bf16 %v3039, %v511
      %v3069 = vmul.bf16 %v3030, %v521
      %v3070 = vmul.bf16 %v3025, %v525
      %v3071 = vmul.bf16 %v3036, %v523
      %v3072 = vmul.bf16 %v3033, %v521
      %v3073 = vmul.bf16 %v3026, %v525
      %v3074 = vmul.bf16 %v3039, %v523
      %vm3079 = vcmask 1043456
      %v3080 = vrot.slane %v3030, 4
      %v3081 = vrot.slane %v3025, 4
      %v3082 = vrot.slane %v3036, 4
      %v3083 = vrot.slane %v3033, 4
      %v3084 = vsel %vm3079, %v3080, %v3083
      %v3085 = vrot.slane %v3026, 4
      %v3086 = vsel %vm3079, %v3081, %v3085
      %v3087 = vrot.slane %v3039, 4
      %v3088 = vsel %vm3079, %v3082, %v3087
      %3089 = vrot.lane.b32.xlu0 %v3080, 127
      %v3090 = vpop.permute.xlu0 %3089
      %3091 = vrot.lane.b32.xlu0 %v3081, 127
      %v3092 = vpop.permute.xlu0 %3091
      %3093 = vrot.lane.b32.xlu0 %v3082, 127
      %v3094 = vpop.permute.xlu0 %3093
      %3095 = vrot.lane.b32.xlu0 %v3084, 127
      %v3096 = vpop.permute.xlu0 %3095
      %3097 = vrot.lane.b32.xlu0 %v3086, 127
      %v3098 = vpop.permute.xlu0 %3097
      %3099 = vrot.lane.b32.xlu0 %v3088, 127
      %v3100 = vpop.permute.xlu0 %3099
      %v3101 = vsel %vm543, %v3090, %v3092
      %v3102 = vsel %vm543, %v3092, %v3094
      %v3103 = vsel %vm543, %v3096, %v3098
      %v3104 = vsel %vm543, %v3098, %v3100
      %3113 = vrot.lane.b32.xlu0 %v3045, 126
      %v3114 = vpop.permute.xlu0 %3113
      %3115 = vrot.lane.b32.xlu0 %v3046, 126
      %v3116 = vpop.permute.xlu0 %3115
      %3117 = vrot.lane.b32.xlu0 %v3047, 126
      %v3118 = vpop.permute.xlu0 %3117
      %3119 = vrot.lane.b32.xlu0 %v3048, 126
      %v3120 = vpop.permute.xlu0 %3119
      %3121 = vrot.lane.b32.xlu0 %v3049, 126
      %v3122 = vpop.permute.xlu0 %3121
      %3123 = vrot.lane.b32.xlu0 %v3050, 126
      %v3124 = vpop.permute.xlu0 %3123
      %v3125 = vsel %vm558, %v3114, %v3116
      %v3126 = vsel %vm558, %v3116, %v3118
      %v3127 = vsel %vm558, %v3120, %v3122
      %v3128 = vsel %vm558, %v3122, %v3124
      %v3137 = vrot.slane %v3051, 4
      %v3138 = vrot.slane %v3052, 4
      %v3139 = vrot.slane %v3053, 4
      %v3140 = vrot.slane %v3054, 4
      %v3141 = vsel %vm3079, %v3137, %v3140
      %v3142 = vrot.slane %v3055, 4
      %v3143 = vsel %vm3079, %v3138, %v3142
      %v3144 = vrot.slane %v3056, 4
      %v3145 = vsel %vm3079, %v3139, %v3144
      %3146 = vrot.lane.b32.xlu0 %v3137, 112
      %v3147 = vpop.permute.xlu0 %3146
      %3148 = vrot.lane.b32.xlu0 %v3138, 112
      %v3149 = vpop.permute.xlu0 %3148
      %3150 = vrot.lane.b32.xlu0 %v3139, 112
      %v3151 = vpop.permute.xlu0 %3150
      %3152 = vrot.lane.b32.xlu0 %v3141, 112
      %v3153 = vpop.permute.xlu0 %3152
      %3154 = vrot.lane.b32.xlu0 %v3143, 112
      %v3155 = vpop.permute.xlu0 %3154
      %3156 = vrot.lane.b32.xlu0 %v3145, 112
      %v3157 = vpop.permute.xlu0 %3156
      %v3158 = vsel %vm573, %v3147, %v3149
      %v3159 = vsel %vm573, %v3149, %v3151
      %v3160 = vsel %vm573, %v3153, %v3155
      %v3161 = vsel %vm573, %v3155, %v3157
      %3164 = vrot.lane.b32.xlu0 %v3030, 111
      %v3165 = vpop.permute.xlu0 %3164
      %3166 = vrot.lane.b32.xlu0 %v3025, 111
      %v3167 = vpop.permute.xlu0 %3166
      %3168 = vrot.lane.b32.xlu0 %v3036, 111
      %v3169 = vpop.permute.xlu0 %3168
      %3170 = vrot.lane.b32.xlu0 %v3033, 111
      %v3171 = vpop.permute.xlu0 %3170
      %3172 = vrot.lane.b32.xlu0 %v3026, 111
      %v3173 = vpop.permute.xlu0 %3172
      %3174 = vrot.lane.b32.xlu0 %v3039, 111
      %v3175 = vpop.permute.xlu0 %3174
      %v3176 = vsel %vm582, %v3165, %v3167
      %v3177 = vsel %vm582, %v3167, %v3169
      %v3178 = vsel %vm582, %v3171, %v3173
      %v3179 = vsel %vm582, %v3173, %v3175
      %v3188 = vrot.slane %v3057, 4
      %v3189 = vrot.slane %v3058, 4
      %v3190 = vrot.slane %v3059, 4
      %v3191 = vrot.slane %v3060, 4
      %v3192 = vsel %vm3079, %v3188, %v3191
      %v3193 = vrot.slane %v3061, 4
      %v3194 = vsel %vm3079, %v3189, %v3193
      %v3195 = vrot.slane %v3062, 4
      %v3196 = vsel %vm3079, %v3190, %v3195
      %3197 = vrot.lane.b32.xlu0 %v3188, 110
      %v3198 = vpop.permute.xlu0 %3197
      %3199 = vrot.lane.b32.xlu0 %v3189, 110
      %v3200 = vpop.permute.xlu0 %3199
      %3201 = vrot.lane.b32.xlu0 %v3190, 110
      %v3202 = vpop.permute.xlu0 %3201
      %3203 = vrot.lane.b32.xlu0 %v3192, 110
      %v3204 = vpop.permute.xlu0 %3203
      %3205 = vrot.lane.b32.xlu0 %v3194, 110
      %v3206 = vpop.permute.xlu0 %3205
      %3207 = vrot.lane.b32.xlu0 %v3196, 110
      %v3208 = vpop.permute.xlu0 %3207
      %v3209 = vsel %vm597, %v3198, %v3200
      %v3210 = vsel %vm597, %v3200, %v3202
      %v3211 = vsel %vm597, %v3204, %v3206
      %v3212 = vsel %vm597, %v3206, %v3208
      %3221 = vrot.lane.b32.xlu0 %v3063, 96
      %v3222 = vpop.permute.xlu0 %3221
      %3223 = vrot.lane.b32.xlu0 %v3064, 96
      %v3224 = vpop.permute.xlu0 %3223
      %3225 = vrot.lane.b32.xlu0 %v3065, 96
      %v3226 = vpop.permute.xlu0 %3225
      %3227 = vrot.lane.b32.xlu0 %v3066, 96
      %v3228 = vpop.permute.xlu0 %3227
      %3229 = vrot.lane.b32.xlu0 %v3067, 96
      %v3230 = vpop.permute.xlu0 %3229
      %3231 = vrot.lane.b32.xlu0 %v3068, 96
      %v3232 = vpop.permute.xlu0 %3231
      %v3233 = vsel %vm612, %v3222, %v3224
      %v3234 = vsel %vm612, %v3224, %v3226
      %v3235 = vsel %vm612, %v3228, %v3230
      %v3236 = vsel %vm612, %v3230, %v3232
      %3239 = vrot.lane.b32.xlu0 %v3080, 95
      %v3240 = vpop.permute.xlu0 %3239
      %3241 = vrot.lane.b32.xlu0 %v3081, 95
      %v3242 = vpop.permute.xlu0 %3241
      %3243 = vrot.lane.b32.xlu0 %v3082, 95
      %v3244 = vpop.permute.xlu0 %3243
      %3245 = vrot.lane.b32.xlu0 %v3084, 95
      %v3246 = vpop.permute.xlu0 %3245
      %3247 = vrot.lane.b32.xlu0 %v3086, 95
      %v3248 = vpop.permute.xlu0 %3247
      %3249 = vrot.lane.b32.xlu0 %v3088, 95
      %v3250 = vpop.permute.xlu0 %3249
      %v3251 = vsel %vm624, %v3240, %v3242
      %v3252 = vsel %vm624, %v3242, %v3244
      %v3253 = vsel %vm624, %v3246, %v3248
      %v3254 = vsel %vm624, %v3248, %v3250
      %3263 = vrot.lane.b32.xlu0 %v3069, 94
      %v3264 = vpop.permute.xlu0 %3263
      %3265 = vrot.lane.b32.xlu0 %v3070, 94
      %v3266 = vpop.permute.xlu0 %3265
      %3267 = vrot.lane.b32.xlu0 %v3071, 94
      %v3268 = vpop.permute.xlu0 %3267
      %3269 = vrot.lane.b32.xlu0 %v3072, 94
      %v3270 = vpop.permute.xlu0 %3269
      %3271 = vrot.lane.b32.xlu0 %v3073, 94
      %v3272 = vpop.permute.xlu0 %3271
      %3273 = vrot.lane.b32.xlu0 %v3074, 94
      %v3274 = vpop.permute.xlu0 %3273
      %v3275 = vsel %vm636, %v3264, %v3266
      %v3276 = vsel %vm636, %v3266, %v3268
      %v3277 = vsel %vm636, %v3270, %v3272
      %v3278 = vsel %vm636, %v3272, %v3274
      %v3283 = vsel %vm646, %v3043, %v3101
      %v3287 = vsel %vm646, %v3044, %v3102
      %v3291 = vsel %vm646, %v3127, %v3158
      %v3295 = vsel %vm646, %v3128, %v3159
      %v3299 = vsel %vm646, %v3178, %v3209
      %v3303 = vsel %vm646, %v3179, %v3210
      %v3307 = vsel %vm646, %v3235, %v3251
      %v3311 = vsel %vm646, %v3236, %v3252
      %v3314 = vsel %vm646, %v3277, 1065369472
      %v3316 = vsel %vm646, %v3278, 1065369472
      %v3317 = vld [vmem:[%s1 + $0x54] sm:$0xff]
      %v3319 = vunpack.c.l.b16 %v3317
      %v3320 = vunpack.c.h.b16 %v3317
      %v3321 = vpack.c.b16 %v3319, %v3319
      %v3322 = vpack.c.b16 %v3320, %v3320
      %vm3324 = vcmask 728064
      %v3326 = vsel %vm3324, %v3322, 0
      %v3328 = vand.u32 %v3314, %v1046
      %v3330 = vand.u32 %v3316, %v1046
      %3332 = vmatprep.subr.bf16.mxu0 %v3303
      %3333 = vmatpush1.bf16.msra.mxu0 %v3299
      %3334 = vmatprep.subr.bf16.mxu0 %v3177
      %3335 = vmatpush1.bf16.msra.mxu0 %v3176
      %3336 = vmatprep.subr.bf16.mxu0 %v3161
      %3337 = vmatpush1.bf16.msra.mxu0 %v3160
      %3338 = vmatprep.subr.bf16.mxu0 %v3295
      %3339 = vmatpush1.bf16.msra.mxu0 %v3291
      %3340 = vmatprep.subr.bf16.mxu0 %v3126
      %3341 = vmatpush1.bf16.msra.mxu0 %v3125
      %3342 = vmatprep.subr.bf16.mxu0 %v3104
      %3343 = vmatpush1.bf16.msra.mxu0 %v3103
      %3344 = vmatprep.subr.bf16.mxu0 %v3287
      %3345 = vmatpush1.bf16.msra.mxu0 %v3283
      %3346 = vmatprep.subr.bf16.mxu0 %v3042
      %3347 = vmatpush1.bf16.msra.mxu0 %v3041
      %3348 = vmatprep.subr.bf16.mxu0 0
      %3349 = vmatpush2.bf16.msra.mxu0 0
      %3350 = vmatprep.subr.bf16.mxu0 0
      %3351 = vmatpush2.bf16.msra.mxu0 0
      %3352 = vmatprep.subr.bf16.mxu0 %v3330
      %3353 = vmatpush2.bf16.msra.mxu0 %v3328
      %3354 = vmatprep.subr.bf16.mxu0 %v3276
      %3355 = vmatpush2.bf16.msra.mxu0 %v3275
      %3356 = vmatprep.subr.bf16.mxu0 %v3254
      %3357 = vmatpush2.bf16.msra.mxu0 %v3253
      %3358 = vmatprep.subr.bf16.mxu0 %v3311
      %3359 = vmatpush2.bf16.msra.mxu0 %v3307
      %3360 = vmatprep.subr.bf16.mxu0 %v3234
      %3361 = vmatpush2.bf16.msra.mxu0 %v3233
      %3362 = vmatprep.subr.bf16.mxu0 %v3212
      %3363 = vmatpush2.bf16.msra.mxu0 %v3211
      %3364 = vmatprep.mubr.bf16.mxu0 %v3326
      %3365 = vmatmul.mubr.bf16.gmra.mxu0 %v3321
      %v3366 = vpop.f32.mrf.mxu0
      %v3367 = vadd.f32 0.0, %v3366
      %v3368 = vpop.f32.mrf.mxu0
      %v3369 = vadd.f32 0.0, %v3368
      %v3370 = vpop.f32.mrf.mxu0
      %v3371 = vpop.f32.mrf.mxu0
      %3372 = vdwg.mxu0
      %v3373 = vmax.f32 %v3367, 0.0
      %v3374 = vmax.f32 %v3369, 0.0
      %v3375 = vpack.c.bf16 %v3373, %v3373
      %v3376 = vpack.c.bf16 %v3374, %v3374
      %v3378 = vsel %vm646, %v3375, 1065369472
      %v3380 = vsel %vm646, %v3376, 1065369472
      %v3381 = vld [vmem:[%s1 + $0x5c] sm:$0x3]
      %v3383 = vsel %vm948, %v3381, 0
      %v3385 = vand.u32 %v3378, %v1046
      %v3387 = vand.u32 %v3380, %v1046
      %3389 = vmatprep.subr.bf16.mxu0 0
      %3390 = vmatpush1.bf16.msra.mxu0 0
      %3391 = vmatprep.subr.bf16.mxu0 0
      %3392 = vmatpush1.bf16.msra.mxu0 0
      %3393 = vmatprep.subr.bf16.mxu0 0
      %3394 = vmatpush1.bf16.msra.mxu0 0
      %3395 = vmatprep.subr.bf16.mxu0 0
      %3396 = vmatpush1.bf16.msra.mxu0 0
      %3397 = vmatprep.subr.bf16.mxu0 0
      %3398 = vmatpush1.bf16.msra.mxu0 0
      %3399 = vmatprep.subr.bf16.mxu0 0
      %3400 = vmatpush1.bf16.msra.mxu0 0
      %3401 = vmatprep.subr.bf16.mxu0 0
      %3402 = vmatpush1.bf16.msra.mxu0 0
      %3403 = vmatprep.subr.bf16.mxu0 %v3387
      %3404 = vmatpush1.bf16.msra.mxu0 %v3385
      %3405 = vmatprep.subr.bf16.mxu0 0
      %3406 = vmatpush2.bf16.msra.mxu0 0
      %3407 = vmatprep.subr.bf16.mxu0 0
      %3408 = vmatpush2.bf16.msra.mxu0 0
      %3409 = vmatprep.subr.bf16.mxu0 0
      %3410 = vmatpush2.bf16.msra.mxu0 0
      %3411 = vmatprep.subr.bf16.mxu0 0
      %3412 = vmatpush2.bf16.msra.mxu0 0
      %3413 = vmatprep.subr.bf16.mxu0 0
      %3414 = vmatpush2.bf16.msra.mxu0 0
      %3415 = vmatprep.subr.bf16.mxu0 0
      %3416 = vmatpush2.bf16.msra.mxu0 0
      %3417 = vmatprep.subr.bf16.mxu0 0
      %3418 = vmatpush2.bf16.msra.mxu0 0
      %3419 = vmatprep.subr.bf16.mxu0 0
      %3420 = vmatpush2.bf16.msra.mxu0 0
      %3421 = vmatprep.mubr.bf16.mxu0 0
      %3422 = vmatmul.mubr.bf16.gmra.mxu0 %v3383
      %v3423 = vpop.f32.mrf.mxu0
      %v3424 = vadd.f32 0.0, %v3423
      %v3425 = vpop.f32.mrf.mxu0
      %v3426 = vadd.f32 0.0, %v3425
      %v3427 = vpop.f32.mrf.mxu0
      %v3428 = vpop.f32.mrf.mxu0
      %3429 = vdwg.mxu0
      %3432 = vrot.lane.b32.xlu0 %v2369, 3
      %v3433 = vpop.permute.xlu0 %3432
      %3434 = vrot.lane.b32.xlu0 %v2370, 3
      %v3435 = vpop.permute.xlu0 %3434
      %v3437 = vsel %vm1399, 0, %v3433
      %v3439 = vsel %vm1399, 0, %v3435
      %v3440 = vsel %vm1402, %v3437, 0
      %v3442 = vsel %vm1402, %v3439, 0
      %v3444 = vmul.bf16 %v3440, %v1411
      %v3445 = vmul.bf16 %v3442, %v1411
      %v3446 = vmul.bf16 %v3440, %v1422
      %v3447 = vmul.bf16 %v3442, %v1422
      %v3448 = vmul.bf16 %v3440, %v1427
      %v3449 = vmul.bf16 %v3442, %v1427
      %v3450 = vmul.bf16 %v3440, %v1431
      %v3451 = vmul.bf16 %v3442, %v1431
      %v3452 = vmul.bf16 %v3440, %v1435
      %v3453 = vmul.bf16 %v3442, %v1435
      %v3454 = vmul.bf16 %v3440, %v1439
      %v3455 = vmul.bf16 %v3442, %v1439
      %3458 = vrot.lane.b32.xlu0 %v3440, 127
      %v3459 = vpop.permute.xlu0 %3458
      %3460 = vrot.lane.b32.xlu0 %v3442, 127
      %v3461 = vpop.permute.xlu0 %3460
      %3466 = vrot.lane.b32.xlu0 %v3446, 126
      %v3467 = vpop.permute.xlu0 %3466
      %3468 = vrot.lane.b32.xlu0 %v3447, 126
      %v3469 = vpop.permute.xlu0 %3468
      %3474 = vrot.lane.b32.xlu0 %v3448, 126
      %v3475 = vpop.permute.xlu0 %3474
      %3476 = vrot.lane.b32.xlu0 %v3449, 126
      %v3477 = vpop.permute.xlu0 %3476
      %3480 = vrot.lane.b32.xlu0 %v3440, 125
      %v3481 = vpop.permute.xlu0 %3480
      %3482 = vrot.lane.b32.xlu0 %v3442, 125
      %v3483 = vpop.permute.xlu0 %3482
      %3488 = vrot.lane.b32.xlu0 %v3450, 124
      %v3489 = vpop.permute.xlu0 %3488
      %3490 = vrot.lane.b32.xlu0 %v3451, 124
      %v3491 = vpop.permute.xlu0 %3490
      %3496 = vrot.lane.b32.xlu0 %v3452, 124
      %v3497 = vpop.permute.xlu0 %3496
      %3498 = vrot.lane.b32.xlu0 %v3453, 124
      %v3499 = vpop.permute.xlu0 %3498
      %3502 = vrot.lane.b32.xlu0 %v3440, 123
      %v3503 = vpop.permute.xlu0 %3502
      %3504 = vrot.lane.b32.xlu0 %v3442, 123
      %v3505 = vpop.permute.xlu0 %3504
      %3510 = vrot.lane.b32.xlu0 %v3454, 122
      %v3511 = vpop.permute.xlu0 %3510
      %3512 = vrot.lane.b32.xlu0 %v3455, 122
      %v3513 = vpop.permute.xlu0 %3512
      %v3516 = vld [vmem:[%s1 + $0x60] sm:$0xff]
      %v3517 = vld [vmem:[%s1 + $0x68] sm:$0xff]
      %v3518 = vld [vmem:[%s1 + $0x70] sm:$0xff]
      %v3519 = vld [vmem:[%s1 + $0x78] sm:$0xf]
      %v3520 = vld [vmem:[%s1 + $0x110] sm:$0xff]
      %v3521 = vld [vmem:[%s1 + $0x118] sm:$0xff]
      %v3522 = vld [vmem:[%s1 + $0x120] sm:$0xff]
      %v3523 = vld [vmem:[%s1 + $0x128] sm:$0xf]
      %v3524 = vld [vmem:[%s1 + $0x1c0] sm:$0xff]
      %v3525 = vld [vmem:[%s1 + $0x1c8] sm:$0xff]
      %v3526 = vld [vmem:[%s1 + $0x1d0] sm:$0xff]
      %v3527 = vld [vmem:[%s1 + $0x1d8] sm:$0xf]
      %v3528 = vld [vmem:[%s1 + $0x270] sm:$0xff]
      %v3529 = vld [vmem:[%s1 + $0x278] sm:$0xff]
      %v3530 = vld [vmem:[%s1 + $0x280] sm:$0xff]
      %v3531 = vld [vmem:[%s1 + $0x288] sm:$0xf]
      %v3548 = vunpack.c.l.b16 %v3516
      %v3549 = vunpack.c.h.b16 %v3516
      %v3550 = vunpack.c.l.b16 %v3517
      %v3551 = vunpack.c.h.b16 %v3517
      %v3552 = vunpack.c.l.b16 %v3518
      %v3553 = vunpack.c.h.b16 %v3518
      %v3554 = vunpack.c.l.b16 %v3519
      %v3555 = vunpack.c.l.b16 %v3520
      %v3556 = vunpack.c.h.b16 %v3520
      %v3557 = vunpack.c.l.b16 %v3521
      %v3558 = vunpack.c.h.b16 %v3521
      %v3559 = vunpack.c.l.b16 %v3522
      %v3560 = vunpack.c.h.b16 %v3522
      %v3561 = vunpack.c.l.b16 %v3523
      %v3562 = vunpack.c.l.b16 %v3524
      %v3563 = vunpack.c.h.b16 %v3524
      %v3564 = vunpack.c.l.b16 %v3525
      %v3565 = vunpack.c.h.b16 %v3525
      %v3566 = vunpack.c.l.b16 %v3526
      %v3567 = vunpack.c.h.b16 %v3526
      %v3568 = vunpack.c.l.b16 %v3527
      %v3569 = vunpack.c.l.b16 %v3528
      %v3570 = vunpack.c.h.b16 %v3528
      %v3571 = vunpack.c.l.b16 %v3529
      %v3572 = vunpack.c.h.b16 %v3529
      %v3573 = vunpack.c.l.b16 %v3530
      %v3574 = vunpack.c.h.b16 %v3530
      %v3575 = vunpack.c.l.b16 %v3531
      %v3576 = vpack.c.b16 %v3555, %v3548
      %v3577 = vpack.c.b16 %v3556, %v3549
      %v3578 = vpack.c.b16 %v3557, %v3550
      %v3579 = vpack.c.b16 %v3558, %v3551
      %v3580 = vpack.c.b16 %v3559, %v3552
      %v3581 = vpack.c.b16 %v3560, %v3553
      %v3582 = vpack.c.b16 %v3561, %v3554
      %v3583 = vpack.c.b16 %v3569, %v3562
      %v3584 = vpack.c.b16 %v3570, %v3563
      %v3585 = vpack.c.b16 %v3571, %v3564
      %v3586 = vpack.c.b16 %v3572, %v3565
      %v3587 = vpack.c.b16 %v3573, %v3566
      %v3588 = vpack.c.b16 %v3574, %v3567
      %v3589 = vpack.c.b16 %v3575, %v3568
      %vm3602 = vcmask 793600
      %v3604 = vsel %vm3602, %v3582, 0
      %v3607 = vsel %vm3602, %v3589, 0
      %3609 = vmatprep.subr.bf16.mxu0 0
      %3610 = vmatpush1.bf16.msra.mxu0 %v2036
      %3611 = vmatprep.subr.bf16.mxu0 0
      %3612 = vmatpush1.bf16.msra.mxu0 %v2034
      %3613 = vmatprep.subr.bf16.mxu0 0
      %3614 = vmatpush1.bf16.msra.mxu0 %v3445
      %3615 = vmatprep.subr.bf16.mxu0 0
      %3616 = vmatpush1.bf16.msra.mxu0 %v3444
      %3617 = vmatprep.subr.bf16.mxu0 0
      %3618 = vmatpush1.bf16.msra.mxu0 %v2008
      %3619 = vmatprep.subr.bf16.mxu0 0
      %3620 = vmatpush1.bf16.msra.mxu0 %v2007
      %3621 = vmatprep.subr.bf16.mxu0 0
      %3622 = vmatpush1.bf16.msra.mxu0 %v2006
      %3623 = vmatprep.subr.bf16.mxu0 0
      %3624 = vmatpush1.bf16.msra.mxu0 %v2005
      %3625 = vmatprep.subr.bf16.mxu0 0
      %3626 = vmatpush2.bf16.msra.mxu0 %v2056
      %3627 = vmatprep.subr.bf16.mxu0 0
      %3628 = vmatpush2.bf16.msra.mxu0 %v2054
      %3629 = vmatprep.subr.bf16.mxu0 0
      %3630 = vmatpush2.bf16.msra.mxu0 %v2052
      %3631 = vmatprep.subr.bf16.mxu0 0
      %3632 = vmatpush2.bf16.msra.mxu0 %v2050
      %3633 = vmatprep.subr.bf16.mxu0 0
      %3634 = vmatpush2.bf16.msra.mxu0 %v3461
      %3635 = vmatprep.subr.bf16.mxu0 0
      %3636 = vmatpush2.bf16.msra.mxu0 %v3459
      %3637 = vmatprep.subr.bf16.mxu0 0
      %3638 = vmatpush2.bf16.msra.mxu0 %v2040
      %3639 = vmatprep.subr.bf16.mxu0 0
      %3640 = vmatpush2.bf16.msra.mxu0 %v2038
      %3641 = vmatprep.mubr.bf16.mxu0 %v3577
      %3642 = vmatmul.mubr.bf16.gmra.mxu0 %v3576
      %v3643 = vpop.f32.mrf.mxu0
      %v3644 = vadd.f32 0.0, %v3643
      %v3645 = vpop.f32.mrf.mxu0
      %v3646 = vpop.f32.mrf.mxu0
      %v3647 = vadd.f32 0.0, %v3646
      %v3648 = vpop.f32.mrf.mxu0
      %3649 = vmatprep.mubr.bf16.mxu0 %v3584
      %3650 = vmatmul.mubr.bf16.gmra.mxu0 %v3583
      %v3651 = vpop.f32.mrf.mxu0
      %v3652 = vadd.f32 0.0, %v3651
      %v3653 = vpop.f32.mrf.mxu0
      %v3654 = vpop.f32.mrf.mxu0
      %v3655 = vadd.f32 0.0, %v3654
      %v3656 = vpop.f32.mrf.mxu0
      %3657 = vdwg.mxu0
      %3658 = vmatprep.subr.bf16.mxu0 0
      %3659 = vmatpush1.bf16.msra.mxu0 %v3477
      %3660 = vmatprep.subr.bf16.mxu0 0
      %3661 = vmatpush1.bf16.msra.mxu0 %v3475
      %3662 = vmatprep.subr.bf16.mxu0 0
      %3663 = vmatpush1.bf16.msra.mxu0 %v2072
      %3664 = vmatprep.subr.bf16.mxu0 0
      %3665 = vmatpush1.bf16.msra.mxu0 %v2070
      %3666 = vmatprep.subr.bf16.mxu0 0
      %3667 = vmatpush1.bf16.msra.mxu0 %v2068
      %3668 = vmatprep.subr.bf16.mxu0 0
      %3669 = vmatpush1.bf16.msra.mxu0 %v2066
      %3670 = vmatprep.subr.bf16.mxu0 0
      %3671 = vmatpush1.bf16.msra.mxu0 %v3469
      %3672 = vmatprep.subr.bf16.mxu0 0
      %3673 = vmatpush1.bf16.msra.mxu0 %v3467
      %3674 = vmatprep.subr.bf16.mxu0 0
      %3675 = vmatpush2.bf16.msra.mxu0 %v2096
      %3676 = vmatprep.subr.bf16.mxu0 0
      %3677 = vmatpush2.bf16.msra.mxu0 %v2094
      %3678 = vmatprep.subr.bf16.mxu0 0
      %3679 = vmatpush2.bf16.msra.mxu0 %v3483
      %3680 = vmatprep.subr.bf16.mxu0 0
      %3681 = vmatpush2.bf16.msra.mxu0 %v3481
      %3682 = vmatprep.subr.bf16.mxu0 0
      %3683 = vmatpush2.bf16.msra.mxu0 %v2084
      %3684 = vmatprep.subr.bf16.mxu0 0
      %3685 = vmatpush2.bf16.msra.mxu0 %v2082
      %3686 = vmatprep.subr.bf16.mxu0 0
      %3687 = vmatpush2.bf16.msra.mxu0 %v2080
      %3688 = vmatprep.subr.bf16.mxu0 0
      %3689 = vmatpush2.bf16.msra.mxu0 %v2078
      %3690 = vmatprep.mubr.bf16.mxu0 %v3579
      %3691 = vmatmul.mubr.bf16.gmra.mxu0 %v3578
      %v3692 = vpop.f32.mrf.mxu0
      %v3693 = vadd.f32 %v3644, %v3692
      %v3694 = vpop.f32.mrf.mxu0
      %v3695 = vpop.f32.mrf.mxu0
      %v3696 = vadd.f32 %v3647, %v3695
      %v3697 = vpop.f32.mrf.mxu0
      %3698 = vmatprep.mubr.bf16.mxu0 %v3586
      %3699 = vmatmul.mubr.bf16.gmra.mxu0 %v3585
      %v3700 = vpop.f32.mrf.mxu0
      %v3701 = vadd.f32 %v3652, %v3700
      %v3702 = vpop.f32.mrf.mxu0
      %v3703 = vpop.f32.mrf.mxu0
      %v3704 = vadd.f32 %v3655, %v3703
      %v3705 = vpop.f32.mrf.mxu0
      %3706 = vdwg.mxu0
      %3707 = vmatprep.subr.bf16.mxu0 0
      %3708 = vmatpush1.bf16.msra.mxu0 %v2116
      %3709 = vmatprep.subr.bf16.mxu0 0
      %3710 = vmatpush1.bf16.msra.mxu0 %v2114
      %3711 = vmatprep.subr.bf16.mxu0 0
      %3712 = vmatpush1.bf16.msra.mxu0 %v2112
      %3713 = vmatprep.subr.bf16.mxu0 0
      %3714 = vmatpush1.bf16.msra.mxu0 %v2110
      %3715 = vmatprep.subr.bf16.mxu0 0
      %3716 = vmatpush1.bf16.msra.mxu0 %v3491
      %3717 = vmatprep.subr.bf16.mxu0 0
      %3718 = vmatpush1.bf16.msra.mxu0 %v3489
      %3719 = vmatprep.subr.bf16.mxu0 0
      %3720 = vmatpush1.bf16.msra.mxu0 %v2100
      %3721 = vmatprep.subr.bf16.mxu0 0
      %3722 = vmatpush1.bf16.msra.mxu0 %v2098
      %3723 = vmatprep.subr.bf16.mxu0 0
      %3724 = vmatpush2.bf16.msra.mxu0 %v3505
      %3725 = vmatprep.subr.bf16.mxu0 0
      %3726 = vmatpush2.bf16.msra.mxu0 %v3503
      %3727 = vmatprep.subr.bf16.mxu0 0
      %3728 = vmatpush2.bf16.msra.mxu0 %v2128
      %3729 = vmatprep.subr.bf16.mxu0 0
      %3730 = vmatpush2.bf16.msra.mxu0 %v2126
      %3731 = vmatprep.subr.bf16.mxu0 0
      %3732 = vmatpush2.bf16.msra.mxu0 %v2124
      %3733 = vmatprep.subr.bf16.mxu0 0
      %3734 = vmatpush2.bf16.msra.mxu0 %v2122
      %3735 = vmatprep.subr.bf16.mxu0 0
      %3736 = vmatpush2.bf16.msra.mxu0 %v3499
      %3737 = vmatprep.subr.bf16.mxu0 0
      %3738 = vmatpush2.bf16.msra.mxu0 %v3497
      %3739 = vmatprep.mubr.bf16.mxu0 %v3581
      %3740 = vmatmul.mubr.bf16.gmra.mxu0 %v3580
      %v3741 = vpop.f32.mrf.mxu0
      %v3742 = vadd.f32 %v3693, %v3741
      %v3743 = vpop.f32.mrf.mxu0
      %v3744 = vpop.f32.mrf.mxu0
      %v3745 = vadd.f32 %v3696, %v3744
      %v3746 = vpop.f32.mrf.mxu0
      %3747 = vmatprep.mubr.bf16.mxu0 %v3588
      %3748 = vmatmul.mubr.bf16.gmra.mxu0 %v3587
      %v3749 = vpop.f32.mrf.mxu0
      %v3750 = vadd.f32 %v3701, %v3749
      %v3751 = vpop.f32.mrf.mxu0
      %v3752 = vpop.f32.mrf.mxu0
      %v3753 = vadd.f32 %v3704, %v3752
      %v3754 = vpop.f32.mrf.mxu0
      %3755 = vdwg.mxu0
      %3756 = vmatprep.subr.bf16.mxu0 0
      %3757 = vmatpush1.bf16.msra.mxu0 0
      %3758 = vmatprep.subr.bf16.mxu0 0
      %3759 = vmatpush1.bf16.msra.mxu0 %v1280
      %3760 = vmatprep.subr.bf16.mxu0 0
      %3761 = vmatpush1.bf16.msra.mxu0 %v3513
      %3762 = vmatprep.subr.bf16.mxu0 0
      %3763 = vmatpush1.bf16.msra.mxu0 %v3511
      %3764 = vmatprep.subr.bf16.mxu0 0
      %3765 = vmatpush1.bf16.msra.mxu0 %v2144
      %3766 = vmatprep.subr.bf16.mxu0 0
      %3767 = vmatpush1.bf16.msra.mxu0 %v2142
      %3768 = vmatprep.subr.bf16.mxu0 0
      %3769 = vmatpush1.bf16.msra.mxu0 %v2140
      %3770 = vmatprep.subr.bf16.mxu0 0
      %3771 = vmatpush1.bf16.msra.mxu0 %v2138
      %3772 = vmatprep.subr.bf16.mxu0 0
      %3773 = vmatpush2.bf16.msra.mxu0 0
      %3774 = vmatprep.subr.bf16.mxu0 0
      %3775 = vmatpush2.bf16.msra.mxu0 0
      %3776 = vmatprep.subr.bf16.mxu0 0
      %3777 = vmatpush2.bf16.msra.mxu0 0
      %3778 = vmatprep.subr.bf16.mxu0 0
      %3779 = vmatpush2.bf16.msra.mxu0 0
      %3780 = vmatprep.subr.bf16.mxu0 0
      %3781 = vmatpush2.bf16.msra.mxu0 0
      %3782 = vmatprep.subr.bf16.mxu0 0
      %3783 = vmatpush2.bf16.msra.mxu0 0
      %3784 = vmatprep.subr.bf16.mxu0 0
      %3785 = vmatpush2.bf16.msra.mxu0 0
      %3786 = vmatprep.subr.bf16.mxu0 0
      %3787 = vmatpush2.bf16.msra.mxu0 0
      %3788 = vmatprep.mubr.bf16.mxu0 0
      %3789 = vmatmul.mubr.bf16.gmra.mxu0 %v3604
      %v3790 = vpop.f32.mrf.mxu0
      %v3791 = vadd.f32 %v3742, %v3790
      %v3792 = vpop.f32.mrf.mxu0
      %v3793 = vpop.f32.mrf.mxu0
      %v3794 = vadd.f32 %v3745, %v3793
      %v3795 = vpop.f32.mrf.mxu0
      %3796 = vmatprep.mubr.bf16.mxu0 0
      %3797 = vmatmul.mubr.bf16.gmra.mxu0 %v3607
      %v3798 = vpop.f32.mrf.mxu0
      %v3799 = vadd.f32 %v3750, %v3798
      %v3800 = vpop.f32.mrf.mxu0
      %v3801 = vpop.f32.mrf.mxu0
      %v3802 = vadd.f32 %v3753, %v3801
      %v3803 = vpop.f32.mrf.mxu0
      %3804 = vdwg.mxu0
      %v3805 = vmax.f32 %v3791, 0.0
      %v3806 = vmax.f32 %v3794, 0.0
      %v3807 = vmax.f32 %v3799, 0.0
      %v3808 = vmax.f32 %v3802, 0.0
      %v3809 = vpack.c.bf16 %v3806, %v3805
      %v3810 = vpack.c.bf16 %v3808, %v3807
      %v3812 = vsel %vm1556, %v3809, 0
      %v3815 = vsel %vm1556, %v3810, 0
      %3817 = vmatprep.subr.bf16.mxu0 0
      %3818 = vmatpush1.bf16.msra.mxu0 0
      %3819 = vmatprep.subr.bf16.mxu0 0
      %3820 = vmatpush1.bf16.msra.mxu0 0
      %3821 = vmatprep.subr.bf16.mxu0 0
      %3822 = vmatpush1.bf16.msra.mxu0 0
      %3823 = vmatprep.subr.bf16.mxu0 0
      %3824 = vmatpush1.bf16.msra.mxu0 0
      %3825 = vmatprep.subr.bf16.mxu0 0
      %3826 = vmatpush1.bf16.msra.mxu0 0
      %3827 = vmatprep.subr.bf16.mxu0 0
      %3828 = vmatpush1.bf16.msra.mxu0 0
      %3829 = vmatprep.subr.bf16.mxu0 0
      %3830 = vmatpush1.bf16.msra.mxu0 0
      %3831 = vmatprep.subr.bf16.mxu0 0
      %3832 = vmatpush1.bf16.msra.mxu0 %v2379
      %3833 = vmatprep.subr.bf16.mxu0 0
      %3834 = vmatpush2.bf16.msra.mxu0 0
      %3835 = vmatprep.subr.bf16.mxu0 0
      %3836 = vmatpush2.bf16.msra.mxu0 0
      %3837 = vmatprep.subr.bf16.mxu0 0
      %3838 = vmatpush2.bf16.msra.mxu0 0
      %3839 = vmatprep.subr.bf16.mxu0 0
      %3840 = vmatpush2.bf16.msra.mxu0 0
      %3841 = vmatprep.subr.bf16.mxu0 0
      %3842 = vmatpush2.bf16.msra.mxu0 0
      %3843 = vmatprep.subr.bf16.mxu0 0
      %3844 = vmatpush2.bf16.msra.mxu0 0
      %3845 = vmatprep.subr.bf16.mxu0 0
      %3846 = vmatpush2.bf16.msra.mxu0 0
      %3847 = vmatprep.subr.bf16.mxu0 0
      %3848 = vmatpush2.bf16.msra.mxu0 0
      %3849 = vmatprep.mubr.bf16.mxu0 0
      %3850 = vmatmul.mubr.bf16.gmra.mxu0 %v3812
      %v3851 = vpop.f32.mrf.mxu0
      %v3852 = vadd.f32 0.0, %v3851
      %v3853 = vpop.f32.mrf.mxu0
      %v3854 = vpop.f32.mrf.mxu0
      %v3855 = vadd.f32 0.0, %v3854
      %v3856 = vpop.f32.mrf.mxu0
      %3857 = vmatprep.mubr.bf16.mxu0 0
      %3858 = vmatmul.mubr.bf16.gmra.mxu0 %v3815
      %v3859 = vpop.f32.mrf.mxu0
      %v3860 = vadd.f32 0.0, %v3859
      %v3861 = vpop.f32.mrf.mxu0
      %v3862 = vpop.f32.mrf.mxu0
      %v3863 = vadd.f32 0.0, %v3862
      %v3864 = vpop.f32.mrf.mxu0
      %3865 = vdwg.mxu0
      %v3866 = vpack.c.bf16 %v3855, %v3852
      %v3867 = vpack.c.bf16 %v3863, %v3860
      %3871 = vrot.lane.b32.xlu0 %v3866, 5
      %v3872 = vpop.permute.xlu0 %3871
      %3873 = vrot.lane.b32.xlu0 %v3867, 5
      %v3874 = vpop.permute.xlu0 %3873
      %3875 = vrot.lane.b32.xlu0 %v2672, 5
      %v3876 = vpop.permute.xlu0 %3875
      %v3878 = vsel %vm1190, 0, %v3872
      %v3880 = vsel %vm1190, 0, %v3874
      %v3882 = vsel %vm1190, 0, %v3876
      %v3883 = vsel %vm1193, %v3878, 0
      %v3885 = vsel %vm1193, %v3880, 0
      %v3887 = vsel %vm1193, %v3882, 0
      %v3889 = vmul.bf16 %v3883, %v1202
      %v3890 = vmul.bf16 %v3885, %v1202
      %v3891 = vmul.bf16 %v3887, %v1202
      %v3892 = vmul.bf16 %v3883, %v1213
      %v3893 = vmul.bf16 %v3885, %v1213
      %v3894 = vmul.bf16 %v3887, %v1213
      %v3895 = vmul.bf16 %v3883, %v1218
      %v3896 = vmul.bf16 %v3885, %v1218
      %v3897 = vmul.bf16 %v3887, %v1218
      %v3898 = vmul.bf16 %v3883, %v1222
      %v3899 = vmul.bf16 %v3885, %v1222
      %v3900 = vmul.bf16 %v3887, %v1222
      %v3901 = vmul.bf16 %v3883, %v1226
      %v3902 = vmul.bf16 %v3885, %v1226
      %v3903 = vmul.bf16 %v3887, %v1226
      %v3904 = vmul.bf16 %v3883, %v1230
      %v3905 = vmul.bf16 %v3885, %v1230
      %v3906 = vmul.bf16 %v3887, %v1230
      %3910 = vrot.lane.b32.xlu0 %v3883, 127
      %v3911 = vpop.permute.xlu0 %3910
      %3912 = vrot.lane.b32.xlu0 %v3885, 127
      %v3913 = vpop.permute.xlu0 %3912
      %3914 = vrot.lane.b32.xlu0 %v3887, 127
      %v3915 = vpop.permute.xlu0 %3914
      %3922 = vrot.lane.b32.xlu0 %v3892, 126
      %v3923 = vpop.permute.xlu0 %3922
      %3924 = vrot.lane.b32.xlu0 %v3893, 126
      %v3925 = vpop.permute.xlu0 %3924
      %3926 = vrot.lane.b32.xlu0 %v3894, 126
      %v3927 = vpop.permute.xlu0 %3926
      %3934 = vrot.lane.b32.xlu0 %v3895, 124
      %v3935 = vpop.permute.xlu0 %3934
      %3936 = vrot.lane.b32.xlu0 %v3896, 124
      %v3937 = vpop.permute.xlu0 %3936
      %3938 = vrot.lane.b32.xlu0 %v3897, 124
      %v3939 = vpop.permute.xlu0 %3938
      %3943 = vrot.lane.b32.xlu0 %v3883, 123
      %v3944 = vpop.permute.xlu0 %3943
      %3945 = vrot.lane.b32.xlu0 %v3885, 123
      %v3946 = vpop.permute.xlu0 %3945
      %3947 = vrot.lane.b32.xlu0 %v3887, 123
      %v3948 = vpop.permute.xlu0 %3947
      %3955 = vrot.lane.b32.xlu0 %v3898, 122
      %v3956 = vpop.permute.xlu0 %3955
      %3957 = vrot.lane.b32.xlu0 %v3899, 122
      %v3958 = vpop.permute.xlu0 %3957
      %3959 = vrot.lane.b32.xlu0 %v3900, 122
      %v3960 = vpop.permute.xlu0 %3959
      %3967 = vrot.lane.b32.xlu0 %v3901, 120
      %v3968 = vpop.permute.xlu0 %3967
      %3969 = vrot.lane.b32.xlu0 %v3902, 120
      %v3970 = vpop.permute.xlu0 %3969
      %3971 = vrot.lane.b32.xlu0 %v3903, 120
      %v3972 = vpop.permute.xlu0 %3971
      %3976 = vrot.lane.b32.xlu0 %v3883, 119
      %v3977 = vpop.permute.xlu0 %3976
      %3978 = vrot.lane.b32.xlu0 %v3885, 119
      %v3979 = vpop.permute.xlu0 %3978
      %3980 = vrot.lane.b32.xlu0 %v3887, 119
      %v3981 = vpop.permute.xlu0 %3980
      %3988 = vrot.lane.b32.xlu0 %v3904, 118
      %v3989 = vpop.permute.xlu0 %3988
      %3990 = vrot.lane.b32.xlu0 %v3905, 118
      %v3991 = vpop.permute.xlu0 %3990
      %3992 = vrot.lane.b32.xlu0 %v3906, 118
      %v3993 = vpop.permute.xlu0 %3992
      %v3997 = vld [vmem:[%s1 + $0x7c] sm:$0xff]
      %v3998 = vld [vmem:[%s1 + $0x84] sm:$0xff]
      %v3999 = vld [vmem:[%s1 + $0x8c] sm:$0xf]
      %v4000 = vld [vmem:[%s1 + $0x12c] sm:$0xff]
      %v4001 = vld [vmem:[%s1 + $0x134] sm:$0xff]
      %v4002 = vld [vmem:[%s1 + $0x13c] sm:$0xf]
      %v4009 = vunpack.c.l.b16 %v3997
      %v4010 = vunpack.c.h.b16 %v3997
      %v4011 = vunpack.c.l.b16 %v3998
      %v4012 = vunpack.c.h.b16 %v3998
      %v4013 = vunpack.c.l.b16 %v3999
      %v4014 = vunpack.c.l.b16 %v4000
      %v4015 = vunpack.c.h.b16 %v4000
      %v4016 = vunpack.c.l.b16 %v4001
      %v4017 = vunpack.c.h.b16 %v4001
      %v4018 = vunpack.c.l.b16 %v4002
      %v4019 = vpack.c.b16 %v4014, %v4009
      %v4020 = vpack.c.b16 %v4015, %v4010
      %v4021 = vpack.c.b16 %v4016, %v4011
      %v4022 = vpack.c.b16 %v4017, %v4012
      %v4023 = vpack.c.b16 %v4018, %v4013
      %v4029 = vsel %vm2211, %v4023, 0
      %4031 = vmatprep.subr.bf16.mxu0 0
      %4032 = vmatpush1.bf16.msra.mxu0 %v3915
      %4033 = vmatprep.subr.bf16.mxu0 0
      %4034 = vmatpush1.bf16.msra.mxu0 %v2479
      %4035 = vmatprep.subr.bf16.mxu0 0
      %4036 = vmatpush1.bf16.msra.mxu0 %v3913
      %4037 = vmatprep.subr.bf16.mxu0 0
      %4038 = vmatpush1.bf16.msra.mxu0 %v3911
      %4039 = vmatprep.subr.bf16.mxu0 0
      %4040 = vmatpush1.bf16.msra.mxu0 %v3891
      %4041 = vmatprep.subr.bf16.mxu0 0
      %4042 = vmatpush1.bf16.msra.mxu0 %v2455
      %4043 = vmatprep.subr.bf16.mxu0 0
      %4044 = vmatpush1.bf16.msra.mxu0 %v3890
      %4045 = vmatprep.subr.bf16.mxu0 0
      %4046 = vmatpush1.bf16.msra.mxu0 %v3889
      %4047 = vmatprep.subr.bf16.mxu0 0
      %4048 = vmatpush2.bf16.msra.mxu0 %v3939
      %4049 = vmatprep.subr.bf16.mxu0 0
      %4050 = vmatpush2.bf16.msra.mxu0 %v2503
      %4051 = vmatprep.subr.bf16.mxu0 0
      %4052 = vmatpush2.bf16.msra.mxu0 %v3937
      %4053 = vmatprep.subr.bf16.mxu0 0
      %4054 = vmatpush2.bf16.msra.mxu0 %v3935
      %4055 = vmatprep.subr.bf16.mxu0 0
      %4056 = vmatpush2.bf16.msra.mxu0 %v3927
      %4057 = vmatprep.subr.bf16.mxu0 0
      %4058 = vmatpush2.bf16.msra.mxu0 %v2491
      %4059 = vmatprep.subr.bf16.mxu0 0
      %4060 = vmatpush2.bf16.msra.mxu0 %v3925
      %4061 = vmatprep.subr.bf16.mxu0 0
      %4062 = vmatpush2.bf16.msra.mxu0 %v3923
      %4063 = vmatprep.mubr.bf16.mxu0 %v4020
      %4064 = vmatmul.mubr.bf16.gmra.mxu0 %v4019
      %v4065 = vpop.f32.mrf.mxu0
      %v4066 = vadd.f32 0.0, %v4065
      %v4067 = vpop.f32.mrf.mxu0
      %v4068 = vpop.f32.mrf.mxu0
      %v4069 = vadd.f32 0.0, %v4068
      %v4070 = vpop.f32.mrf.mxu0
      %4071 = vdwg.mxu0
      %4072 = vmatprep.subr.bf16.mxu0 0
      %4073 = vmatpush1.bf16.msra.mxu0 %v3960
      %4074 = vmatprep.subr.bf16.mxu0 0
      %4075 = vmatpush1.bf16.msra.mxu0 %v2524
      %4076 = vmatprep.subr.bf16.mxu0 0
      %4077 = vmatpush1.bf16.msra.mxu0 %v3958
      %4078 = vmatprep.subr.bf16.mxu0 0
      %4079 = vmatpush1.bf16.msra.mxu0 %v3956
      %4080 = vmatprep.subr.bf16.mxu0 0
      %4081 = vmatpush1.bf16.msra.mxu0 %v3948
      %4082 = vmatprep.subr.bf16.mxu0 0
      %4083 = vmatpush1.bf16.msra.mxu0 %v2512
      %4084 = vmatprep.subr.bf16.mxu0 0
      %4085 = vmatpush1.bf16.msra.mxu0 %v3946
      %4086 = vmatprep.subr.bf16.mxu0 0
      %4087 = vmatpush1.bf16.msra.mxu0 %v3944
      %4088 = vmatprep.subr.bf16.mxu0 0
      %4089 = vmatpush2.bf16.msra.mxu0 %v3981
      %4090 = vmatprep.subr.bf16.mxu0 0
      %4091 = vmatpush2.bf16.msra.mxu0 %v2545
      %4092 = vmatprep.subr.bf16.mxu0 0
      %4093 = vmatpush2.bf16.msra.mxu0 %v3979
      %4094 = vmatprep.subr.bf16.mxu0 0
      %4095 = vmatpush2.bf16.msra.mxu0 %v3977
      %4096 = vmatprep.subr.bf16.mxu0 0
      %4097 = vmatpush2.bf16.msra.mxu0 %v3972
      %4098 = vmatprep.subr.bf16.mxu0 0
      %4099 = vmatpush2.bf16.msra.mxu0 %v2536
      %4100 = vmatprep.subr.bf16.mxu0 0
      %4101 = vmatpush2.bf16.msra.mxu0 %v3970
      %4102 = vmatprep.subr.bf16.mxu0 0
      %4103 = vmatpush2.bf16.msra.mxu0 %v3968
      %4104 = vmatprep.mubr.bf16.mxu0 %v4022
      %4105 = vmatmul.mubr.bf16.gmra.mxu0 %v4021
      %v4106 = vpop.f32.mrf.mxu0
      %v4107 = vadd.f32 %v4066, %v4106
      %v4108 = vpop.f32.mrf.mxu0
      %v4109 = vpop.f32.mrf.mxu0
      %v4110 = vadd.f32 %v4069, %v4109
      %v4111 = vpop.f32.mrf.mxu0
      %4112 = vdwg.mxu0
      %4113 = vmatprep.subr.bf16.mxu0 0
      %4114 = vmatpush1.bf16.msra.mxu0 0
      %4115 = vmatprep.subr.bf16.mxu0 0
      %4116 = vmatpush1.bf16.msra.mxu0 0
      %4117 = vmatprep.subr.bf16.mxu0 0
      %4118 = vmatpush1.bf16.msra.mxu0 0
      %4119 = vmatprep.subr.bf16.mxu0 0
      %4120 = vmatpush1.bf16.msra.mxu0 %v1280
      %4121 = vmatprep.subr.bf16.mxu0 0
      %4122 = vmatpush1.bf16.msra.mxu0 %v3993
      %4123 = vmatprep.subr.bf16.mxu0 0
      %4124 = vmatpush1.bf16.msra.mxu0 %v2557
      %4125 = vmatprep.subr.bf16.mxu0 0
      %4126 = vmatpush1.bf16.msra.mxu0 %v3991
      %4127 = vmatprep.subr.bf16.mxu0 0
      %4128 = vmatpush1.bf16.msra.mxu0 %v3989
      %4129 = vmatprep.subr.bf16.mxu0 0
      %4130 = vmatpush2.bf16.msra.mxu0 0
      %4131 = vmatprep.subr.bf16.mxu0 0
      %4132 = vmatpush2.bf16.msra.mxu0 0
      %4133 = vmatprep.subr.bf16.mxu0 0
      %4134 = vmatpush2.bf16.msra.mxu0 0
      %4135 = vmatprep.subr.bf16.mxu0 0
      %4136 = vmatpush2.bf16.msra.mxu0 0
      %4137 = vmatprep.subr.bf16.mxu0 0
      %4138 = vmatpush2.bf16.msra.mxu0 0
      %4139 = vmatprep.subr.bf16.mxu0 0
      %4140 = vmatpush2.bf16.msra.mxu0 0
      %4141 = vmatprep.subr.bf16.mxu0 0
      %4142 = vmatpush2.bf16.msra.mxu0 0
      %4143 = vmatprep.subr.bf16.mxu0 0
      %4144 = vmatpush2.bf16.msra.mxu0 0
      %4145 = vmatprep.mubr.bf16.mxu0 0
      %4146 = vmatmul.mubr.bf16.gmra.mxu0 %v4029
      %v4147 = vpop.f32.mrf.mxu0
      %v4148 = vadd.f32 %v4107, %v4147
      %v4149 = vpop.f32.mrf.mxu0
      %v4150 = vpop.f32.mrf.mxu0
      %v4151 = vadd.f32 %v4110, %v4150
      %v4152 = vpop.f32.mrf.mxu0
      %4153 = vdwg.mxu0
      %v4154 = vmax.f32 %v4148, 0.0
      %v4155 = vmax.f32 %v4151, 0.0
      %v4156 = vpack.c.bf16 %v4155, %v4154
      %v4158 = vsel %vm1328, %v4156, 0
      %4160 = vmatprep.subr.bf16.mxu0 0
      %4161 = vmatpush1.bf16.msra.mxu0 0
      %4162 = vmatprep.subr.bf16.mxu0 0
      %4163 = vmatpush1.bf16.msra.mxu0 0
      %4164 = vmatprep.subr.bf16.mxu0 0
      %4165 = vmatpush1.bf16.msra.mxu0 0
      %4166 = vmatprep.subr.bf16.mxu0 0
      %4167 = vmatpush1.bf16.msra.mxu0 0
      %4168 = vmatprep.subr.bf16.mxu0 0
      %4169 = vmatpush1.bf16.msra.mxu0 0
      %4170 = vmatprep.subr.bf16.mxu0 0
      %4171 = vmatpush1.bf16.msra.mxu0 0
      %4172 = vmatprep.subr.bf16.mxu0 0
      %4173 = vmatpush1.bf16.msra.mxu0 0
      %4174 = vmatprep.subr.bf16.mxu0 0
      %4175 = vmatpush1.bf16.msra.mxu0 %v2679
      %4176 = vmatprep.subr.bf16.mxu0 0
      %4177 = vmatpush2.bf16.msra.mxu0 0
      %4178 = vmatprep.subr.bf16.mxu0 0
      %4179 = vmatpush2.bf16.msra.mxu0 0
      %4180 = vmatprep.subr.bf16.mxu0 0
      %4181 = vmatpush2.bf16.msra.mxu0 0
      %4182 = vmatprep.subr.bf16.mxu0 0
      %4183 = vmatpush2.bf16.msra.mxu0 0
      %4184 = vmatprep.subr.bf16.mxu0 0
      %4185 = vmatpush2.bf16.msra.mxu0 0
      %4186 = vmatprep.subr.bf16.mxu0 0
      %4187 = vmatpush2.bf16.msra.mxu0 0
      %4188 = vmatprep.subr.bf16.mxu0 0
      %4189 = vmatpush2.bf16.msra.mxu0 0
      %4190 = vmatprep.subr.bf16.mxu0 0
      %4191 = vmatpush2.bf16.msra.mxu0 0
      %4192 = vmatprep.mubr.bf16.mxu0 0
      %4193 = vmatmul.mubr.bf16.gmra.mxu0 %v4158
      %v4194 = vpop.f32.mrf.mxu0
      %v4195 = vadd.f32 0.0, %v4194
      %v4196 = vpop.f32.mrf.mxu0
      %v4197 = vpop.f32.mrf.mxu0
      %v4198 = vadd.f32 0.0, %v4197
      %v4199 = vpop.f32.mrf.mxu0
      %4200 = vdwg.mxu0
      %v4201 = vpack.c.bf16 %v4198, %v4195
      %4204 = vrot.lane.b32.xlu0 %v4201, 9
      %v4205 = vpop.permute.xlu0 %4204
      %4206 = vrot.lane.b32.xlu0 %v2918, 9
      %v4207 = vpop.permute.xlu0 %4206
      %v4209 = vsel %vm948, 0, %v4205
      %v4211 = vsel %vm948, 0, %v4207
      %v4212 = vsel %vm951, %v4209, 0
      %v4214 = vsel %vm951, %v4211, 0
      %v4216 = vmul.bf16 %v4212, %v960
      %v4217 = vmul.bf16 %v4214, %v960
      %v4218 = vmul.bf16 %v4212, %v971
      %v4219 = vmul.bf16 %v4214, %v971
      %v4220 = vmul.bf16 %v4212, %v976
      %v4221 = vmul.bf16 %v4214, %v976
      %v4222 = vmul.bf16 %v4212, %v980
      %v4223 = vmul.bf16 %v4214, %v980
      %v4224 = vmul.bf16 %v4212, %v984
      %v4225 = vmul.bf16 %v4214, %v984
      %v4226 = vmul.bf16 %v4212, %v988
      %v4227 = vmul.bf16 %v4214, %v988
      %4230 = vrot.lane.b32.xlu0 %v4212, 127
      %v4231 = vpop.permute.xlu0 %4230
      %4232 = vrot.lane.b32.xlu0 %v4214, 127
      %v4233 = vpop.permute.xlu0 %4232
      %4238 = vrot.lane.b32.xlu0 %v4218, 126
      %v4239 = vpop.permute.xlu0 %4238
      %4240 = vrot.lane.b32.xlu0 %v4219, 126
      %v4241 = vpop.permute.xlu0 %4240
      %4246 = vrot.lane.b32.xlu0 %v4220, 120
      %v4247 = vpop.permute.xlu0 %4246
      %4248 = vrot.lane.b32.xlu0 %v4221, 120
      %v4249 = vpop.permute.xlu0 %4248
      %4252 = vrot.lane.b32.xlu0 %v4212, 119
      %v4253 = vpop.permute.xlu0 %4252
      %4254 = vrot.lane.b32.xlu0 %v4214, 119
      %v4255 = vpop.permute.xlu0 %4254
      %4260 = vrot.lane.b32.xlu0 %v4222, 118
      %v4261 = vpop.permute.xlu0 %4260
      %4262 = vrot.lane.b32.xlu0 %v4223, 118
      %v4263 = vpop.permute.xlu0 %4262
      %4268 = vrot.lane.b32.xlu0 %v4224, 112
      %v4269 = vpop.permute.xlu0 %4268
      %4270 = vrot.lane.b32.xlu0 %v4225, 112
      %v4271 = vpop.permute.xlu0 %4270
      %4274 = vrot.lane.b32.xlu0 %v4212, 111
      %v4275 = vpop.permute.xlu0 %4274
      %4276 = vrot.lane.b32.xlu0 %v4214, 111
      %v4277 = vpop.permute.xlu0 %4276
      %4282 = vrot.lane.b32.xlu0 %v4226, 110
      %v4283 = vpop.permute.xlu0 %4282
      %4284 = vrot.lane.b32.xlu0 %v4227, 110
      %v4285 = vpop.permute.xlu0 %4284
      %v4288 = vld [vmem:[%s1 + $0x90] sm:$0xff]
      %v4289 = vld [vmem:[%s1 + $0x98] sm:$0xff]
      %v4290 = vld [vmem:[%s1 + $0x140] sm:$0xff]
      %v4291 = vld [vmem:[%s1 + $0x148] sm:$0xff]
      %v4296 = vunpack.c.l.b16 %v4288
      %v4297 = vunpack.c.h.b16 %v4288
      %v4298 = vunpack.c.l.b16 %v4289
      %v4299 = vunpack.c.h.b16 %v4289
      %v4300 = vunpack.c.l.b16 %v4290
      %v4301 = vunpack.c.h.b16 %v4290
      %v4302 = vunpack.c.l.b16 %v4291
      %v4303 = vunpack.c.h.b16 %v4291
      %v4304 = vpack.c.b16 %v4300, %v4296
      %v4305 = vpack.c.b16 %v4301, %v4297
      %v4306 = vpack.c.b16 %v4302, %v4298
      %v4307 = vpack.c.b16 %v4303, %v4299
      %v4312 = vsel %vm2584, %v4307, 0
      %4314 = vmatprep.subr.bf16.mxu0 0
      %4315 = vmatpush1.bf16.msra.mxu0 %v2765
      %4316 = vmatprep.subr.bf16.mxu0 0
      %4317 = vmatpush1.bf16.msra.mxu0 %v4239
      %4318 = vmatprep.subr.bf16.mxu0 0
      %4319 = vmatpush1.bf16.msra.mxu0 %v4233
      %4320 = vmatprep.subr.bf16.mxu0 0
      %4321 = vmatpush1.bf16.msra.mxu0 %v2757
      %4322 = vmatprep.subr.bf16.mxu0 0
      %4323 = vmatpush1.bf16.msra.mxu0 %v4231
      %4324 = vmatprep.subr.bf16.mxu0 0
      %4325 = vmatpush1.bf16.msra.mxu0 %v4217
      %4326 = vmatprep.subr.bf16.mxu0 0
      %4327 = vmatpush1.bf16.msra.mxu0 %v2741
      %4328 = vmatprep.subr.bf16.mxu0 0
      %4329 = vmatpush1.bf16.msra.mxu0 %v4216
      %4330 = vmatprep.subr.bf16.mxu0 0
      %4331 = vmatpush2.bf16.msra.mxu0 %v4261
      %4332 = vmatprep.subr.bf16.mxu0 0
      %4333 = vmatpush2.bf16.msra.mxu0 %v4255
      %4334 = vmatprep.subr.bf16.mxu0 0
      %4335 = vmatpush2.bf16.msra.mxu0 %v2779
      %4336 = vmatprep.subr.bf16.mxu0 0
      %4337 = vmatpush2.bf16.msra.mxu0 %v4253
      %4338 = vmatprep.subr.bf16.mxu0 0
      %4339 = vmatpush2.bf16.msra.mxu0 %v4249
      %4340 = vmatprep.subr.bf16.mxu0 0
      %4341 = vmatpush2.bf16.msra.mxu0 %v2773
      %4342 = vmatprep.subr.bf16.mxu0 0
      %4343 = vmatpush2.bf16.msra.mxu0 %v4247
      %4344 = vmatprep.subr.bf16.mxu0 0
      %4345 = vmatpush2.bf16.msra.mxu0 %v4241
      %4346 = vmatprep.mubr.bf16.mxu0 %v4305
      %4347 = vmatmul.mubr.bf16.gmra.mxu0 %v4304
      %v4348 = vpop.f32.mrf.mxu0
      %v4349 = vadd.f32 0.0, %v4348
      %v4350 = vpop.f32.mrf.mxu0
      %v4351 = vpop.f32.mrf.mxu0
      %v4352 = vadd.f32 0.0, %v4351
      %v4353 = vpop.f32.mrf.mxu0
      %4354 = vdwg.mxu0
      %4355 = vmatprep.subr.bf16.mxu0 0
      %4356 = vmatpush1.bf16.msra.mxu0 %v4277
      %4357 = vmatprep.subr.bf16.mxu0 0
      %4358 = vmatpush1.bf16.msra.mxu0 %v2801
      %4359 = vmatprep.subr.bf16.mxu0 0
      %4360 = vmatpush1.bf16.msra.mxu0 %v4275
      %4361 = vmatprep.subr.bf16.mxu0 0
      %4362 = vmatpush1.bf16.msra.mxu0 %v4271
      %4363 = vmatprep.subr.bf16.mxu0 0
      %4364 = vmatpush1.bf16.msra.mxu0 %v2795
      %4365 = vmatprep.subr.bf16.mxu0 0
      %4366 = vmatpush1.bf16.msra.mxu0 %v4269
      %4367 = vmatprep.subr.bf16.mxu0 0
      %4368 = vmatpush1.bf16.msra.mxu0 %v4263
      %4369 = vmatprep.subr.bf16.mxu0 0
      %4370 = vmatpush1.bf16.msra.mxu0 %v2787
      %4371 = vmatprep.subr.bf16.mxu0 0
      %4372 = vmatpush2.bf16.msra.mxu0 0
      %4373 = vmatprep.subr.bf16.mxu0 0
      %4374 = vmatpush2.bf16.msra.mxu0 0
      %4375 = vmatprep.subr.bf16.mxu0 0
      %4376 = vmatpush2.bf16.msra.mxu0 0
      %4377 = vmatprep.subr.bf16.mxu0 0
      %4378 = vmatpush2.bf16.msra.mxu0 0
      %4379 = vmatprep.subr.bf16.mxu0 0
      %4380 = vmatpush2.bf16.msra.mxu0 %v1280
      %4381 = vmatprep.subr.bf16.mxu0 0
      %4382 = vmatpush2.bf16.msra.mxu0 %v4285
      %4383 = vmatprep.subr.bf16.mxu0 0
      %4384 = vmatpush2.bf16.msra.mxu0 %v2809
      %4385 = vmatprep.subr.bf16.mxu0 0
      %4386 = vmatpush2.bf16.msra.mxu0 %v4283
      %4387 = vmatprep.mubr.bf16.mxu0 %v4312
      %4388 = vmatmul.mubr.bf16.gmra.mxu0 %v4306
      %v4389 = vpop.f32.mrf.mxu0
      %v4390 = vadd.f32 %v4349, %v4389
      %v4391 = vpop.f32.mrf.mxu0
      %v4392 = vpop.f32.mrf.mxu0
      %v4393 = vadd.f32 %v4352, %v4392
      %v4394 = vpop.f32.mrf.mxu0
      %4395 = vdwg.mxu0
      %v4396 = vmax.f32 %v4390, 0.0
      %v4397 = vmax.f32 %v4393, 0.0
      %v4398 = vpack.c.bf16 %v4397, %v4396
      %v4400 = vsel %vm1101, %v4398, 0
      %4402 = vmatprep.subr.bf16.mxu0 0
      %4403 = vmatpush1.bf16.msra.mxu0 0
      %4404 = vmatprep.subr.bf16.mxu0 0
      %4405 = vmatpush1.bf16.msra.mxu0 0
      %4406 = vmatprep.subr.bf16.mxu0 0
      %4407 = vmatpush1.bf16.msra.mxu0 0
      %4408 = vmatprep.subr.bf16.mxu0 0
      %4409 = vmatpush1.bf16.msra.mxu0 0
      %4410 = vmatprep.subr.bf16.mxu0 %v2958
      %4411 = vmatpush1.bf16.msra.mxu0 %v2957
      %4412 = vmatprep.subr.bf16.mxu0 %v2956
      %4413 = vmatpush1.bf16.msra.mxu0 %v2955
      %4414 = vmatprep.subr.bf16.mxu0 %v2954
      %4415 = vmatpush1.bf16.msra.mxu0 %v2953
      %4416 = vmatprep.subr.bf16.mxu0 %v2952
      %4417 = vmatpush1.bf16.msra.mxu0 %v2951
      %4418 = vmatprep.subr.bf16.mxu0 0
      %4419 = vmatpush2.bf16.msra.mxu0 0
      %4420 = vmatprep.subr.bf16.mxu0 0
      %4421 = vmatpush2.bf16.msra.mxu0 0
      %4422 = vmatprep.subr.bf16.mxu0 0
      %4423 = vmatpush2.bf16.msra.mxu0 0
      %4424 = vmatprep.subr.bf16.mxu0 0
      %4425 = vmatpush2.bf16.msra.mxu0 0
      %4426 = vmatprep.subr.bf16.mxu0 0
      %4427 = vmatpush2.bf16.msra.mxu0 0
      %4428 = vmatprep.subr.bf16.mxu0 0
      %4429 = vmatpush2.bf16.msra.mxu0 0
      %4430 = vmatprep.subr.bf16.mxu0 0
      %4431 = vmatpush2.bf16.msra.mxu0 0
      %4432 = vmatprep.subr.bf16.mxu0 0
      %4433 = vmatpush2.bf16.msra.mxu0 0
      %4434 = vmatprep.mubr.bf16.mxu0 0
      %4435 = vmatmul.mubr.bf16.gmra.mxu0 %v4400
      %v4436 = vpop.f32.mrf.mxu0
      %v4437 = vadd.f32 0.0, %v4436
      %v4438 = vpop.f32.mrf.mxu0
      %v4439 = vadd.f32 0.0, %v4438
      %v4440 = vpop.f32.mrf.mxu0
      %v4441 = vadd.f32 0.0, %v4440
      %v4442 = vpop.f32.mrf.mxu0
      %v4443 = vadd.f32 0.0, %v4442
      %4444 = vdwg.mxu0
      %v4445 = vpack.c.bf16 %v4441, %v4437
      %v4446 = vpack.c.bf16 %v4443, %v4439
      %v4449 = vrot.slane %v3375, 4
      %v4450 = vrot.slane %v3376, 4
      %v4453 = vsel %vm646, %v734, %v4449
      %v4456 = vsel %vm646, %v735, %v4450
      %4461 = vrot.lane.b32.xlu0 %v4445, 17
      %v4462 = vpop.permute.xlu0 %4461
      %4463 = vrot.lane.b32.xlu0 %v4446, 17
      %v4464 = vpop.permute.xlu0 %4463
      %4465 = vrot.lane.b32.xlu0 %v4453, 17
      %v4466 = vpop.permute.xlu0 %4465
      %4467 = vrot.lane.b32.xlu0 %v4456, 17
      %v4468 = vpop.permute.xlu0 %4467
      %v4469 = vsel %vm404, %v4462, %v4464
      %v4470 = vsel %vm404, %v4466, %v4468
      %v4474 = vsel %vm407, 0, %v4462
      %v4477 = vsel %vm407, 0, %v4466
      %v4480 = vsel %vm407, %v4464, 0
      %v4483 = vsel %vm407, %v4468, 0
      %v4485 = vmul.bf16 %v4474, %v444
      %v4486 = vmul.bf16 %v4469, %v451
      %v4487 = vmul.bf16 %v4477, %v444
      %v4488 = vmul.bf16 %v4470, %v451
      %v4489 = vmul.bf16 %v4474, %v471
      %v4490 = vmul.bf16 %v4469, %v475
      %v4491 = vmul.bf16 %v4480, %v473
      %v4492 = vmul.bf16 %v4477, %v471
      %v4493 = vmul.bf16 %v4470, %v475
      %v4494 = vmul.bf16 %v4483, %v473
      %v4495 = vmul.bf16 %v4474, %v485
      %v4496 = vmul.bf16 %v4469, %v489
      %v4497 = vmul.bf16 %v4480, %v487
      %v4498 = vmul.bf16 %v4477, %v485
      %v4499 = vmul.bf16 %v4470, %v489
      %v4500 = vmul.bf16 %v4483, %v487
      %v4501 = vmul.bf16 %v4474, %v497
      %v4502 = vmul.bf16 %v4469, %v501
      %v4503 = vmul.bf16 %v4480, %v499
      %v4504 = vmul.bf16 %v4477, %v497
      %v4505 = vmul.bf16 %v4470, %v501
      %v4506 = vmul.bf16 %v4483, %v499
      %v4507 = vmul.bf16 %v4474, %v509
      %v4508 = vmul.bf16 %v4469, %v513
      %v4509 = vmul.bf16 %v4480, %v511
      %v4510 = vmul.bf16 %v4477, %v509
      %v4511 = vmul.bf16 %v4470, %v513
      %v4512 = vmul.bf16 %v4483, %v511
      %v4513 = vmul.bf16 %v4474, %v521
      %v4514 = vmul.bf16 %v4469, %v525
      %v4515 = vmul.bf16 %v4480, %v523
      %v4516 = vmul.bf16 %v4477, %v521
      %v4517 = vmul.bf16 %v4470, %v525
      %v4518 = vmul.bf16 %v4483, %v523
      %4523 = vrot.lane.b32.xlu0 %v4474, 127
      %v4524 = vpop.permute.xlu0 %4523
      %4525 = vrot.lane.b32.xlu0 %v4469, 127
      %v4526 = vpop.permute.xlu0 %4525
      %4527 = vrot.lane.b32.xlu0 %v4480, 127
      %v4528 = vpop.permute.xlu0 %4527
      %4529 = vrot.lane.b32.xlu0 %v4477, 127
      %v4530 = vpop.permute.xlu0 %4529
      %4531 = vrot.lane.b32.xlu0 %v4470, 127
      %v4532 = vpop.permute.xlu0 %4531
      %4533 = vrot.lane.b32.xlu0 %v4483, 127
      %v4534 = vpop.permute.xlu0 %4533
      %v4535 = vsel %vm543, %v4524, %v4526
      %v4536 = vsel %vm543, %v4526, %v4528
      %v4537 = vsel %vm543, %v4530, %v4532
      %v4538 = vsel %vm543, %v4532, %v4534
      %4549 = vrot.lane.b32.xlu0 %v4489, 126
      %v4550 = vpop.permute.xlu0 %4549
      %4551 = vrot.lane.b32.xlu0 %v4490, 126
      %v4552 = vpop.permute.xlu0 %4551
      %4553 = vrot.lane.b32.xlu0 %v4491, 126
      %v4554 = vpop.permute.xlu0 %4553
      %4555 = vrot.lane.b32.xlu0 %v4492, 126
      %v4556 = vpop.permute.xlu0 %4555
      %4557 = vrot.lane.b32.xlu0 %v4493, 126
      %v4558 = vpop.permute.xlu0 %4557
      %4559 = vrot.lane.b32.xlu0 %v4494, 126
      %v4560 = vpop.permute.xlu0 %4559
      %v4561 = vsel %vm558, %v4550, %v4552
      %v4562 = vsel %vm558, %v4552, %v4554
      %v4563 = vsel %vm558, %v4556, %v4558
      %v4564 = vsel %vm558, %v4558, %v4560
      %4575 = vrot.lane.b32.xlu0 %v4495, 112
      %v4576 = vpop.permute.xlu0 %4575
      %4577 = vrot.lane.b32.xlu0 %v4496, 112
      %v4578 = vpop.permute.xlu0 %4577
      %4579 = vrot.lane.b32.xlu0 %v4497, 112
      %v4580 = vpop.permute.xlu0 %4579
      %4581 = vrot.lane.b32.xlu0 %v4498, 112
      %v4582 = vpop.permute.xlu0 %4581
      %4583 = vrot.lane.b32.xlu0 %v4499, 112
      %v4584 = vpop.permute.xlu0 %4583
      %4585 = vrot.lane.b32.xlu0 %v4500, 112
      %v4586 = vpop.permute.xlu0 %4585
      %v4587 = vsel %vm573, %v4576, %v4578
      %v4588 = vsel %vm573, %v4578, %v4580
      %v4589 = vsel %vm573, %v4582, %v4584
      %v4590 = vsel %vm573, %v4584, %v4586
      %4595 = vrot.lane.b32.xlu0 %v4474, 111
      %v4596 = vpop.permute.xlu0 %4595
      %4597 = vrot.lane.b32.xlu0 %v4469, 111
      %v4598 = vpop.permute.xlu0 %4597
      %4599 = vrot.lane.b32.xlu0 %v4480, 111
      %v4600 = vpop.permute.xlu0 %4599
      %4601 = vrot.lane.b32.xlu0 %v4477, 111
      %v4602 = vpop.permute.xlu0 %4601
      %4603 = vrot.lane.b32.xlu0 %v4470, 111
      %v4604 = vpop.permute.xlu0 %4603
      %4605 = vrot.lane.b32.xlu0 %v4483, 111
      %v4606 = vpop.permute.xlu0 %4605
      %v4607 = vsel %vm582, %v4596, %v4598
      %v4608 = vsel %vm582, %v4598, %v4600
      %v4609 = vsel %vm582, %v4602, %v4604
      %v4610 = vsel %vm582, %v4604, %v4606
      %4621 = vrot.lane.b32.xlu0 %v4501, 110
      %v4622 = vpop.permute.xlu0 %4621
      %4623 = vrot.lane.b32.xlu0 %v4502, 110
      %v4624 = vpop.permute.xlu0 %4623
      %4625 = vrot.lane.b32.xlu0 %v4503, 110
      %v4626 = vpop.permute.xlu0 %4625
      %4627 = vrot.lane.b32.xlu0 %v4504, 110
      %v4628 = vpop.permute.xlu0 %4627
      %4629 = vrot.lane.b32.xlu0 %v4505, 110
      %v4630 = vpop.permute.xlu0 %4629
      %4631 = vrot.lane.b32.xlu0 %v4506, 110
      %v4632 = vpop.permute.xlu0 %4631
      %v4633 = vsel %vm597, %v4622, %v4624
      %v4634 = vsel %vm597, %v4624, %v4626
      %v4635 = vsel %vm597, %v4628, %v4630
      %v4636 = vsel %vm597, %v4630, %v4632
      %4647 = vrot.lane.b32.xlu0 %v4507, 96
      %v4648 = vpop.permute.xlu0 %4647
      %4649 = vrot.lane.b32.xlu0 %v4508, 96
      %v4650 = vpop.permute.xlu0 %4649
      %4651 = vrot.lane.b32.xlu0 %v4509, 96
      %v4652 = vpop.permute.xlu0 %4651
      %4653 = vrot.lane.b32.xlu0 %v4510, 96
      %v4654 = vpop.permute.xlu0 %4653
      %4655 = vrot.lane.b32.xlu0 %v4511, 96
      %v4656 = vpop.permute.xlu0 %4655
      %4657 = vrot.lane.b32.xlu0 %v4512, 96
      %v4658 = vpop.permute.xlu0 %4657
      %v4659 = vsel %vm612, %v4648, %v4650
      %v4660 = vsel %vm612, %v4650, %v4652
      %v4661 = vsel %vm612, %v4654, %v4656
      %v4662 = vsel %vm612, %v4656, %v4658
      %4667 = vrot.lane.b32.xlu0 %v4474, 95
      %v4668 = vpop.permute.xlu0 %4667
      %4669 = vrot.lane.b32.xlu0 %v4469, 95
      %v4670 = vpop.permute.xlu0 %4669
      %4671 = vrot.lane.b32.xlu0 %v4480, 95
      %v4672 = vpop.permute.xlu0 %4671
      %4673 = vrot.lane.b32.xlu0 %v4477, 95
      %v4674 = vpop.permute.xlu0 %4673
      %4675 = vrot.lane.b32.xlu0 %v4470, 95
      %v4676 = vpop.permute.xlu0 %4675
      %4677 = vrot.lane.b32.xlu0 %v4483, 95
      %v4678 = vpop.permute.xlu0 %4677
      %v4679 = vsel %vm624, %v4668, %v4670
      %v4680 = vsel %vm624, %v4670, %v4672
      %v4681 = vsel %vm624, %v4674, %v4676
      %v4682 = vsel %vm624, %v4676, %v4678
      %4693 = vrot.lane.b32.xlu0 %v4513, 94
      %v4694 = vpop.permute.xlu0 %4693
      %4695 = vrot.lane.b32.xlu0 %v4514, 94
      %v4696 = vpop.permute.xlu0 %4695
      %4697 = vrot.lane.b32.xlu0 %v4515, 94
      %v4698 = vpop.permute.xlu0 %4697
      %4699 = vrot.lane.b32.xlu0 %v4516, 94
      %v4700 = vpop.permute.xlu0 %4699
      %4701 = vrot.lane.b32.xlu0 %v4517, 94
      %v4702 = vpop.permute.xlu0 %4701
      %4703 = vrot.lane.b32.xlu0 %v4518, 94
      %v4704 = vpop.permute.xlu0 %4703
      %v4705 = vsel %vm636, %v4694, %v4696
      %v4706 = vsel %vm636, %v4696, %v4698
      %v4707 = vsel %vm636, %v4700, %v4702
      %v4708 = vsel %vm636, %v4702, %v4704
      %v4713 = vld [vmem:[%s1 + $0xa0] sm:$0xff]
      %v4714 = vld [vmem:[%s1 + $0xa8] sm:$0xf]
      %v4717 = vunpack.c.l.b16 %v4713
      %v4718 = vunpack.c.h.b16 %v4713
      %v4719 = vunpack.c.l.b16 %v4714
      %v4720 = vpack.c.b16 %v4717, %v4717
      %v4721 = vpack.c.b16 %v4718, %v4718
      %v4722 = vpack.c.b16 %v4719, %v4719
      %v4726 = vsel %vm1804, %v4722, 0
      %4728 = vmatprep.subr.bf16.mxu0 %v4590
      %4729 = vmatpush1.bf16.msra.mxu0 %v4589
      %4730 = vmatprep.subr.bf16.mxu0 %v4588
      %4731 = vmatpush1.bf16.msra.mxu0 %v4587
      %4732 = vmatprep.subr.bf16.mxu0 %v4564
      %4733 = vmatpush1.bf16.msra.mxu0 %v4563
      %4734 = vmatprep.subr.bf16.mxu0 %v4562
      %4735 = vmatpush1.bf16.msra.mxu0 %v4561
      %4736 = vmatprep.subr.bf16.mxu0 %v4538
      %4737 = vmatpush1.bf16.msra.mxu0 %v4537
      %4738 = vmatprep.subr.bf16.mxu0 %v4536
      %4739 = vmatpush1.bf16.msra.mxu0 %v4535
      %4740 = vmatprep.subr.bf16.mxu0 %v4488
      %4741 = vmatpush1.bf16.msra.mxu0 %v4487
      %4742 = vmatprep.subr.bf16.mxu0 %v4486
      %4743 = vmatpush1.bf16.msra.mxu0 %v4485
      %4744 = vmatprep.subr.bf16.mxu0 %v4682
      %4745 = vmatpush2.bf16.msra.mxu0 %v4681
      %4746 = vmatprep.subr.bf16.mxu0 %v4680
      %4747 = vmatpush2.bf16.msra.mxu0 %v4679
      %4748 = vmatprep.subr.bf16.mxu0 %v4662
      %4749 = vmatpush2.bf16.msra.mxu0 %v4661
      %4750 = vmatprep.subr.bf16.mxu0 %v4660
      %4751 = vmatpush2.bf16.msra.mxu0 %v4659
      %4752 = vmatprep.subr.bf16.mxu0 %v4636
      %4753 = vmatpush2.bf16.msra.mxu0 %v4635
      %4754 = vmatprep.subr.bf16.mxu0 %v4634
      %4755 = vmatpush2.bf16.msra.mxu0 %v4633
      %4756 = vmatprep.subr.bf16.mxu0 %v4610
      %4757 = vmatpush2.bf16.msra.mxu0 %v4609
      %4758 = vmatprep.subr.bf16.mxu0 %v4608
      %4759 = vmatpush2.bf16.msra.mxu0 %v4607
      %4760 = vmatprep.mubr.bf16.mxu0 %v4721
      %4761 = vmatmul.mubr.bf16.gmra.mxu0 %v4720
      %v4762 = vpop.f32.mrf.mxu0
      %v4763 = vadd.f32 0.0, %v4762
      %v4764 = vpop.f32.mrf.mxu0
      %v4765 = vadd.f32 0.0, %v4764
      %v4766 = vpop.f32.mrf.mxu0
      %v4767 = vpop.f32.mrf.mxu0
      %4768 = vdwg.mxu0
      %4769 = vmatprep.subr.bf16.mxu0 0
      %4770 = vmatpush1.bf16.msra.mxu0 0
      %4771 = vmatprep.subr.bf16.mxu0 0
      %4772 = vmatpush1.bf16.msra.mxu0 0
      %4773 = vmatprep.subr.bf16.mxu0 0
      %4774 = vmatpush1.bf16.msra.mxu0 0
      %4775 = vmatprep.subr.bf16.mxu0 0
      %4776 = vmatpush1.bf16.msra.mxu0 0
      %4777 = vmatprep.subr.bf16.mxu0 0
      %4778 = vmatpush1.bf16.msra.mxu0 0
      %4779 = vmatprep.subr.bf16.mxu0 %v1280
      %4780 = vmatpush1.bf16.msra.mxu0 %v1280
      %4781 = vmatprep.subr.bf16.mxu0 %v4708
      %4782 = vmatpush1.bf16.msra.mxu0 %v4707
      %4783 = vmatprep.subr.bf16.mxu0 %v4706
      %4784 = vmatpush1.bf16.msra.mxu0 %v4705
      %4785 = vmatprep.subr.bf16.mxu0 0
      %4786 = vmatpush2.bf16.msra.mxu0 0
      %4787 = vmatprep.subr.bf16.mxu0 0
      %4788 = vmatpush2.bf16.msra.mxu0 0
      %4789 = vmatprep.subr.bf16.mxu0 0
      %4790 = vmatpush2.bf16.msra.mxu0 0
      %4791 = vmatprep.subr.bf16.mxu0 0
      %4792 = vmatpush2.bf16.msra.mxu0 0
      %4793 = vmatprep.subr.bf16.mxu0 0
      %4794 = vmatpush2.bf16.msra.mxu0 0
      %4795 = vmatprep.subr.bf16.mxu0 0
      %4796 = vmatpush2.bf16.msra.mxu0 0
      %4797 = vmatprep.subr.bf16.mxu0 0
      %4798 = vmatpush2.bf16.msra.mxu0 0
      %4799 = vmatprep.subr.bf16.mxu0 0
      %4800 = vmatpush2.bf16.msra.mxu0 0
      %4801 = vmatprep.mubr.bf16.mxu0 0
      %4802 = vmatmul.mubr.bf16.gmra.mxu0 %v4726
      %v4803 = vpop.f32.mrf.mxu0
      %v4804 = vadd.f32 %v4763, %v4803
      %v4805 = vpop.f32.mrf.mxu0
      %v4806 = vadd.f32 %v4765, %v4805
      %v4807 = vpop.f32.mrf.mxu0
      %v4808 = vpop.f32.mrf.mxu0
      %4809 = vdwg.mxu0
      %v4810 = vmax.f32 %v4804, 0.0
      %v4811 = vmax.f32 %v4806, 0.0
      %v4812 = vpack.c.bf16 %v4810, %v4810
      %v4813 = vpack.c.bf16 %v4811, %v4811
      %v4815 = vsel %vm646, %v4812, 1065369472
      %v4817 = vsel %vm646, %v4813, 1065369472
      %v4818 = vld [vmem:[%s1 + $0xac] sm:$0x1]
      %v4820 = vsel %vm948, %v4818, 0
      %v4822 = vand.u32 %v4815, %v1046
      %v4824 = vand.u32 %v4817, %v1046
      %4826 = vmatprep.subr.bf16.mxu0 0
      %4827 = vmatpush1.bf16.msra.mxu0 0
      %4828 = vmatprep.subr.bf16.mxu0 0
      %4829 = vmatpush1.bf16.msra.mxu0 0
      %4830 = vmatprep.subr.bf16.mxu0 0
      %4831 = vmatpush1.bf16.msra.mxu0 0
      %4832 = vmatprep.subr.bf16.mxu0 0
      %4833 = vmatpush1.bf16.msra.mxu0 0
      %4834 = vmatprep.subr.bf16.mxu0 0
      %4835 = vmatpush1.bf16.msra.mxu0 0
      %4836 = vmatprep.subr.bf16.mxu0 0
      %4837 = vmatpush1.bf16.msra.mxu0 0
      %4838 = vmatprep.subr.bf16.mxu0 0
      %4839 = vmatpush1.bf16.msra.mxu0 0
      %4840 = vmatprep.subr.bf16.mxu0 %v4824
      %4841 = vmatpush1.bf16.msra.mxu0 %v4822
      %4842 = vmatprep.subr.bf16.mxu0 0
      %4843 = vmatpush2.bf16.msra.mxu0 0
      %4844 = vmatprep.subr.bf16.mxu0 0
      %4845 = vmatpush2.bf16.msra.mxu0 0
      %4846 = vmatprep.subr.bf16.mxu0 0
      %4847 = vmatpush2.bf16.msra.mxu0 0
      %4848 = vmatprep.subr.bf16.mxu0 0
      %4849 = vmatpush2.bf16.msra.mxu0 0
      %4850 = vmatprep.subr.bf16.mxu0 0
      %4851 = vmatpush2.bf16.msra.mxu0 0
      %4852 = vmatprep.subr.bf16.mxu0 0
      %4853 = vmatpush2.bf16.msra.mxu0 0
      %4854 = vmatprep.subr.bf16.mxu0 0
      %4855 = vmatpush2.bf16.msra.mxu0 0
      %4856 = vmatprep.subr.bf16.mxu0 0
      %4857 = vmatpush2.bf16.msra.mxu0 0
      %4858 = vmatprep.mubr.bf16.mxu0 0
      %4859 = vmatmul.mubr.bf16.gmra.mxu0 %v4820
      %v4860 = vpop.f32.mrf.mxu0
      %v4861 = vadd.f32 0.0, %v4860
      %v4862 = vpop.f32.mrf.mxu0
      %v4863 = vadd.f32 0.0, %v4862
      %v4864 = vpop.f32.mrf.mxu0
      %v4865 = vpop.f32.mrf.mxu0
      %4866 = vdwg.mxu0
      %v4867 = vtanh.pop %v4861
      %v4868 = vtanh.pop %v4863
      %v4871 = vrot.slane %v4867, 5
      %v4872 = vrot.slane %v4868, 5
      %v4875 = vsel %vm684, %v3424, %v4871
      %v4876 = vsel %vm684, %v3426, %v4872
      %v4879 = vcombine.low %v4875, %v4876
      %4881 = vst [vmem:[%s386] sm:$0xff] %v4879
      %p4882 = scmp.lt.s32.totalorder %s22, 1
      %s4883 = scalar_select %p4882, %s22, 1
      %s4884 = smul.addr %s4883, 2
      %s4885 = smul.addr %s4884, 4
      %s4886 = scalar_lea.vmem %s11, %s4885
      // Predicated region
      $region65: #{pgan_forward.1} parent=63 // pred_check
        %p4887 = pneg %p276
      $region66: #{pgan_forward.1} parent=63 // pred_check_branch
        %4889 = sbr.rel (%p4887) target = $region68
      $region67: #{pgan_forward.1} parent=63 // pred_region
        _
      $region68: #{pgan_forward.1} parent=63 // pred_fallthru
        _
    $region64: #{pgan_forward.1} parent=5 // pred_fallthru
      _
    %p4890 = scmp.le.s32.totalorder 2, %s17
    // Predicated region
    $region69: #{pgan_forward.1} parent=5 // pred_check
      %p4891 = pneg %p4890
    $region70: #{pgan_forward.1} parent=5 // pred_check_branch
      %4893 = sbr.rel (%p4891) target = $region72
    $region71: #{pgan_forward.1} parent=5 // pred_region
      %s4894 = ssub.s32 %s17, 2
      // Predicated region
      $region73: #{pgan_forward.1} parent=71 // pred_check
        %p4895 = pneg %p282
      $region74: #{pgan_forward.1} parent=71 // pred_check_branch
        %4897 = sbr.rel (%p4895) target = $region76
      $region75: #{pgan_forward.1} parent=71 // pred_region
        %p4898 = scmp.lt.s32.totalorder %s23, 1
        %s4899 = scalar_select %p4898, %s23, 1
        %s4900 = smul.addr %s4899, 2
        %s4901 = smul.addr %s4900, 4
        %s4902 = scalar_lea.vmem %s11, %s4901
      $region76: #{pgan_forward.1} parent=71 // pred_fallthru
        _
    $region72: #{pgan_forward.1} parent=5 // pred_fallthru
      _
  $region6: #{pgan_forward.1} parent=0 // loop_footer
    %s21 = sadd.s32 1, %s17
  $region7: #{pgan_forward.1} parent=0 // loop_footer_branch
    %16 = sbr.rel target = $region3
  $region8: #{pgan_forward.1} parent=0 // loop_exit
    _

</llo_original>
